<compile_context>
chip_gen: v5e
topology: v5e:2x2
jax: 0.10.0
libtpu: 0.0.40
codegen_flags: <defaults>
</compile_context>

<pallas_src>
import math
import numpy as np
import jax
import jax.numpy as jnp
from jax import lax
from jax.experimental import pallas as pl
from jax.experimental.pallas import tpu as pltpu


PACKED_ORDER = (
    "w0_ih", "b0", "w0_hh", "b0_hn",
    "w1_f", "w1_b", "b1", "w1_hh", "b1_hn",
    "wqkv_f", "wqkv_b", "bqkv",
    "wo", "bo",
)


def seq2emb_kernel(x_ref,
                   w0_ih, b0, w0_hh, b0_hn,
                   w1_f, w1_b, b1, w1_hh, b1_hn,
                   wqkv_f, wqkv_b, bqkv,
                   wo, bo,
                   out_ref,
                   gi_ref, l0f, l0b, l1f, l1b):
    T, B, _ = x_ref.shape
    H = l0f.shape[-1]          # per-direction hidden size (rnn_out // 2)
    H2 = 2 * H

    # Column-ownership mask for the interleaved gate layout
    # [r_f r_b | z_f z_b | n_f n_b]: fwd columns read gate inputs at time i,
    # bwd columns at time T-1-i.
    col = lax.broadcasted_iota(jnp.int32, (B, 6 * H), 1)
    fwd_cols = (col % H2) < H

    def gru_layer(whh_ref, bhn_ref, outf, outb):
        """Fused fwd+bwd GRU recurrence; gate inputs precomputed in gi_ref."""
        whh = whh_ref[...]          # (2H, 6H) block-structured recurrent weights
        bhn = bhn_ref[...]          # (1, 2H)  b_hn for both directions
        h = jnp.zeros((B, H2), jnp.float32)            # [h_fwd | h_bwd]
        # T is small & static -> fully unrolled straight-line recurrence.
        # (For production-sized T, switch to lax.fori_loop(..., unroll=k).)
        for i in range(T):
            gi = jnp.where(fwd_cols, gi_ref[i], gi_ref[T - 1 - i])     # (B, 6H)
            gh = jnp.dot(h, whh, preferred_element_type=jnp.float32)   # (B, 6H)
            r = jax.nn.sigmoid(gi[:, :H2] + gh[:, :H2])
            z = jax.nn.sigmoid(gi[:, H2:2 * H2] + gh[:, H2:2 * H2])
            n = jnp.tanh(gi[:, 2 * H2:] + r * (gh[:, 2 * H2:] + bhn))
            h = (1.0 - z) * n + z * h
            outf[i] = h[:, :H]
            outb[T - 1 - i] = h[:, H:]

    # ---- GRU layer 0: hoisted input projection (one dense matmul, all steps) ----
    gi_ref[...] = jnp.einsum("tbd,dg->tbg", x_ref[...], w0_ih[...],
                             preferred_element_type=jnp.float32) + b0[...]
    gru_layer(w0_hh, b0_hn, l0f, l0b)

    # ---- GRU layer 1: input projection from fwd/bwd halves (no concat pass) ----
    gi_ref[...] = (jnp.einsum("tbh,hg->tbg", l0f[...], w1_f[...],
                              preferred_element_type=jnp.float32)
                   + jnp.einsum("tbh,hg->tbg", l0b[...], w1_b[...],
                                preferred_element_type=jnp.float32)
                   + b1[...])
    gru_layer(w1_hh, b1_hn, l1f, l1b)

    # ---- TransformerAttn: dense time-major QKV projection, no latent concat ----
    qkv_tm = (jnp.einsum("tbh,hg->tbg", l1f[...], wqkv_f[...],
                         preferred_element_type=jnp.float32)
              + jnp.einsum("tbh,hg->tbg", l1b[...], wqkv_b[...],
                           preferred_element_type=jnp.float32)
              + bqkv[...])                            # (T, B, 6H) = [q | k | v]
    qkv = jnp.transpose(qkv_tm, (1, 0, 2))            # (B, T, 6H) - single small copy
    q = qkv[:, :, :H2]
    k = qkv[:, :, H2:2 * H2]
    v = qkv[:, :, 2 * H2:]
    logits = jnp.einsum("bqe,bke->bqk", q, k,
                        preferred_element_type=jnp.float32) * (1.0 / math.sqrt(H2))
    logits = logits - jnp.max(logits, axis=-1, keepdims=True)
    e = jnp.exp(logits)
    w = e * pl.reciprocal(jnp.sum(e, axis=-1, keepdims=True), approx=True)
    # pooled = sum_q (softmax @ V)  ==  (sum_q softmax) @ V  (never materialize attn)
    wsum = jnp.sum(w, axis=1, keepdims=True)                         # (B, 1, T)
    pooled = jnp.einsum("bqk,bke->bqe", wsum, v,
                        preferred_element_type=jnp.float32)[:, 0, :]  # (B, 2H)

    # ---- out layer: Linear + Tanh  (Dropout(p=0) == identity) ----
    out_ref[...] = jnp.tanh(
        jnp.dot(pooled, wo[...], preferred_element_type=jnp.float32) + bo[...])


def seq2emb_forward(x, packed):
    """x: (batch, seq, feat) float32 -> (batch, dim_out) float32."""
    B, T, _ = x.shape
    x_tm = jnp.transpose(x, (1, 0, 2)).astype(jnp.float32)   # time-major
    H = packed["b0_hn"].shape[1] // 2
    dim_out = packed["wo"].shape[1]
    args = (x_tm,) + tuple(packed[k] for k in PACKED_ORDER)
    vmem = pl.BlockSpec(memory_space=pltpu.MemorySpace.VMEM)
    # NOTE: at production sizes, add a grid over batch (block (T, Btile, D)) with
    # dimension_semantics=("parallel",) to use v7x's second TensorCore and keep
    # scratch within the 64 MiB VMEM budget; at this toy size one invocation is best.
    return pl.pallas_call(
        seq2emb_kernel,
        out_shape=jax.ShapeDtypeStruct((B, dim_out), jnp.float32),
        in_specs=[vmem] * len(args),
        out_specs=vmem,
        scratch_shapes=[
            pltpu.VMEM((T, B, 6 * H), jnp.float32),   # gate-input scratch (reused by both layers)
            pltpu.VMEM((T, B, H), jnp.float32),       # layer-0 forward outputs
            pltpu.VMEM((T, B, H), jnp.float32),       # layer-0 backward outputs
            pltpu.VMEM((T, B, H), jnp.float32),       # layer-1 forward outputs
            pltpu.VMEM((T, B, H), jnp.float32),       # layer-1 backward outputs
        ],
    )(*args)


# --------------------------------------------------------------------------
# Parameter construction (raw PyTorch-style params) and host-side packing.
# --------------------------------------------------------------------------

def init_params(key, dim_seq_in, rnn_out, dim_out):
    """Deterministic synthetic parameters matching the PyTorch module shapes.

    Weights are stored pre-transposed: (in_features, out_features);
    GRU gate order is PyTorch's [r, z, n].
    """
    H = rnn_out // 2
    keys = iter(jax.random.split(key, 40))

    def uni(shape, bound):
        return jax.random.uniform(next(keys), shape, jnp.float32, -bound, bound)

    def xavier(in_f, out_f):
        a = math.sqrt(6.0 / (in_f + out_f))
        return jax.random.uniform(next(keys), (in_f, out_f), jnp.float32, -a, a)

    p = {}
    kg = 1.0 / math.sqrt(H)
    # GRU: 2 layers x 2 directions
    for tag, din in (("0f", dim_seq_in), ("0b", dim_seq_in),
                     ("1f", rnn_out), ("1b", rnn_out)):
        p[f"wih{tag}"] = uni((din, 3 * H), kg)   # == W_ih.T
        p[f"whh{tag}"] = uni((H, 3 * H), kg)     # == W_hh.T
        p[f"bih{tag}"] = uni((1, 3 * H), kg)
        p[f"bhh{tag}"] = uni((1, 3 * H), kg)
    # TransformerAttn linears: xavier_uniform weights, bias = 0.01
    for tag in ("q", "k", "v"):
        p[f"w{tag}"] = xavier(rnn_out, rnn_out)
        p[f"b{tag}"] = jnp.full((1, rnn_out), 0.01, jnp.float32)
    # out_layer Linear
    ko = 1.0 / math.sqrt(rnn_out)
    p["wo"] = uni((rnn_out, dim_out), ko)
    p["bo"] = uni((1, dim_out), ko)
    return p


def pack_params(p):
    """Pack raw params into the kernel's lane-dense buffers with gate-interleaved
    columns [r_f r_b | z_f z_b | n_f n_b]."""
    H = p["whh0f"].shape[0]

    def inter(f, b):   # (..., 3H) x2 -> (..., 6H) interleaved per gate
        return jnp.concatenate(
            [f[..., 0:H], b[..., 0:H],
             f[..., H:2 * H], b[..., H:2 * H],
             f[..., 2 * H:3 * H], b[..., 2 * H:3 * H]], axis=-1)

    def gi_bias(bih_f, bhh_f, bih_b, bhh_b):
        # fold b_hh into the r/z columns; the n-gate b_hh stays inside the loop
        bf = jnp.concatenate([bih_f[:, :2 * H] + bhh_f[:, :2 * H],
                              bih_f[:, 2 * H:]], axis=-1)
        bb = jnp.concatenate([bih_b[:, :2 * H] + bhh_b[:, :2 * H],
                              bih_b[:, 2 * H:]], axis=-1)
        return inter(bf, bb)

    def hh_block(whh_f, whh_b):
        z = jnp.zeros((H, 3 * H), jnp.float32)
        return inter(jnp.concatenate([whh_f, z], axis=0),
                     jnp.concatenate([z, whh_b], axis=0))     # (2H, 6H)

    q = {}
    q["w0_ih"] = inter(p["wih0f"], p["wih0b"])
    q["b0"] = gi_bias(p["bih0f"], p["bhh0f"], p["bih0b"], p["bhh0b"])
    q["w0_hh"] = hh_block(p["whh0f"], p["whh0b"])
    q["b0_hn"] = jnp.concatenate([p["bhh0f"][:, 2 * H:], p["bhh0b"][:, 2 * H:]],
                                 axis=-1)

    q["w1_f"] = inter(p["wih1f"][:H, :], p["wih1b"][:H, :])   # rows that read l0_fwd
    q["w1_b"] = inter(p["wih1f"][H:, :], p["wih1b"][H:, :])   # rows that read l0_bwd
    q["b1"] = gi_bias(p["bih1f"], p["bhh1f"], p["bih1b"], p["bhh1b"])
    q["w1_hh"] = hh_block(p["whh1f"], p["whh1b"])
    q["b1_hn"] = jnp.concatenate([p["bhh1f"][:, 2 * H:], p["bhh1b"][:, 2 * H:]],
                                 axis=-1)

    q["wqkv_f"] = jnp.concatenate([p["wq"][:H, :], p["wk"][:H, :], p["wv"][:H, :]],
                                  axis=1)
    q["wqkv_b"] = jnp.concatenate([p["wq"][H:, :], p["wk"][H:, :], p["wv"][H:, :]],
                                  axis=1)
    q["bqkv"] = jnp.concatenate([p["bq"], p["bk"], p["bv"]], axis=1)

    q["wo"] = p["wo"]
    q["bo"] = p["bo"]
    return q


# --------------------------------------------------------------------------
# Pure-JAX reference (same math as the PyTorch module) for validation.
# --------------------------------------------------------------------------

def seq2emb_reference(x, p):
    x_tm = jnp.transpose(x, (1, 0, 2)).astype(jnp.float32)
    T, B, _ = x_tm.shape
    H = p["whh0f"].shape[0]

    def gru_dir(xs, wih, whh, bih, bhh, reverse):
        seq = xs[::-1] if reverse else xs

        def step(h, x_t):
            gi = x_t @ wih + bih
            gh = h @ whh + bhh
            r = jax.nn.sigmoid(gi[:, :H] + gh[:, :H])
            z = jax.nn.sigmoid(gi[:, H:2 * H] + gh[:, H:2 * H])
            n = jnp.tanh(gi[:, 2 * H:] + r * gh[:, 2 * H:])
            hn = (1.0 - z) * n + z * h
            return hn, hn

        _, ys = lax.scan(step, jnp.zeros((B, H), jnp.float32), seq)
        return ys[::-1] if reverse else ys

    l0 = jnp.concatenate([
        gru_dir(x_tm, p["wih0f"], p["whh0f"], p["bih0f"], p["bhh0f"], False),
        gru_dir(x_tm, p["wih0b"], p["whh0b"], p["bih0b"], p["bhh0b"], True),
    ], axis=-1)
    l1 = jnp.concatenate([
        gru_dir(l0, p["wih1f"], p["whh1f"], p["bih1f"], p["bhh1f"], False),
        gru_dir(l0, p["wih1b"], p["whh1b"], p["bih1b"], p["bhh1b"], True),
    ], axis=-1)
    seq_in = jnp.transpose(l1, (1, 0, 2))
    q = seq_in @ p["wq"] + p["bq"]
    k = seq_in @ p["wk"] + p["bk"]
    v = seq_in @ p["wv"] + p["bv"]
    w = jnp.einsum("bqe,bke->bqk", q, k) / math.sqrt(k.shape[-1])
    w = jax.nn.softmax(w, axis=-1)
    pooled = jnp.einsum("bqk,bke->bqe", w, v).sum(axis=1)
    return jnp.tanh(pooled @ p["wo"] + p["bo"])


if __name__ == "__main__":
    B, T, D = 4, 8, 8            # batch, seq_len, x_train_dim
    RNN_OUT, DIM_OUT = 32, 32    # rnn_hidden_dim, hidden_dim

    key = jax.random.PRNGKey(0)
    kx, kp = jax.random.split(key)
    x = jax.random.normal(kx, (B, T, D), jnp.float32)
    raw = init_params(kp, D, RNN_OUT, DIM_OUT)
    packed = pack_params(raw)

    out = jax.block_until_ready(seq2emb_forward(x, packed))
    ref = jax.block_until_ready(seq2emb_reference(x, raw))

    assert out.shape == (B, DIM_OUT), out.shape
    err = np.max(np.abs(np.asarray(out) - np.asarray(ref)))
    # tolerance accounts for the EUP approximate-reciprocal softmax normalization
    assert np.allclose(np.asarray(out), np.asarray(ref), atol=3e-3, rtol=3e-3), err
    print("KERNEL_OK")
</pallas_src>

<mosaic_0001>
module attributes {stable_mosaic.version = 11 : i64} {
  func.func @seq2emb_kernel(%arg0: memref<8x4x8xf32, #tpu.memory_space<vmem>>, %arg1: memref<8x96xf32, #tpu.memory_space<vmem>>, %arg2: memref<1x96xf32, #tpu.memory_space<vmem>>, %arg3: memref<32x96xf32, #tpu.memory_space<vmem>>, %arg4: memref<1x32xf32, #tpu.memory_space<vmem>>, %arg5: memref<16x96xf32, #tpu.memory_space<vmem>>, %arg6: memref<16x96xf32, #tpu.memory_space<vmem>>, %arg7: memref<1x96xf32, #tpu.memory_space<vmem>>, %arg8: memref<32x96xf32, #tpu.memory_space<vmem>>, %arg9: memref<1x32xf32, #tpu.memory_space<vmem>>, %arg10: memref<16x96xf32, #tpu.memory_space<vmem>>, %arg11: memref<16x96xf32, #tpu.memory_space<vmem>>, %arg12: memref<1x96xf32, #tpu.memory_space<vmem>>, %arg13: memref<32x32xf32, #tpu.memory_space<vmem>>, %arg14: memref<1x32xf32, #tpu.memory_space<vmem>>, %arg15: memref<4x32xf32, #tpu.memory_space<vmem>>, %arg16: memref<8x4x96xf32, #tpu.memory_space<vmem>>, %arg17: memref<8x4x16xf32, #tpu.memory_space<vmem>>, %arg18: memref<8x4x16xf32, #tpu.memory_space<vmem>>, %arg19: memref<8x4x16xf32, #tpu.memory_space<vmem>>, %arg20: memref<8x4x16xf32, #tpu.memory_space<vmem>>) attributes {dimension_semantics = [], scalar_prefetch = 0 : i64, scratch_operands = 5 : i64, tpu.core_type = #tpu.core_type<tc>} {
    %0 = tpu.iota {dimensions = array<i32: 1>} : vector<4x96xi32>
    %c32_i32 = arith.constant 32 : i32
    %c0_i32 = arith.constant 0 : i32
    %1 = arith.cmpi eq, %c32_i32, %c0_i32 : i32
    %c1_i32 = arith.constant 1 : i32
    %2 = arith.select %1, %c1_i32, %c32_i32 : i32
    %3 = vector.broadcast %2 : i32 to vector<4x96xi32>
    %4 = arith.remsi %0, %3 : vector<4x96xi32>
    %c0_i32_0 = arith.constant 0 : i32
    %5 = vector.broadcast %c0_i32_0 : i32 to vector<4x96xi32>
    %6 = arith.cmpi ne, %4, %5 : vector<4x96xi32>
    %c0_i32_1 = arith.constant 0 : i32
    %7 = vector.broadcast %c0_i32_1 : i32 to vector<4x96xi32>
    %8 = arith.cmpi slt, %4, %7 : vector<4x96xi32>
    %c0_i32_2 = arith.constant 0 : i32
    %9 = arith.cmpi slt, %2, %c0_i32_2 : i32
    %10 = vector.broadcast %9 : i1 to vector<4x96xi1>
    %11 = vector.broadcast %10 : vector<4x96xi1> to vector<4x96xi1>
    %12 = arith.xori %8, %11 : vector<4x96xi1>
    %13 = arith.andi %12, %6 : vector<4x96xi1>
    %14 = vector.broadcast %2 : i32 to vector<4x96xi32>
    %15 = arith.addi %4, %14 : vector<4x96xi32>
    %16 = arith.select %13, %15, %4 : vector<4x96xi1>, vector<4x96xi32>
    %c16_i32 = arith.constant 16 : i32
    %17 = vector.broadcast %c16_i32 : i32 to vector<4x96xi32>
    %18 = arith.cmpi slt, %16, %17 : vector<4x96xi32>
    %c0 = arith.constant 0 : index
    %c0_3 = arith.constant 0 : index
    %c0_4 = arith.constant 0 : index
    %19 = vector.load %arg0[%c0, %c0_3, %c0_4] : memref<8x4x8xf32, #tpu.memory_space<vmem>>, vector<8x4x8xf32>
    %c0_5 = arith.constant 0 : index
    %c0_6 = arith.constant 0 : index
    %20 = vector.load %arg1[%c0_5, %c0_6] : memref<8x96xf32, #tpu.memory_space<vmem>>, vector<8x96xf32>
    "tpu.trace_start"() <{level = 10 : i32, message = "tbd,dg->tbg"}> : () -> ()
    %cst = arith.constant dense<0.000000e+00> : vector<8x4x96xf32>
    %21 = tpu.matmul %19, %20, %cst {dimension_numbers = #tpu.dot_dimension_numbers<[2], [0], [0, 1], [1], [0, 0, 0, 1, 1, 1], [], []>} : vector<8x4x8xf32>, vector<8x96xf32>, vector<8x4x96xf32> -> vector<8x4x96xf32>
    "tpu.trace_stop"() : () -> ()
    %c0_7 = arith.constant 0 : index
    %c0_8 = arith.constant 0 : index
    %22 = vector.load %arg2[%c0_7, %c0_8] : memref<1x96xf32, #tpu.memory_space<vmem>>, vector<1x96xf32>
    %23 = vector.shape_cast %22 : vector<1x96xf32> to vector<1x1x96xf32>
    %24 = vector.broadcast %23 : vector<1x1x96xf32> to vector<8x4x96xf32>
    %25 = arith.addf %21, %24 : vector<8x4x96xf32>
    %c0_9 = arith.constant 0 : index
    %c0_10 = arith.constant 0 : index
    %c0_11 = arith.constant 0 : index
    %26 = vector.load %arg16[%c0_9, %c0_10, %c0_11] : memref<8x4x96xf32, #tpu.memory_space<vmem>>, vector<8x4x96xf32>
    tpu.vector_store %arg16[%c0_9, %c0_10, %c0_11], %25 {strides = array<i32>} : memref<8x4x96xf32, #tpu.memory_space<vmem>>, vector<8x4x96xf32>,
    %c0_12 = arith.constant 0 : index
    %c0_13 = arith.constant 0 : index
    %27 = vector.load %arg3[%c0_12, %c0_13] : memref<32x96xf32, #tpu.memory_space<vmem>>, vector<32x96xf32>
    %c0_14 = arith.constant 0 : index
    %c0_15 = arith.constant 0 : index
    %28 = vector.load %arg4[%c0_14, %c0_15] : memref<1x32xf32, #tpu.memory_space<vmem>>, vector<1x32xf32>
    %cst_16 = arith.constant 0.000000e+00 : f32
    %29 = vector.broadcast %cst_16 : f32 to vector<4x32xf32>
    %c0_17 = arith.constant 0 : index
    %c0_18 = arith.constant 0 : index
    %c0_19 = arith.constant 0 : index
    %30 = vector.load %arg16[%c0_17, %c0_18, %c0_19] : memref<8x4x96xf32, #tpu.memory_space<vmem>>, vector<1x4x96xf32>
    %31 = vector.shape_cast %30 : vector<1x4x96xf32> to vector<4x96xf32>
    %c7 = arith.constant 7 : index
    %c0_20 = arith.constant 0 : index
    %c0_21 = arith.constant 0 : index
    %32 = vector.load %arg16[%c7, %c0_20, %c0_21] : memref<8x4x96xf32, #tpu.memory_space<vmem>>, vector<1x4x96xf32>
    %33 = vector.shape_cast %32 : vector<1x4x96xf32> to vector<4x96xf32>
    %34 = arith.select %18, %31, %33 : vector<4x96xi1>, vector<4x96xf32>
    %cst_22 = arith.constant dense<0.000000e+00> : vector<4x96xf32>
    %35 = tpu.matmul %29, %27, %cst_22 {dimension_numbers = #tpu.dot_dimension_numbers<[1], [0], [0], [1], [0, 0, 1, 1], [], []>} : vector<4x32xf32>, vector<32x96xf32>, vector<4x96xf32> -> vector<4x96xf32>
    %36 = vector.extract_strided_slice %34 {offsets = [0, 0], sizes = [4, 32], strides = [1, 1]} : vector<4x96xf32> to vector<4x32xf32>
    %37 = vector.extract_strided_slice %35 {offsets = [0, 0], sizes = [4, 32], strides = [1, 1]} : vector<4x96xf32> to vector<4x32xf32>
    %38 = arith.addf %36, %37 : vector<4x32xf32>
    %39 = arith.negf %38 : vector<4x32xf32>
    %40 = math.exp %39 : vector<4x32xf32>
    %cst_23 = arith.constant 1.000000e+00 : f32
    %41 = vector.broadcast %cst_23 : f32 to vector<4x32xf32>
    %42 = arith.addf %41, %40 : vector<4x32xf32>
    %43 = arith.divf %41, %42 : vector<4x32xf32>
    %44 = vector.extract_strided_slice %34 {offsets = [0, 32], sizes = [4, 32], strides = [1, 1]} : vector<4x96xf32> to vector<4x32xf32>
    %45 = vector.extract_strided_slice %35 {offsets = [0, 32], sizes = [4, 32], strides = [1, 1]} : vector<4x96xf32> to vector<4x32xf32>
    %46 = arith.addf %44, %45 : vector<4x32xf32>
    %47 = arith.negf %46 : vector<4x32xf32>
    %48 = math.exp %47 : vector<4x32xf32>
    %cst_24 = arith.constant 1.000000e+00 : f32
    %49 = vector.broadcast %cst_24 : f32 to vector<4x32xf32>
    %50 = arith.addf %49, %48 : vector<4x32xf32>
    %51 = arith.divf %49, %50 : vector<4x32xf32>
    %52 = vector.extract_strided_slice %34 {offsets = [0, 64], sizes = [4, 32], strides = [1, 1]} : vector<4x96xf32> to vector<4x32xf32>
    %53 = vector.extract_strided_slice %35 {offsets = [0, 64], sizes = [4, 32], strides = [1, 1]} : vector<4x96xf32> to vector<4x32xf32>
    %54 = vector.broadcast %28 : vector<1x32xf32> to vector<4x32xf32>
    %55 = arith.addf %53, %54 : vector<4x32xf32>
    %56 = arith.mulf %43, %55 : vector<4x32xf32>
    %57 = arith.addf %52, %56 : vector<4x32xf32>
    %58 = math.tanh %57 : vector<4x32xf32>
    %cst_25 = arith.constant 1.000000e+00 : f32
    %59 = vector.broadcast %cst_25 : f32 to vector<4x32xf32>
    %60 = arith.subf %59, %51 : vector<4x32xf32>
    %61 = arith.mulf %60, %58 : vector<4x32xf32>
    %62 = arith.mulf %51, %29 : vector<4x32xf32>
    %63 = arith.addf %61, %62 : vector<4x32xf32>
    %64 = vector.extract_strided_slice %63 {offsets = [0, 0], sizes = [4, 16], strides = [1, 1]} : vector<4x32xf32> to vector<4x16xf32>
    %c0_26 = arith.constant 0 : index
    %c0_27 = arith.constant 0 : index
    %c0_28 = arith.constant 0 : index
    %65 = vector.load %arg17[%c0_26, %c0_27, %c0_28] : memref<8x4x16xf32, #tpu.memory_space<vmem>>, vector<1x4x16xf32>
    %66 = vector.shape_cast %65 : vector<1x4x16xf32> to vector<4x16xf32>
    %67 = vector.shape_cast %64 : vector<4x16xf32> to vector<1x4x16xf32>
    tpu.vector_store %arg17[%c0_26, %c0_27, %c0_28], %67 {strides = array<i32>} : memref<8x4x16xf32, #tpu.memory_space<vmem>>, vector<1x4x16xf32>,
    %68 = vector.extract_strided_slice %63 {offsets = [0, 16], sizes = [4, 16], strides = [1, 1]} : vector<4x32xf32> to vector<4x16xf32>
    %c7_29 = arith.constant 7 : index
    %c0_30 = arith.constant 0 : index
    %c0_31 = arith.constant 0 : index
    %69 = vector.load %arg18[%c7_29, %c0_30, %c0_31] : memref<8x4x16xf32, #tpu.memory_space<vmem>>, vector<1x4x16xf32>
    %70 = vector.shape_cast %69 : vector<1x4x16xf32> to vector<4x16xf32>
    %71 = vector.shape_cast %68 : vector<4x16xf32> to vector<1x4x16xf32>
    tpu.vector_store %arg18[%c7_29, %c0_30, %c0_31], %71 {strides = array<i32>} : memref<8x4x16xf32, #tpu.memory_space<vmem>>, vector<1x4x16xf32>,
    %c1 = arith.constant 1 : index
    %c0_32 = arith.constant 0 : index
    %c0_33 = arith.constant 0 : index
    %72 = vector.load %arg16[%c1, %c0_32, %c0_33] : memref<8x4x96xf32, #tpu.memory_space<vmem>>, vector<1x4x96xf32>
    %73 = vector.shape_cast %72 : vector<1x4x96xf32> to vector<4x96xf32>
    %c6 = arith.constant 6 : index
    %c0_34 = arith.constant 0 : index
    %c0_35 = arith.constant 0 : index
    %74 = vector.load %arg16[%c6, %c0_34, %c0_35] : memref<8x4x96xf32, #tpu.memory_space<vmem>>, vector<1x4x96xf32>
    %75 = vector.shape_cast %74 : vector<1x4x96xf32> to vector<4x96xf32>
    %76 = arith.select %18, %73, %75 : vector<4x96xi1>, vector<4x96xf32>
    %cst_36 = arith.constant dense<0.000000e+00> : vector<4x96xf32>
    %77 = tpu.matmul %63, %27, %cst_36 {dimension_numbers = #tpu.dot_dimension_numbers<[1], [0], [0], [1], [0, 0, 1, 1], [], []>} : vector<4x32xf32>, vector<32x96xf32>, vector<4x96xf32> -> vector<4x96xf32>
    %78 = vector.extract_strided_slice %76 {offsets = [0, 0], sizes = [4, 32], strides = [1, 1]} : vector<4x96xf32> to vector<4x32xf32>
    %79 = vector.extract_strided_slice %77 {offsets = [0, 0], sizes = [4, 32], strides = [1, 1]} : vector<4x96xf32> to vector<4x32xf32>
    %80 = arith.addf %78, %79 : vector<4x32xf32>
    %81 = arith.negf %80 : vector<4x32xf32>
    %82 = math.exp %81 : vector<4x32xf32>
    %cst_37 = arith.constant 1.000000e+00 : f32
    %83 = vector.broadcast %cst_37 : f32 to vector<4x32xf32>
    %84 = arith.addf %83, %82 : vector<4x32xf32>
    %85 = arith.divf %83, %84 : vector<4x32xf32>
    %86 = vector.extract_strided_slice %76 {offsets = [0, 32], sizes = [4, 32], strides = [1, 1]} : vector<4x96xf32> to vector<4x32xf32>
    %87 = vector.extract_strided_slice %77 {offsets = [0, 32], sizes = [4, 32], strides = [1, 1]} : vector<4x96xf32> to vector<4x32xf32>
    %88 = arith.addf %86, %87 : vector<4x32xf32>
    %89 = arith.negf %88 : vector<4x32xf32>
    %90 = math.exp %89 : vector<4x32xf32>
    %cst_38 = arith.constant 1.000000e+00 : f32
    %91 = vector.broadcast %cst_38 : f32 to vector<4x32xf32>
    %92 = arith.addf %91, %90 : vector<4x32xf32>
    %93 = arith.divf %91, %92 : vector<4x32xf32>
    %94 = vector.extract_strided_slice %76 {offsets = [0, 64], sizes = [4, 32], strides = [1, 1]} : vector<4x96xf32> to vector<4x32xf32>
    %95 = vector.extract_strided_slice %77 {offsets = [0, 64], sizes = [4, 32], strides = [1, 1]} : vector<4x96xf32> to vector<4x32xf32>
    %96 = vector.broadcast %28 : vector<1x32xf32> to vector<4x32xf32>
    %97 = arith.addf %95, %96 : vector<4x32xf32>
    %98 = arith.mulf %85, %97 : vector<4x32xf32>
    %99 = arith.addf %94, %98 : vector<4x32xf32>
    %100 = math.tanh %99 : vector<4x32xf32>
    %cst_39 = arith.constant 1.000000e+00 : f32
    %101 = vector.broadcast %cst_39 : f32 to vector<4x32xf32>
    %102 = arith.subf %101, %93 : vector<4x32xf32>
    %103 = arith.mulf %102, %100 : vector<4x32xf32>
    %104 = arith.mulf %93, %63 : vector<4x32xf32>
    %105 = arith.addf %103, %104 : vector<4x32xf32>
    %106 = vector.extract_strided_slice %105 {offsets = [0, 0], sizes = [4, 16], strides = [1, 1]} : vector<4x32xf32> to vector<4x16xf32>
    %c1_40 = arith.constant 1 : index
    %c0_41 = arith.constant 0 : index
    %c0_42 = arith.constant 0 : index
    %107 = vector.load %arg17[%c1_40, %c0_41, %c0_42] : memref<8x4x16xf32, #tpu.memory_space<vmem>>, vector<1x4x16xf32>
    %108 = vector.shape_cast %107 : vector<1x4x16xf32> to vector<4x16xf32>
    %109 = vector.shape_cast %106 : vector<4x16xf32> to vector<1x4x16xf32>
    tpu.vector_store %arg17[%c1_40, %c0_41, %c0_42], %109 {strides = array<i32>} : memref<8x4x16xf32, #tpu.memory_space<vmem>>, vector<1x4x16xf32>,
    %110 = vector.extract_strided_slice %105 {offsets = [0, 16], sizes = [4, 16], strides = [1, 1]} : vector<4x32xf32> to vector<4x16xf32>
    %c6_43 = arith.constant 6 : index
    %c0_44 = arith.constant 0 : index
    %c0_45 = arith.constant 0 : index
    %111 = vector.load %arg18[%c6_43, %c0_44, %c0_45] : memref<8x4x16xf32, #tpu.memory_space<vmem>>, vector<1x4x16xf32>
    %112 = vector.shape_cast %111 : vector<1x4x16xf32> to vector<4x16xf32>
    %113 = vector.shape_cast %110 : vector<4x16xf32> to vector<1x4x16xf32>
    tpu.vector_store %arg18[%c6_43, %c0_44, %c0_45], %113 {strides = array<i32>} : memref<8x4x16xf32, #tpu.memory_space<vmem>>, vector<1x4x16xf32>,
    %c2 = arith.constant 2 : index
    %c0_46 = arith.constant 0 : index
    %c0_47 = arith.constant 0 : index
    %114 = vector.load %arg16[%c2, %c0_46, %c0_47] : memref<8x4x96xf32, #tpu.memory_space<vmem>>, vector<1x4x96xf32>
    %115 = vector.shape_cast %114 : vector<1x4x96xf32> to vector<4x96xf32>
    %c5 = arith.constant 5 : index
    %c0_48 = arith.constant 0 : index
    %c0_49 = arith.constant 0 : index
    %116 = vector.load %arg16[%c5, %c0_48, %c0_49] : memref<8x4x96xf32, #tpu.memory_space<vmem>>, vector<1x4x96xf32>
    %117 = vector.shape_cast %116 : vector<1x4x96xf32> to vector<4x96xf32>
    %118 = arith.select %18, %115, %117 : vector<4x96xi1>, vector<4x96xf32>
    %cst_50 = arith.constant dense<0.000000e+00> : vector<4x96xf32>
    %119 = tpu.matmul %105, %27, %cst_50 {dimension_numbers = #tpu.dot_dimension_numbers<[1], [0], [0], [1], [0, 0, 1, 1], [], []>} : vector<4x32xf32>, vector<32x96xf32>, vector<4x96xf32> -> vector<4x96xf32>
    %120 = vector.extract_strided_slice %118 {offsets = [0, 0], sizes = [4, 32], strides = [1, 1]} : vector<4x96xf32> to vector<4x32xf32>
    %121 = vector.extract_strided_slice %119 {offsets = [0, 0], sizes = [4, 32], strides = [1, 1]} : vector<4x96xf32> to vector<4x32xf32>
    %122 = arith.addf %120, %121 : vector<4x32xf32>
    %123 = arith.negf %122 : vector<4x32xf32>
    %124 = math.exp %123 : vector<4x32xf32>
    %cst_51 = arith.constant 1.000000e+00 : f32
    %125 = vector.broadcast %cst_51 : f32 to vector<4x32xf32>
    %126 = arith.addf %125, %124 : vector<4x32xf32>
    %127 = arith.divf %125, %126 : vector<4x32xf32>
    %128 = vector.extract_strided_slice %118 {offsets = [0, 32], sizes = [4, 32], strides = [1, 1]} : vector<4x96xf32> to vector<4x32xf32>
    %129 = vector.extract_strided_slice %119 {offsets = [0, 32], sizes = [4, 32], strides = [1, 1]} : vector<4x96xf32> to vector<4x32xf32>
    %130 = arith.addf %128, %129 : vector<4x32xf32>
    %131 = arith.negf %130 : vector<4x32xf32>
    %132 = math.exp %131 : vector<4x32xf32>
    %cst_52 = arith.constant 1.000000e+00 : f32
    %133 = vector.broadcast %cst_52 : f32 to vector<4x32xf32>
    %134 = arith.addf %133, %132 : vector<4x32xf32>
    %135 = arith.divf %133, %134 : vector<4x32xf32>
    %136 = vector.extract_strided_slice %118 {offsets = [0, 64], sizes = [4, 32], strides = [1, 1]} : vector<4x96xf32> to vector<4x32xf32>
    %137 = vector.extract_strided_slice %119 {offsets = [0, 64], sizes = [4, 32], strides = [1, 1]} : vector<4x96xf32> to vector<4x32xf32>
    %138 = vector.broadcast %28 : vector<1x32xf32> to vector<4x32xf32>
    %139 = arith.addf %137, %138 : vector<4x32xf32>
    %140 = arith.mulf %127, %139 : vector<4x32xf32>
    %141 = arith.addf %136, %140 : vector<4x32xf32>
    %142 = math.tanh %141 : vector<4x32xf32>
    %cst_53 = arith.constant 1.000000e+00 : f32
    %143 = vector.broadcast %cst_53 : f32 to vector<4x32xf32>
    %144 = arith.subf %143, %135 : vector<4x32xf32>
    %145 = arith.mulf %144, %142 : vector<4x32xf32>
    %146 = arith.mulf %135, %105 : vector<4x32xf32>
    %147 = arith.addf %145, %146 : vector<4x32xf32>
    %148 = vector.extract_strided_slice %147 {offsets = [0, 0], sizes = [4, 16], strides = [1, 1]} : vector<4x32xf32> to vector<4x16xf32>
    %c2_54 = arith.constant 2 : index
    %c0_55 = arith.constant 0 : index
    %c0_56 = arith.constant 0 : index
    %149 = vector.load %arg17[%c2_54, %c0_55, %c0_56] : memref<8x4x16xf32, #tpu.memory_space<vmem>>, vector<1x4x16xf32>
    %150 = vector.shape_cast %149 : vector<1x4x16xf32> to vector<4x16xf32>
    %151 = vector.shape_cast %148 : vector<4x16xf32> to vector<1x4x16xf32>
    tpu.vector_store %arg17[%c2_54, %c0_55, %c0_56], %151 {strides = array<i32>} : memref<8x4x16xf32, #tpu.memory_space<vmem>>, vector<1x4x16xf32>,
    %152 = vector.extract_strided_slice %147 {offsets = [0, 16], sizes = [4, 16], strides = [1, 1]} : vector<4x32xf32> to vector<4x16xf32>
    %c5_57 = arith.constant 5 : index
    %c0_58 = arith.constant 0 : index
    %c0_59 = arith.constant 0 : index
    %153 = vector.load %arg18[%c5_57, %c0_58, %c0_59] : memref<8x4x16xf32, #tpu.memory_space<vmem>>, vector<1x4x16xf32>
    %154 = vector.shape_cast %153 : vector<1x4x16xf32> to vector<4x16xf32>
    %155 = vector.shape_cast %152 : vector<4x16xf32> to vector<1x4x16xf32>
    tpu.vector_store %arg18[%c5_57, %c0_58, %c0_59], %155 {strides = array<i32>} : memref<8x4x16xf32, #tpu.memory_space<vmem>>, vector<1x4x16xf32>,
    %c3 = arith.constant 3 : index
    %c0_60 = arith.constant 0 : index
    %c0_61 = arith.constant 0 : index
    %156 = vector.load %arg16[%c3, %c0_60, %c0_61] : memref<8x4x96xf32, #tpu.memory_space<vmem>>, vector<1x4x96xf32>
    %157 = vector.shape_cast %156 : vector<1x4x96xf32> to vector<4x96xf32>
    %c4 = arith.constant 4 : index
    %c0_62 = arith.constant 0 : index
    %c0_63 = arith.constant 0 : index
    %158 = vector.load %arg16[%c4, %c0_62, %c0_63] : memref<8x4x96xf32, #tpu.memory_space<vmem>>, vector<1x4x96xf32>
    %159 = vector.shape_cast %158 : vector<1x4x96xf32> to vector<4x96xf32>
    %160 = arith.select %18, %157, %159 : vector<4x96xi1>, vector<4x96xf32>
    %cst_64 = arith.constant dense<0.000000e+00> : vector<4x96xf32>
    %161 = tpu.matmul %147, %27, %cst_64 {dimension_numbers = #tpu.dot_dimension_numbers<[1], [0], [0], [1], [0, 0, 1, 1], [], []>} : vector<4x32xf32>, vector<32x96xf32>, vector<4x96xf32> -> vector<4x96xf32>
    %162 = vector.extract_strided_slice %160 {offsets = [0, 0], sizes = [4, 32], strides = [1, 1]} : vector<4x96xf32> to vector<4x32xf32>
    %163 = vector.extract_strided_slice %161 {offsets = [0, 0], sizes = [4, 32], strides = [1, 1]} : vector<4x96xf32> to vector<4x32xf32>
    %164 = arith.addf %162, %163 : vector<4x32xf32>
    %165 = arith.negf %164 : vector<4x32xf32>
    %166 = math.exp %165 : vector<4x32xf32>
    %cst_65 = arith.constant 1.000000e+00 : f32
    %167 = vector.broadcast %cst_65 : f32 to vector<4x32xf32>
    %168 = arith.addf %167, %166 : vector<4x32xf32>
    %169 = arith.divf %167, %168 : vector<4x32xf32>
    %170 = vector.extract_strided_slice %160 {offsets = [0, 32], sizes = [4, 32], strides = [1, 1]} : vector<4x96xf32> to vector<4x32xf32>
    %171 = vector.extract_strided_slice %161 {offsets = [0, 32], sizes = [4, 32], strides = [1, 1]} : vector<4x96xf32> to vector<4x32xf32>
    %172 = arith.addf %170, %171 : vector<4x32xf32>
    %173 = arith.negf %172 : vector<4x32xf32>
    %174 = math.exp %173 : vector<4x32xf32>
    %cst_66 = arith.constant 1.000000e+00 : f32
    %175 = vector.broadcast %cst_66 : f32 to vector<4x32xf32>
    %176 = arith.addf %175, %174 : vector<4x32xf32>
    %177 = arith.divf %175, %176 : vector<4x32xf32>
    %178 = vector.extract_strided_slice %160 {offsets = [0, 64], sizes = [4, 32], strides = [1, 1]} : vector<4x96xf32> to vector<4x32xf32>
    %179 = vector.extract_strided_slice %161 {offsets = [0, 64], sizes = [4, 32], strides = [1, 1]} : vector<4x96xf32> to vector<4x32xf32>
    %180 = vector.broadcast %28 : vector<1x32xf32> to vector<4x32xf32>
    %181 = arith.addf %179, %180 : vector<4x32xf32>
    %182 = arith.mulf %169, %181 : vector<4x32xf32>
    %183 = arith.addf %178, %182 : vector<4x32xf32>
    %184 = math.tanh %183 : vector<4x32xf32>
    %cst_67 = arith.constant 1.000000e+00 : f32
    %185 = vector.broadcast %cst_67 : f32 to vector<4x32xf32>
    %186 = arith.subf %185, %177 : vector<4x32xf32>
    %187 = arith.mulf %186, %184 : vector<4x32xf32>
    %188 = arith.mulf %177, %147 : vector<4x32xf32>
    %189 = arith.addf %187, %188 : vector<4x32xf32>
    %190 = vector.extract_strided_slice %189 {offsets = [0, 0], sizes = [4, 16], strides = [1, 1]} : vector<4x32xf32> to vector<4x16xf32>
    %c3_68 = arith.constant 3 : index
    %c0_69 = arith.constant 0 : index
    %c0_70 = arith.constant 0 : index
    %191 = vector.load %arg17[%c3_68, %c0_69, %c0_70] : memref<8x4x16xf32, #tpu.memory_space<vmem>>, vector<1x4x16xf32>
    %192 = vector.shape_cast %191 : vector<1x4x16xf32> to vector<4x16xf32>
    %193 = vector.shape_cast %190 : vector<4x16xf32> to vector<1x4x16xf32>
    tpu.vector_store %arg17[%c3_68, %c0_69, %c0_70], %193 {strides = array<i32>} : memref<8x4x16xf32, #tpu.memory_space<vmem>>, vector<1x4x16xf32>,
    %194 = vector.extract_strided_slice %189 {offsets = [0, 16], sizes = [4, 16], strides = [1, 1]} : vector<4x32xf32> to vector<4x16xf32>
    %c4_71 = arith.constant 4 : index
    %c0_72 = arith.constant 0 : index
    %c0_73 = arith.constant 0 : index
    %195 = vector.load %arg18[%c4_71, %c0_72, %c0_73] : memref<8x4x16xf32, #tpu.memory_space<vmem>>, vector<1x4x16xf32>
    %196 = vector.shape_cast %195 : vector<1x4x16xf32> to vector<4x16xf32>
    %197 = vector.shape_cast %194 : vector<4x16xf32> to vector<1x4x16xf32>
    tpu.vector_store %arg18[%c4_71, %c0_72, %c0_73], %197 {strides = array<i32>} : memref<8x4x16xf32, #tpu.memory_space<vmem>>, vector<1x4x16xf32>,
    %c4_74 = arith.constant 4 : index
    %c0_75 = arith.constant 0 : index
    %c0_76 = arith.constant 0 : index
    %198 = vector.load %arg16[%c4_74, %c0_75, %c0_76] : memref<8x4x96xf32, #tpu.memory_space<vmem>>, vector<1x4x96xf32>
    %199 = vector.shape_cast %198 : vector<1x4x96xf32> to vector<4x96xf32>
    %c3_77 = arith.constant 3 : index
    %c0_78 = arith.constant 0 : index
    %c0_79 = arith.constant 0 : index
    %200 = vector.load %arg16[%c3_77, %c0_78, %c0_79] : memref<8x4x96xf32, #tpu.memory_space<vmem>>, vector<1x4x96xf32>
    %201 = vector.shape_cast %200 : vector<1x4x96xf32> to vector<4x96xf32>
    %202 = arith.select %18, %199, %201 : vector<4x96xi1>, vector<4x96xf32>
    %cst_80 = arith.constant dense<0.000000e+00> : vector<4x96xf32>
    %203 = tpu.matmul %189, %27, %cst_80 {dimension_numbers = #tpu.dot_dimension_numbers<[1], [0], [0], [1], [0, 0, 1, 1], [], []>} : vector<4x32xf32>, vector<32x96xf32>, vector<4x96xf32> -> vector<4x96xf32>
    %204 = vector.extract_strided_slice %202 {offsets = [0, 0], sizes = [4, 32], strides = [1, 1]} : vector<4x96xf32> to vector<4x32xf32>
    %205 = vector.extract_strided_slice %203 {offsets = [0, 0], sizes = [4, 32], strides = [1, 1]} : vector<4x96xf32> to vector<4x32xf32>
    %206 = arith.addf %204, %205 : vector<4x32xf32>
    %207 = arith.negf %206 : vector<4x32xf32>
    %208 = math.exp %207 : vector<4x32xf32>
    %cst_81 = arith.constant 1.000000e+00 : f32
    %209 = vector.broadcast %cst_81 : f32 to vector<4x32xf32>
    %210 = arith.addf %209, %208 : vector<4x32xf32>
    %211 = arith.divf %209, %210 : vector<4x32xf32>
    %212 = vector.extract_strided_slice %202 {offsets = [0, 32], sizes = [4, 32], strides = [1, 1]} : vector<4x96xf32> to vector<4x32xf32>
    %213 = vector.extract_strided_slice %203 {offsets = [0, 32], sizes = [4, 32], strides = [1, 1]} : vector<4x96xf32> to vector<4x32xf32>
    %214 = arith.addf %212, %213 : vector<4x32xf32>
    %215 = arith.negf %214 : vector<4x32xf32>
    %216 = math.exp %215 : vector<4x32xf32>
    %cst_82 = arith.constant 1.000000e+00 : f32
    %217 = vector.broadcast %cst_82 : f32 to vector<4x32xf32>
    %218 = arith.addf %217, %216 : vector<4x32xf32>
    %219 = arith.divf %217, %218 : vector<4x32xf32>
    %220 = vector.extract_strided_slice %202 {offsets = [0, 64], sizes = [4, 32], strides = [1, 1]} : vector<4x96xf32> to vector<4x32xf32>
    %221 = vector.extract_strided_slice %203 {offsets = [0, 64], sizes = [4, 32], strides = [1, 1]} : vector<4x96xf32> to vector<4x32xf32>
    %222 = vector.broadcast %28 : vector<1x32xf32> to vector<4x32xf32>
    %223 = arith.addf %221, %222 : vector<4x32xf32>
    %224 = arith.mulf %211, %223 : vector<4x32xf32>
    %225 = arith.addf %220, %224 : vector<4x32xf32>
    %226 = math.tanh %225 : vector<4x32xf32>
    %cst_83 = arith.constant 1.000000e+00 : f32
    %227 = vector.broadcast %cst_83 : f32 to vector<4x32xf32>
    %228 = arith.subf %227, %219 : vector<4x32xf32>
    %229 = arith.mulf %228, %226 : vector<4x32xf32>
    %230 = arith.mulf %219, %189 : vector<4x32xf32>
    %231 = arith.addf %229, %230 : vector<4x32xf32>
    %232 = vector.extract_strided_slice %231 {offsets = [0, 0], sizes = [4, 16], strides = [1, 1]} : vector<4x32xf32> to vector<4x16xf32>
    %c4_84 = arith.constant 4 : index
    %c0_85 = arith.constant 0 : index
    %c0_86 = arith.constant 0 : index
    %233 = vector.load %arg17[%c4_84, %c0_85, %c0_86] : memref<8x4x16xf32, #tpu.memory_space<vmem>>, vector<1x4x16xf32>
    %234 = vector.shape_cast %233 : vector<1x4x16xf32> to vector<4x16xf32>
    %235 = vector.shape_cast %232 : vector<4x16xf32> to vector<1x4x16xf32>
    tpu.vector_store %arg17[%c4_84, %c0_85, %c0_86], %235 {strides = array<i32>} : memref<8x4x16xf32, #tpu.memory_space<vmem>>, vector<1x4x16xf32>,
    %236 = vector.extract_strided_slice %231 {offsets = [0, 16], sizes = [4, 16], strides = [1, 1]} : vector<4x32xf32> to vector<4x16xf32>
    %c3_87 = arith.constant 3 : index
    %c0_88 = arith.constant 0 : index
    %c0_89 = arith.constant 0 : index
    %237 = vector.load %arg18[%c3_87, %c0_88, %c0_89] : memref<8x4x16xf32, #tpu.memory_space<vmem>>, vector<1x4x16xf32>
    %238 = vector.shape_cast %237 : vector<1x4x16xf32> to vector<4x16xf32>
    %239 = vector.shape_cast %236 : vector<4x16xf32> to vector<1x4x16xf32>
    tpu.vector_store %arg18[%c3_87, %c0_88, %c0_89], %239 {strides = array<i32>} : memref<8x4x16xf32, #tpu.memory_space<vmem>>, vector<1x4x16xf32>,
    %c5_90 = arith.constant 5 : index
    %c0_91 = arith.constant 0 : index
    %c0_92 = arith.constant 0 : index
    %240 = vector.load %arg16[%c5_90, %c0_91, %c0_92] : memref<8x4x96xf32, #tpu.memory_space<vmem>>, vector<1x4x96xf32>
    %241 = vector.shape_cast %240 : vector<1x4x96xf32> to vector<4x96xf32>
    %c2_93 = arith.constant 2 : index
    %c0_94 = arith.constant 0 : index
    %c0_95 = arith.constant 0 : index
    %242 = vector.load %arg16[%c2_93, %c0_94, %c0_95] : memref<8x4x96xf32, #tpu.memory_space<vmem>>, vector<1x4x96xf32>
    %243 = vector.shape_cast %242 : vector<1x4x96xf32> to vector<4x96xf32>
    %244 = arith.select %18, %241, %243 : vector<4x96xi1>, vector<4x96xf32>
    %cst_96 = arith.constant dense<0.000000e+00> : vector<4x96xf32>
    %245 = tpu.matmul %231, %27, %cst_96 {dimension_numbers = #tpu.dot_dimension_numbers<[1], [0], [0], [1], [0, 0, 1, 1], [], []>} : vector<4x32xf32>, vector<32x96xf32>, vector<4x96xf32> -> vector<4x96xf32>
    %246 = vector.extract_strided_slice %244 {offsets = [0, 0], sizes = [4, 32], strides = [1, 1]} : vector<4x96xf32> to vector<4x32xf32>
    %247 = vector.extract_strided_slice %245 {offsets = [0, 0], sizes = [4, 32], strides = [1, 1]} : vector<4x96xf32> to vector<4x32xf32>
    %248 = arith.addf %246, %247 : vector<4x32xf32>
    %249 = arith.negf %248 : vector<4x32xf32>
    %250 = math.exp %249 : vector<4x32xf32>
    %cst_97 = arith.constant 1.000000e+00 : f32
    %251 = vector.broadcast %cst_97 : f32 to vector<4x32xf32>
    %252 = arith.addf %251, %250 : vector<4x32xf32>
    %253 = arith.divf %251, %252 : vector<4x32xf32>
    %254 = vector.extract_strided_slice %244 {offsets = [0, 32], sizes = [4, 32], strides = [1, 1]} : vector<4x96xf32> to vector<4x32xf32>
    %255 = vector.extract_strided_slice %245 {offsets = [0, 32], sizes = [4, 32], strides = [1, 1]} : vector<4x96xf32> to vector<4x32xf32>
    %256 = arith.addf %254, %255 : vector<4x32xf32>
    %257 = arith.negf %256 : vector<4x32xf32>
    %258 = math.exp %257 : vector<4x32xf32>
    %cst_98 = arith.constant 1.000000e+00 : f32
    %259 = vector.broadcast %cst_98 : f32 to vector<4x32xf32>
    %260 = arith.addf %259, %258 : vector<4x32xf32>
    %261 = arith.divf %259, %260 : vector<4x32xf32>
    %262 = vector.extract_strided_slice %244 {offsets = [0, 64], sizes = [4, 32], strides = [1, 1]} : vector<4x96xf32> to vector<4x32xf32>
    %263 = vector.extract_strided_slice %245 {offsets = [0, 64], sizes = [4, 32], strides = [1, 1]} : vector<4x96xf32> to vector<4x32xf32>
    %264 = vector.broadcast %28 : vector<1x32xf32> to vector<4x32xf32>
    %265 = arith.addf %263, %264 : vector<4x32xf32>
    %266 = arith.mulf %253, %265 : vector<4x32xf32>
    %267 = arith.addf %262, %266 : vector<4x32xf32>
    %268 = math.tanh %267 : vector<4x32xf32>
    %cst_99 = arith.constant 1.000000e+00 : f32
    %269 = vector.broadcast %cst_99 : f32 to vector<4x32xf32>
    %270 = arith.subf %269, %261 : vector<4x32xf32>
    %271 = arith.mulf %270, %268 : vector<4x32xf32>
    %272 = arith.mulf %261, %231 : vector<4x32xf32>
    %273 = arith.addf %271, %272 : vector<4x32xf32>
    %274 = vector.extract_strided_slice %273 {offsets = [0, 0], sizes = [4, 16], strides = [1, 1]} : vector<4x32xf32> to vector<4x16xf32>
    %c5_100 = arith.constant 5 : index
    %c0_101 = arith.constant 0 : index
    %c0_102 = arith.constant 0 : index
    %275 = vector.load %arg17[%c5_100, %c0_101, %c0_102] : memref<8x4x16xf32, #tpu.memory_space<vmem>>, vector<1x4x16xf32>
    %276 = vector.shape_cast %275 : vector<1x4x16xf32> to vector<4x16xf32>
    %277 = vector.shape_cast %274 : vector<4x16xf32> to vector<1x4x16xf32>
    tpu.vector_store %arg17[%c5_100, %c0_101, %c0_102], %277 {strides = array<i32>} : memref<8x4x16xf32, #tpu.memory_space<vmem>>, vector<1x4x16xf32>,
    %278 = vector.extract_strided_slice %273 {offsets = [0, 16], sizes = [4, 16], strides = [1, 1]} : vector<4x32xf32> to vector<4x16xf32>
    %c2_103 = arith.constant 2 : index
    %c0_104 = arith.constant 0 : index
    %c0_105 = arith.constant 0 : index
    %279 = vector.load %arg18[%c2_103, %c0_104, %c0_105] : memref<8x4x16xf32, #tpu.memory_space<vmem>>, vector<1x4x16xf32>
    %280 = vector.shape_cast %279 : vector<1x4x16xf32> to vector<4x16xf32>
    %281 = vector.shape_cast %278 : vector<4x16xf32> to vector<1x4x16xf32>
    tpu.vector_store %arg18[%c2_103, %c0_104, %c0_105], %281 {strides = array<i32>} : memref<8x4x16xf32, #tpu.memory_space<vmem>>, vector<1x4x16xf32>,
    %c6_106 = arith.constant 6 : index
    %c0_107 = arith.constant 0 : index
    %c0_108 = arith.constant 0 : index
    %282 = vector.load %arg16[%c6_106, %c0_107, %c0_108] : memref<8x4x96xf32, #tpu.memory_space<vmem>>, vector<1x4x96xf32>
    %283 = vector.shape_cast %282 : vector<1x4x96xf32> to vector<4x96xf32>
    %c1_109 = arith.constant 1 : index
    %c0_110 = arith.constant 0 : index
    %c0_111 = arith.constant 0 : index
    %284 = vector.load %arg16[%c1_109, %c0_110, %c0_111] : memref<8x4x96xf32, #tpu.memory_space<vmem>>, vector<1x4x96xf32>
    %285 = vector.shape_cast %284 : vector<1x4x96xf32> to vector<4x96xf32>
    %286 = arith.select %18, %283, %285 : vector<4x96xi1>, vector<4x96xf32>
    %cst_112 = arith.constant dense<0.000000e+00> : vector<4x96xf32>
    %287 = tpu.matmul %273, %27, %cst_112 {dimension_numbers = #tpu.dot_dimension_numbers<[1], [0], [0], [1], [0, 0, 1, 1], [], []>} : vector<4x32xf32>, vector<32x96xf32>, vector<4x96xf32> -> vector<4x96xf32>
    %288 = vector.extract_strided_slice %286 {offsets = [0, 0], sizes = [4, 32], strides = [1, 1]} : vector<4x96xf32> to vector<4x32xf32>
    %289 = vector.extract_strided_slice %287 {offsets = [0, 0], sizes = [4, 32], strides = [1, 1]} : vector<4x96xf32> to vector<4x32xf32>
    %290 = arith.addf %288, %289 : vector<4x32xf32>
    %291 = arith.negf %290 : vector<4x32xf32>
    %292 = math.exp %291 : vector<4x32xf32>
    %cst_113 = arith.constant 1.000000e+00 : f32
    %293 = vector.broadcast %cst_113 : f32 to vector<4x32xf32>
    %294 = arith.addf %293, %292 : vector<4x32xf32>
    %295 = arith.divf %293, %294 : vector<4x32xf32>
    %296 = vector.extract_strided_slice %286 {offsets = [0, 32], sizes = [4, 32], strides = [1, 1]} : vector<4x96xf32> to vector<4x32xf32>
    %297 = vector.extract_strided_slice %287 {offsets = [0, 32], sizes = [4, 32], strides = [1, 1]} : vector<4x96xf32> to vector<4x32xf32>
    %298 = arith.addf %296, %297 : vector<4x32xf32>
    %299 = arith.negf %298 : vector<4x32xf32>
    %300 = math.exp %299 : vector<4x32xf32>
    %cst_114 = arith.constant 1.000000e+00 : f32
    %301 = vector.broadcast %cst_114 : f32 to vector<4x32xf32>
    %302 = arith.addf %301, %300 : vector<4x32xf32>
    %303 = arith.divf %301, %302 : vector<4x32xf32>
    %304 = vector.extract_strided_slice %286 {offsets = [0, 64], sizes = [4, 32], strides = [1, 1]} : vector<4x96xf32> to vector<4x32xf32>
    %305 = vector.extract_strided_slice %287 {offsets = [0, 64], sizes = [4, 32], strides = [1, 1]} : vector<4x96xf32> to vector<4x32xf32>
    %306 = vector.broadcast %28 : vector<1x32xf32> to vector<4x32xf32>
    %307 = arith.addf %305, %306 : vector<4x32xf32>
    %308 = arith.mulf %295, %307 : vector<4x32xf32>
    %309 = arith.addf %304, %308 : vector<4x32xf32>
    %310 = math.tanh %309 : vector<4x32xf32>
    %cst_115 = arith.constant 1.000000e+00 : f32
    %311 = vector.broadcast %cst_115 : f32 to vector<4x32xf32>
    %312 = arith.subf %311, %303 : vector<4x32xf32>
    %313 = arith.mulf %312, %310 : vector<4x32xf32>
    %314 = arith.mulf %303, %273 : vector<4x32xf32>
    %315 = arith.addf %313, %314 : vector<4x32xf32>
    %316 = vector.extract_strided_slice %315 {offsets = [0, 0], sizes = [4, 16], strides = [1, 1]} : vector<4x32xf32> to vector<4x16xf32>
    %c6_116 = arith.constant 6 : index
    %c0_117 = arith.constant 0 : index
    %c0_118 = arith.constant 0 : index
    %317 = vector.load %arg17[%c6_116, %c0_117, %c0_118] : memref<8x4x16xf32, #tpu.memory_space<vmem>>, vector<1x4x16xf32>
    %318 = vector.shape_cast %317 : vector<1x4x16xf32> to vector<4x16xf32>
    %319 = vector.shape_cast %316 : vector<4x16xf32> to vector<1x4x16xf32>
    tpu.vector_store %arg17[%c6_116, %c0_117, %c0_118], %319 {strides = array<i32>} : memref<8x4x16xf32, #tpu.memory_space<vmem>>, vector<1x4x16xf32>,
    %320 = vector.extract_strided_slice %315 {offsets = [0, 16], sizes = [4, 16], strides = [1, 1]} : vector<4x32xf32> to vector<4x16xf32>
    %c1_119 = arith.constant 1 : index
    %c0_120 = arith.constant 0 : index
    %c0_121 = arith.constant 0 : index
    %321 = vector.load %arg18[%c1_119, %c0_120, %c0_121] : memref<8x4x16xf32, #tpu.memory_space<vmem>>, vector<1x4x16xf32>
    %322 = vector.shape_cast %321 : vector<1x4x16xf32> to vector<4x16xf32>
    %323 = vector.shape_cast %320 : vector<4x16xf32> to vector<1x4x16xf32>
    tpu.vector_store %arg18[%c1_119, %c0_120, %c0_121], %323 {strides = array<i32>} : memref<8x4x16xf32, #tpu.memory_space<vmem>>, vector<1x4x16xf32>,
    %c7_122 = arith.constant 7 : index
    %c0_123 = arith.constant 0 : index
    %c0_124 = arith.constant 0 : index
    %324 = vector.load %arg16[%c7_122, %c0_123, %c0_124] : memref<8x4x96xf32, #tpu.memory_space<vmem>>, vector<1x4x96xf32>
    %325 = vector.shape_cast %324 : vector<1x4x96xf32> to vector<4x96xf32>
    %c0_125 = arith.constant 0 : index
    %c0_126 = arith.constant 0 : index
    %c0_127 = arith.constant 0 : index
    %326 = vector.load %arg16[%c0_125, %c0_126, %c0_127] : memref<8x4x96xf32, #tpu.memory_space<vmem>>, vector<1x4x96xf32>
    %327 = vector.shape_cast %326 : vector<1x4x96xf32> to vector<4x96xf32>
    %328 = arith.select %18, %325, %327 : vector<4x96xi1>, vector<4x96xf32>
    %cst_128 = arith.constant dense<0.000000e+00> : vector<4x96xf32>
    %329 = tpu.matmul %315, %27, %cst_128 {dimension_numbers = #tpu.dot_dimension_numbers<[1], [0], [0], [1], [0, 0, 1, 1], [], []>} : vector<4x32xf32>, vector<32x96xf32>, vector<4x96xf32> -> vector<4x96xf32>
    %330 = vector.extract_strided_slice %328 {offsets = [0, 0], sizes = [4, 32], strides = [1, 1]} : vector<4x96xf32> to vector<4x32xf32>
    %331 = vector.extract_strided_slice %329 {offsets = [0, 0], sizes = [4, 32], strides = [1, 1]} : vector<4x96xf32> to vector<4x32xf32>
    %332 = arith.addf %330, %331 : vector<4x32xf32>
    %333 = arith.negf %332 : vector<4x32xf32>
    %334 = math.exp %333 : vector<4x32xf32>
    %cst_129 = arith.constant 1.000000e+00 : f32
    %335 = vector.broadcast %cst_129 : f32 to vector<4x32xf32>
    %336 = arith.addf %335, %334 : vector<4x32xf32>
    %337 = arith.divf %335, %336 : vector<4x32xf32>
    %338 = vector.extract_strided_slice %328 {offsets = [0, 32], sizes = [4, 32], strides = [1, 1]} : vector<4x96xf32> to vector<4x32xf32>
    %339 = vector.extract_strided_slice %329 {offsets = [0, 32], sizes = [4, 32], strides = [1, 1]} : vector<4x96xf32> to vector<4x32xf32>
    %340 = arith.addf %338, %339 : vector<4x32xf32>
    %341 = arith.negf %340 : vector<4x32xf32>
    %342 = math.exp %341 : vector<4x32xf32>
    %cst_130 = arith.constant 1.000000e+00 : f32
    %343 = vector.broadcast %cst_130 : f32 to vector<4x32xf32>
    %344 = arith.addf %343, %342 : vector<4x32xf32>
    %345 = arith.divf %343, %344 : vector<4x32xf32>
    %346 = vector.extract_strided_slice %328 {offsets = [0, 64], sizes = [4, 32], strides = [1, 1]} : vector<4x96xf32> to vector<4x32xf32>
    %347 = vector.extract_strided_slice %329 {offsets = [0, 64], sizes = [4, 32], strides = [1, 1]} : vector<4x96xf32> to vector<4x32xf32>
    %348 = vector.broadcast %28 : vector<1x32xf32> to vector<4x32xf32>
    %349 = arith.addf %347, %348 : vector<4x32xf32>
    %350 = arith.mulf %337, %349 : vector<4x32xf32>
    %351 = arith.addf %346, %350 : vector<4x32xf32>
    %352 = math.tanh %351 : vector<4x32xf32>
    %cst_131 = arith.constant 1.000000e+00 : f32
    %353 = vector.broadcast %cst_131 : f32 to vector<4x32xf32>
    %354 = arith.subf %353, %345 : vector<4x32xf32>
    %355 = arith.mulf %354, %352 : vector<4x32xf32>
    %356 = arith.mulf %345, %315 : vector<4x32xf32>
    %357 = arith.addf %355, %356 : vector<4x32xf32>
    %358 = vector.extract_strided_slice %357 {offsets = [0, 0], sizes = [4, 16], strides = [1, 1]} : vector<4x32xf32> to vector<4x16xf32>
    %c7_132 = arith.constant 7 : index
    %c0_133 = arith.constant 0 : index
    %c0_134 = arith.constant 0 : index
    %359 = vector.load %arg17[%c7_132, %c0_133, %c0_134] : memref<8x4x16xf32, #tpu.memory_space<vmem>>, vector<1x4x16xf32>
    %360 = vector.shape_cast %359 : vector<1x4x16xf32> to vector<4x16xf32>
    %361 = vector.shape_cast %358 : vector<4x16xf32> to vector<1x4x16xf32>
    tpu.vector_store %arg17[%c7_132, %c0_133, %c0_134], %361 {strides = array<i32>} : memref<8x4x16xf32, #tpu.memory_space<vmem>>, vector<1x4x16xf32>,
    %362 = vector.extract_strided_slice %357 {offsets = [0, 16], sizes = [4, 16], strides = [1, 1]} : vector<4x32xf32> to vector<4x16xf32>
    %c0_135 = arith.constant 0 : index
    %c0_136 = arith.constant 0 : index
    %c0_137 = arith.constant 0 : index
    %363 = vector.load %arg18[%c0_135, %c0_136, %c0_137] : memref<8x4x16xf32, #tpu.memory_space<vmem>>, vector<1x4x16xf32>
    %364 = vector.shape_cast %363 : vector<1x4x16xf32> to vector<4x16xf32>
    %365 = vector.shape_cast %362 : vector<4x16xf32> to vector<1x4x16xf32>
    tpu.vector_store %arg18[%c0_135, %c0_136, %c0_137], %365 {strides = array<i32>} : memref<8x4x16xf32, #tpu.memory_space<vmem>>, vector<1x4x16xf32>,
    %c0_138 = arith.constant 0 : index
    %c0_139 = arith.constant 0 : index
    %c0_140 = arith.constant 0 : index
    %366 = vector.load %arg17[%c0_138, %c0_139, %c0_140] : memref<8x4x16xf32, #tpu.memory_space<vmem>>, vector<8x4x16xf32>
    %c0_141 = arith.constant 0 : index
    %c0_142 = arith.constant 0 : index
    %367 = vector.load %arg5[%c0_141, %c0_142] : memref<16x96xf32, #tpu.memory_space<vmem>>, vector<16x96xf32>
    "tpu.trace_start"() <{level = 10 : i32, message = "tbh,hg->tbg"}> : () -> ()
    %cst_143 = arith.constant dense<0.000000e+00> : vector<8x4x96xf32>
    %368 = tpu.matmul %366, %367, %cst_143 {dimension_numbers = #tpu.dot_dimension_numbers<[2], [0], [0, 1], [1], [0, 0, 0, 1, 1, 1], [], []>} : vector<8x4x16xf32>, vector<16x96xf32>, vector<8x4x96xf32> -> vector<8x4x96xf32>
    "tpu.trace_stop"() : () -> ()
    %c0_144 = arith.constant 0 : index
    %c0_145 = arith.constant 0 : index
    %c0_146 = arith.constant 0 : index
    %369 = vector.load %arg18[%c0_144, %c0_145, %c0_146] : memref<8x4x16xf32, #tpu.memory_space<vmem>>, vector<8x4x16xf32>
    %c0_147 = arith.constant 0 : index
    %c0_148 = arith.constant 0 : index
    %370 = vector.load %arg6[%c0_147, %c0_148] : memref<16x96xf32, #tpu.memory_space<vmem>>, vector<16x96xf32>
    "tpu.trace_start"() <{level = 10 : i32, message = "tbh,hg->tbg"}> : () -> ()
    %cst_149 = arith.constant dense<0.000000e+00> : vector<8x4x96xf32>
    %371 = tpu.matmul %369, %370, %cst_149 {dimension_numbers = #tpu.dot_dimension_numbers<[2], [0], [0, 1], [1], [0, 0, 0, 1, 1, 1], [], []>} : vector<8x4x16xf32>, vector<16x96xf32>, vector<8x4x96xf32> -> vector<8x4x96xf32>
    "tpu.trace_stop"() : () -> ()
    %372 = arith.addf %368, %371 : vector<8x4x96xf32>
    %c0_150 = arith.constant 0 : index
    %c0_151 = arith.constant 0 : index
    %373 = vector.load %arg7[%c0_150, %c0_151] : memref<1x96xf32, #tpu.memory_space<vmem>>, vector<1x96xf32>
    %374 = vector.shape_cast %373 : vector<1x96xf32> to vector<1x1x96xf32>
    %375 = vector.broadcast %374 : vector<1x1x96xf32> to vector<8x4x96xf32>
    %376 = arith.addf %372, %375 : vector<8x4x96xf32>
    %c0_152 = arith.constant 0 : index
    %c0_153 = arith.constant 0 : index
    %c0_154 = arith.constant 0 : index
    %377 = vector.load %arg16[%c0_152, %c0_153, %c0_154] : memref<8x4x96xf32, #tpu.memory_space<vmem>>, vector<8x4x96xf32>
    tpu.vector_store %arg16[%c0_152, %c0_153, %c0_154], %376 {strides = array<i32>} : memref<8x4x96xf32, #tpu.memory_space<vmem>>, vector<8x4x96xf32>,
    %c0_155 = arith.constant 0 : index
    %c0_156 = arith.constant 0 : index
    %378 = vector.load %arg8[%c0_155, %c0_156] : memref<32x96xf32, #tpu.memory_space<vmem>>, vector<32x96xf32>
    %c0_157 = arith.constant 0 : index
    %c0_158 = arith.constant 0 : index
    %379 = vector.load %arg9[%c0_157, %c0_158] : memref<1x32xf32, #tpu.memory_space<vmem>>, vector<1x32xf32>
    %cst_159 = arith.constant 0.000000e+00 : f32
    %380 = vector.broadcast %cst_159 : f32 to vector<4x32xf32>
    %c0_160 = arith.constant 0 : index
    %c0_161 = arith.constant 0 : index
    %c0_162 = arith.constant 0 : index
    %381 = vector.load %arg16[%c0_160, %c0_161, %c0_162] : memref<8x4x96xf32, #tpu.memory_space<vmem>>, vector<1x4x96xf32>
    %382 = vector.shape_cast %381 : vector<1x4x96xf32> to vector<4x96xf32>
    %c7_163 = arith.constant 7 : index
    %c0_164 = arith.constant 0 : index
    %c0_165 = arith.constant 0 : index
    %383 = vector.load %arg16[%c7_163, %c0_164, %c0_165] : memref<8x4x96xf32, #tpu.memory_space<vmem>>, vector<1x4x96xf32>
    %384 = vector.shape_cast %383 : vector<1x4x96xf32> to vector<4x96xf32>
    %385 = arith.select %18, %382, %384 : vector<4x96xi1>, vector<4x96xf32>
    %cst_166 = arith.constant dense<0.000000e+00> : vector<4x96xf32>
    %386 = tpu.matmul %380, %378, %cst_166 {dimension_numbers = #tpu.dot_dimension_numbers<[1], [0], [0], [1], [0, 0, 1, 1], [], []>} : vector<4x32xf32>, vector<32x96xf32>, vector<4x96xf32> -> vector<4x96xf32>
    %387 = vector.extract_strided_slice %385 {offsets = [0, 0], sizes = [4, 32], strides = [1, 1]} : vector<4x96xf32> to vector<4x32xf32>
    %388 = vector.extract_strided_slice %386 {offsets = [0, 0], sizes = [4, 32], strides = [1, 1]} : vector<4x96xf32> to vector<4x32xf32>
    %389 = arith.addf %387, %388 : vector<4x32xf32>
    %390 = arith.negf %389 : vector<4x32xf32>
    %391 = math.exp %390 : vector<4x32xf32>
    %cst_167 = arith.constant 1.000000e+00 : f32
    %392 = vector.broadcast %cst_167 : f32 to vector<4x32xf32>
    %393 = arith.addf %392, %391 : vector<4x32xf32>
    %394 = arith.divf %392, %393 : vector<4x32xf32>
    %395 = vector.extract_strided_slice %385 {offsets = [0, 32], sizes = [4, 32], strides = [1, 1]} : vector<4x96xf32> to vector<4x32xf32>
    %396 = vector.extract_strided_slice %386 {offsets = [0, 32], sizes = [4, 32], strides = [1, 1]} : vector<4x96xf32> to vector<4x32xf32>
    %397 = arith.addf %395, %396 : vector<4x32xf32>
    %398 = arith.negf %397 : vector<4x32xf32>
    %399 = math.exp %398 : vector<4x32xf32>
    %cst_168 = arith.constant 1.000000e+00 : f32
    %400 = vector.broadcast %cst_168 : f32 to vector<4x32xf32>
    %401 = arith.addf %400, %399 : vector<4x32xf32>
    %402 = arith.divf %400, %401 : vector<4x32xf32>
    %403 = vector.extract_strided_slice %385 {offsets = [0, 64], sizes = [4, 32], strides = [1, 1]} : vector<4x96xf32> to vector<4x32xf32>
    %404 = vector.extract_strided_slice %386 {offsets = [0, 64], sizes = [4, 32], strides = [1, 1]} : vector<4x96xf32> to vector<4x32xf32>
    %405 = vector.broadcast %379 : vector<1x32xf32> to vector<4x32xf32>
    %406 = arith.addf %404, %405 : vector<4x32xf32>
    %407 = arith.mulf %394, %406 : vector<4x32xf32>
    %408 = arith.addf %403, %407 : vector<4x32xf32>
    %409 = math.tanh %408 : vector<4x32xf32>
    %cst_169 = arith.constant 1.000000e+00 : f32
    %410 = vector.broadcast %cst_169 : f32 to vector<4x32xf32>
    %411 = arith.subf %410, %402 : vector<4x32xf32>
    %412 = arith.mulf %411, %409 : vector<4x32xf32>
    %413 = arith.mulf %402, %380 : vector<4x32xf32>
    %414 = arith.addf %412, %413 : vector<4x32xf32>
    %415 = vector.extract_strided_slice %414 {offsets = [0, 0], sizes = [4, 16], strides = [1, 1]} : vector<4x32xf32> to vector<4x16xf32>
    %c0_170 = arith.constant 0 : index
    %c0_171 = arith.constant 0 : index
    %c0_172 = arith.constant 0 : index
    %416 = vector.load %arg19[%c0_170, %c0_171, %c0_172] : memref<8x4x16xf32, #tpu.memory_space<vmem>>, vector<1x4x16xf32>
    %417 = vector.shape_cast %416 : vector<1x4x16xf32> to vector<4x16xf32>
    %418 = vector.shape_cast %415 : vector<4x16xf32> to vector<1x4x16xf32>
    tpu.vector_store %arg19[%c0_170, %c0_171, %c0_172], %418 {strides = array<i32>} : memref<8x4x16xf32, #tpu.memory_space<vmem>>, vector<1x4x16xf32>,
    %419 = vector.extract_strided_slice %414 {offsets = [0, 16], sizes = [4, 16], strides = [1, 1]} : vector<4x32xf32> to vector<4x16xf32>
    %c7_173 = arith.constant 7 : index
    %c0_174 = arith.constant 0 : index
    %c0_175 = arith.constant 0 : index
    %420 = vector.load %arg20[%c7_173, %c0_174, %c0_175] : memref<8x4x16xf32, #tpu.memory_space<vmem>>, vector<1x4x16xf32>
    %421 = vector.shape_cast %420 : vector<1x4x16xf32> to vector<4x16xf32>
    %422 = vector.shape_cast %419 : vector<4x16xf32> to vector<1x4x16xf32>
    tpu.vector_store %arg20[%c7_173, %c0_174, %c0_175], %422 {strides = array<i32>} : memref<8x4x16xf32, #tpu.memory_space<vmem>>, vector<1x4x16xf32>,
    %c1_176 = arith.constant 1 : index
    %c0_177 = arith.constant 0 : index
    %c0_178 = arith.constant 0 : index
    %423 = vector.load %arg16[%c1_176, %c0_177, %c0_178] : memref<8x4x96xf32, #tpu.memory_space<vmem>>, vector<1x4x96xf32>
    %424 = vector.shape_cast %423 : vector<1x4x96xf32> to vector<4x96xf32>
    %c6_179 = arith.constant 6 : index
    %c0_180 = arith.constant 0 : index
    %c0_181 = arith.constant 0 : index
    %425 = vector.load %arg16[%c6_179, %c0_180, %c0_181] : memref<8x4x96xf32, #tpu.memory_space<vmem>>, vector<1x4x96xf32>
    %426 = vector.shape_cast %425 : vector<1x4x96xf32> to vector<4x96xf32>
    %427 = arith.select %18, %424, %426 : vector<4x96xi1>, vector<4x96xf32>
    %cst_182 = arith.constant dense<0.000000e+00> : vector<4x96xf32>
    %428 = tpu.matmul %414, %378, %cst_182 {dimension_numbers = #tpu.dot_dimension_numbers<[1], [0], [0], [1], [0, 0, 1, 1], [], []>} : vector<4x32xf32>, vector<32x96xf32>, vector<4x96xf32> -> vector<4x96xf32>
    %429 = vector.extract_strided_slice %427 {offsets = [0, 0], sizes = [4, 32], strides = [1, 1]} : vector<4x96xf32> to vector<4x32xf32>
    %430 = vector.extract_strided_slice %428 {offsets = [0, 0], sizes = [4, 32], strides = [1, 1]} : vector<4x96xf32> to vector<4x32xf32>
    %431 = arith.addf %429, %430 : vector<4x32xf32>
    %432 = arith.negf %431 : vector<4x32xf32>
    %433 = math.exp %432 : vector<4x32xf32>
    %cst_183 = arith.constant 1.000000e+00 : f32
    %434 = vector.broadcast %cst_183 : f32 to vector<4x32xf32>
    %435 = arith.addf %434, %433 : vector<4x32xf32>
    %436 = arith.divf %434, %435 : vector<4x32xf32>
    %437 = vector.extract_strided_slice %427 {offsets = [0, 32], sizes = [4, 32], strides = [1, 1]} : vector<4x96xf32> to vector<4x32xf32>
    %438 = vector.extract_strided_slice %428 {offsets = [0, 32], sizes = [4, 32], strides = [1, 1]} : vector<4x96xf32> to vector<4x32xf32>
    %439 = arith.addf %437, %438 : vector<4x32xf32>
    %440 = arith.negf %439 : vector<4x32xf32>
    %441 = math.exp %440 : vector<4x32xf32>
    %cst_184 = arith.constant 1.000000e+00 : f32
    %442 = vector.broadcast %cst_184 : f32 to vector<4x32xf32>
    %443 = arith.addf %442, %441 : vector<4x32xf32>
    %444 = arith.divf %442, %443 : vector<4x32xf32>
    %445 = vector.extract_strided_slice %427 {offsets = [0, 64], sizes = [4, 32], strides = [1, 1]} : vector<4x96xf32> to vector<4x32xf32>
    %446 = vector.extract_strided_slice %428 {offsets = [0, 64], sizes = [4, 32], strides = [1, 1]} : vector<4x96xf32> to vector<4x32xf32>
    %447 = vector.broadcast %379 : vector<1x32xf32> to vector<4x32xf32>
    %448 = arith.addf %446, %447 : vector<4x32xf32>
    %449 = arith.mulf %436, %448 : vector<4x32xf32>
    %450 = arith.addf %445, %449 : vector<4x32xf32>
    %451 = math.tanh %450 : vector<4x32xf32>
    %cst_185 = arith.constant 1.000000e+00 : f32
    %452 = vector.broadcast %cst_185 : f32 to vector<4x32xf32>
    %453 = arith.subf %452, %444 : vector<4x32xf32>
    %454 = arith.mulf %453, %451 : vector<4x32xf32>
    %455 = arith.mulf %444, %414 : vector<4x32xf32>
    %456 = arith.addf %454, %455 : vector<4x32xf32>
    %457 = vector.extract_strided_slice %456 {offsets = [0, 0], sizes = [4, 16], strides = [1, 1]} : vector<4x32xf32> to vector<4x16xf32>
    %c1_186 = arith.constant 1 : index
    %c0_187 = arith.constant 0 : index
    %c0_188 = arith.constant 0 : index
    %458 = vector.load %arg19[%c1_186, %c0_187, %c0_188] : memref<8x4x16xf32, #tpu.memory_space<vmem>>, vector<1x4x16xf32>
    %459 = vector.shape_cast %458 : vector<1x4x16xf32> to vector<4x16xf32>
    %460 = vector.shape_cast %457 : vector<4x16xf32> to vector<1x4x16xf32>
    tpu.vector_store %arg19[%c1_186, %c0_187, %c0_188], %460 {strides = array<i32>} : memref<8x4x16xf32, #tpu.memory_space<vmem>>, vector<1x4x16xf32>,
    %461 = vector.extract_strided_slice %456 {offsets = [0, 16], sizes = [4, 16], strides = [1, 1]} : vector<4x32xf32> to vector<4x16xf32>
    %c6_189 = arith.constant 6 : index
    %c0_190 = arith.constant 0 : index
    %c0_191 = arith.constant 0 : index
    %462 = vector.load %arg20[%c6_189, %c0_190, %c0_191] : memref<8x4x16xf32, #tpu.memory_space<vmem>>, vector<1x4x16xf32>
    %463 = vector.shape_cast %462 : vector<1x4x16xf32> to vector<4x16xf32>
    %464 = vector.shape_cast %461 : vector<4x16xf32> to vector<1x4x16xf32>
    tpu.vector_store %arg20[%c6_189, %c0_190, %c0_191], %464 {strides = array<i32>} : memref<8x4x16xf32, #tpu.memory_space<vmem>>, vector<1x4x16xf32>,
    %c2_192 = arith.constant 2 : index
    %c0_193 = arith.constant 0 : index
    %c0_194 = arith.constant 0 : index
    %465 = vector.load %arg16[%c2_192, %c0_193, %c0_194] : memref<8x4x96xf32, #tpu.memory_space<vmem>>, vector<1x4x96xf32>
    %466 = vector.shape_cast %465 : vector<1x4x96xf32> to vector<4x96xf32>
    %c5_195 = arith.constant 5 : index
    %c0_196 = arith.constant 0 : index
    %c0_197 = arith.constant 0 : index
    %467 = vector.load %arg16[%c5_195, %c0_196, %c0_197] : memref<8x4x96xf32, #tpu.memory_space<vmem>>, vector<1x4x96xf32>
    %468 = vector.shape_cast %467 : vector<1x4x96xf32> to vector<4x96xf32>
    %469 = arith.select %18, %466, %468 : vector<4x96xi1>, vector<4x96xf32>
    %cst_198 = arith.constant dense<0.000000e+00> : vector<4x96xf32>
    %470 = tpu.matmul %456, %378, %cst_198 {dimension_numbers = #tpu.dot_dimension_numbers<[1], [0], [0], [1], [0, 0, 1, 1], [], []>} : vector<4x32xf32>, vector<32x96xf32>, vector<4x96xf32> -> vector<4x96xf32>
    %471 = vector.extract_strided_slice %469 {offsets = [0, 0], sizes = [4, 32], strides = [1, 1]} : vector<4x96xf32> to vector<4x32xf32>
    %472 = vector.extract_strided_slice %470 {offsets = [0, 0], sizes = [4, 32], strides = [1, 1]} : vector<4x96xf32> to vector<4x32xf32>
    %473 = arith.addf %471, %472 : vector<4x32xf32>
    %474 = arith.negf %473 : vector<4x32xf32>
    %475 = math.exp %474 : vector<4x32xf32>
    %cst_199 = arith.constant 1.000000e+00 : f32
    %476 = vector.broadcast %cst_199 : f32 to vector<4x32xf32>
    %477 = arith.addf %476, %475 : vector<4x32xf32>
    %478 = arith.divf %476, %477 : vector<4x32xf32>
    %479 = vector.extract_strided_slice %469 {offsets = [0, 32], sizes = [4, 32], strides = [1, 1]} : vector<4x96xf32> to vector<4x32xf32>
    %480 = vector.extract_strided_slice %470 {offsets = [0, 32], sizes = [4, 32], strides = [1, 1]} : vector<4x96xf32> to vector<4x32xf32>
    %481 = arith.addf %479, %480 : vector<4x32xf32>
    %482 = arith.negf %481 : vector<4x32xf32>
    %483 = math.exp %482 : vector<4x32xf32>
    %cst_200 = arith.constant 1.000000e+00 : f32
    %484 = vector.broadcast %cst_200 : f32 to vector<4x32xf32>
    %485 = arith.addf %484, %483 : vector<4x32xf32>
    %486 = arith.divf %484, %485 : vector<4x32xf32>
    %487 = vector.extract_strided_slice %469 {offsets = [0, 64], sizes = [4, 32], strides = [1, 1]} : vector<4x96xf32> to vector<4x32xf32>
    %488 = vector.extract_strided_slice %470 {offsets = [0, 64], sizes = [4, 32], strides = [1, 1]} : vector<4x96xf32> to vector<4x32xf32>
    %489 = vector.broadcast %379 : vector<1x32xf32> to vector<4x32xf32>
    %490 = arith.addf %488, %489 : vector<4x32xf32>
    %491 = arith.mulf %478, %490 : vector<4x32xf32>
    %492 = arith.addf %487, %491 : vector<4x32xf32>
    %493 = math.tanh %492 : vector<4x32xf32>
    %cst_201 = arith.constant 1.000000e+00 : f32
    %494 = vector.broadcast %cst_201 : f32 to vector<4x32xf32>
    %495 = arith.subf %494, %486 : vector<4x32xf32>
    %496 = arith.mulf %495, %493 : vector<4x32xf32>
    %497 = arith.mulf %486, %456 : vector<4x32xf32>
    %498 = arith.addf %496, %497 : vector<4x32xf32>
    %499 = vector.extract_strided_slice %498 {offsets = [0, 0], sizes = [4, 16], strides = [1, 1]} : vector<4x32xf32> to vector<4x16xf32>
    %c2_202 = arith.constant 2 : index
    %c0_203 = arith.constant 0 : index
    %c0_204 = arith.constant 0 : index
    %500 = vector.load %arg19[%c2_202, %c0_203, %c0_204] : memref<8x4x16xf32, #tpu.memory_space<vmem>>, vector<1x4x16xf32>
    %501 = vector.shape_cast %500 : vector<1x4x16xf32> to vector<4x16xf32>
    %502 = vector.shape_cast %499 : vector<4x16xf32> to vector<1x4x16xf32>
    tpu.vector_store %arg19[%c2_202, %c0_203, %c0_204], %502 {strides = array<i32>} : memref<8x4x16xf32, #tpu.memory_space<vmem>>, vector<1x4x16xf32>,
    %503 = vector.extract_strided_slice %498 {offsets = [0, 16], sizes = [4, 16], strides = [1, 1]} : vector<4x32xf32> to vector<4x16xf32>
    %c5_205 = arith.constant 5 : index
    %c0_206 = arith.constant 0 : index
    %c0_207 = arith.constant 0 : index
    %504 = vector.load %arg20[%c5_205, %c0_206, %c0_207] : memref<8x4x16xf32, #tpu.memory_space<vmem>>, vector<1x4x16xf32>
    %505 = vector.shape_cast %504 : vector<1x4x16xf32> to vector<4x16xf32>
    %506 = vector.shape_cast %503 : vector<4x16xf32> to vector<1x4x16xf32>
    tpu.vector_store %arg20[%c5_205, %c0_206, %c0_207], %506 {strides = array<i32>} : memref<8x4x16xf32, #tpu.memory_space<vmem>>, vector<1x4x16xf32>,
    %c3_208 = arith.constant 3 : index
    %c0_209 = arith.constant 0 : index
    %c0_210 = arith.constant 0 : index
    %507 = vector.load %arg16[%c3_208, %c0_209, %c0_210] : memref<8x4x96xf32, #tpu.memory_space<vmem>>, vector<1x4x96xf32>
    %508 = vector.shape_cast %507 : vector<1x4x96xf32> to vector<4x96xf32>
    %c4_211 = arith.constant 4 : index
    %c0_212 = arith.constant 0 : index
    %c0_213 = arith.constant 0 : index
    %509 = vector.load %arg16[%c4_211, %c0_212, %c0_213] : memref<8x4x96xf32, #tpu.memory_space<vmem>>, vector<1x4x96xf32>
    %510 = vector.shape_cast %509 : vector<1x4x96xf32> to vector<4x96xf32>
    %511 = arith.select %18, %508, %510 : vector<4x96xi1>, vector<4x96xf32>
    %cst_214 = arith.constant dense<0.000000e+00> : vector<4x96xf32>
    %512 = tpu.matmul %498, %378, %cst_214 {dimension_numbers = #tpu.dot_dimension_numbers<[1], [0], [0], [1], [0, 0, 1, 1], [], []>} : vector<4x32xf32>, vector<32x96xf32>, vector<4x96xf32> -> vector<4x96xf32>
    %513 = vector.extract_strided_slice %511 {offsets = [0, 0], sizes = [4, 32], strides = [1, 1]} : vector<4x96xf32> to vector<4x32xf32>
    %514 = vector.extract_strided_slice %512 {offsets = [0, 0], sizes = [4, 32], strides = [1, 1]} : vector<4x96xf32> to vector<4x32xf32>
    %515 = arith.addf %513, %514 : vector<4x32xf32>
    %516 = arith.negf %515 : vector<4x32xf32>
    %517 = math.exp %516 : vector<4x32xf32>
    %cst_215 = arith.constant 1.000000e+00 : f32
    %518 = vector.broadcast %cst_215 : f32 to vector<4x32xf32>
    %519 = arith.addf %518, %517 : vector<4x32xf32>
    %520 = arith.divf %518, %519 : vector<4x32xf32>
    %521 = vector.extract_strided_slice %511 {offsets = [0, 32], sizes = [4, 32], strides = [1, 1]} : vector<4x96xf32> to vector<4x32xf32>
    %522 = vector.extract_strided_slice %512 {offsets = [0, 32], sizes = [4, 32], strides = [1, 1]} : vector<4x96xf32> to vector<4x32xf32>
    %523 = arith.addf %521, %522 : vector<4x32xf32>
    %524 = arith.negf %523 : vector<4x32xf32>
    %525 = math.exp %524 : vector<4x32xf32>
    %cst_216 = arith.constant 1.000000e+00 : f32
    %526 = vector.broadcast %cst_216 : f32 to vector<4x32xf32>
    %527 = arith.addf %526, %525 : vector<4x32xf32>
    %528 = arith.divf %526, %527 : vector<4x32xf32>
    %529 = vector.extract_strided_slice %511 {offsets = [0, 64], sizes = [4, 32], strides = [1, 1]} : vector<4x96xf32> to vector<4x32xf32>
    %530 = vector.extract_strided_slice %512 {offsets = [0, 64], sizes = [4, 32], strides = [1, 1]} : vector<4x96xf32> to vector<4x32xf32>
    %531 = vector.broadcast %379 : vector<1x32xf32> to vector<4x32xf32>
    %532 = arith.addf %530, %531 : vector<4x32xf32>
    %533 = arith.mulf %520, %532 : vector<4x32xf32>
    %534 = arith.addf %529, %533 : vector<4x32xf32>
    %535 = math.tanh %534 : vector<4x32xf32>
    %cst_217 = arith.constant 1.000000e+00 : f32
    %536 = vector.broadcast %cst_217 : f32 to vector<4x32xf32>
    %537 = arith.subf %536, %528 : vector<4x32xf32>
    %538 = arith.mulf %537, %535 : vector<4x32xf32>
    %539 = arith.mulf %528, %498 : vector<4x32xf32>
    %540 = arith.addf %538, %539 : vector<4x32xf32>
    %541 = vector.extract_strided_slice %540 {offsets = [0, 0], sizes = [4, 16], strides = [1, 1]} : vector<4x32xf32> to vector<4x16xf32>
    %c3_218 = arith.constant 3 : index
    %c0_219 = arith.constant 0 : index
    %c0_220 = arith.constant 0 : index
    %542 = vector.load %arg19[%c3_218, %c0_219, %c0_220] : memref<8x4x16xf32, #tpu.memory_space<vmem>>, vector<1x4x16xf32>
    %543 = vector.shape_cast %542 : vector<1x4x16xf32> to vector<4x16xf32>
    %544 = vector.shape_cast %541 : vector<4x16xf32> to vector<1x4x16xf32>
    tpu.vector_store %arg19[%c3_218, %c0_219, %c0_220], %544 {strides = array<i32>} : memref<8x4x16xf32, #tpu.memory_space<vmem>>, vector<1x4x16xf32>,
    %545 = vector.extract_strided_slice %540 {offsets = [0, 16], sizes = [4, 16], strides = [1, 1]} : vector<4x32xf32> to vector<4x16xf32>
    %c4_221 = arith.constant 4 : index
    %c0_222 = arith.constant 0 : index
    %c0_223 = arith.constant 0 : index
    %546 = vector.load %arg20[%c4_221, %c0_222, %c0_223] : memref<8x4x16xf32, #tpu.memory_space<vmem>>, vector<1x4x16xf32>
    %547 = vector.shape_cast %546 : vector<1x4x16xf32> to vector<4x16xf32>
    %548 = vector.shape_cast %545 : vector<4x16xf32> to vector<1x4x16xf32>
    tpu.vector_store %arg20[%c4_221, %c0_222, %c0_223], %548 {strides = array<i32>} : memref<8x4x16xf32, #tpu.memory_space<vmem>>, vector<1x4x16xf32>,
    %c4_224 = arith.constant 4 : index
    %c0_225 = arith.constant 0 : index
    %c0_226 = arith.constant 0 : index
    %549 = vector.load %arg16[%c4_224, %c0_225, %c0_226] : memref<8x4x96xf32, #tpu.memory_space<vmem>>, vector<1x4x96xf32>
    %550 = vector.shape_cast %549 : vector<1x4x96xf32> to vector<4x96xf32>
    %c3_227 = arith.constant 3 : index
    %c0_228 = arith.constant 0 : index
    %c0_229 = arith.constant 0 : index
    %551 = vector.load %arg16[%c3_227, %c0_228, %c0_229] : memref<8x4x96xf32, #tpu.memory_space<vmem>>, vector<1x4x96xf32>
    %552 = vector.shape_cast %551 : vector<1x4x96xf32> to vector<4x96xf32>
    %553 = arith.select %18, %550, %552 : vector<4x96xi1>, vector<4x96xf32>
    %cst_230 = arith.constant dense<0.000000e+00> : vector<4x96xf32>
    %554 = tpu.matmul %540, %378, %cst_230 {dimension_numbers = #tpu.dot_dimension_numbers<[1], [0], [0], [1], [0, 0, 1, 1], [], []>} : vector<4x32xf32>, vector<32x96xf32>, vector<4x96xf32> -> vector<4x96xf32>
    %555 = vector.extract_strided_slice %553 {offsets = [0, 0], sizes = [4, 32], strides = [1, 1]} : vector<4x96xf32> to vector<4x32xf32>
    %556 = vector.extract_strided_slice %554 {offsets = [0, 0], sizes = [4, 32], strides = [1, 1]} : vector<4x96xf32> to vector<4x32xf32>
    %557 = arith.addf %555, %556 : vector<4x32xf32>
    %558 = arith.negf %557 : vector<4x32xf32>
    %559 = math.exp %558 : vector<4x32xf32>
    %cst_231 = arith.constant 1.000000e+00 : f32
    %560 = vector.broadcast %cst_231 : f32 to vector<4x32xf32>
    %561 = arith.addf %560, %559 : vector<4x32xf32>
    %562 = arith.divf %560, %561 : vector<4x32xf32>
    %563 = vector.extract_strided_slice %553 {offsets = [0, 32], sizes = [4, 32], strides = [1, 1]} : vector<4x96xf32> to vector<4x32xf32>
    %564 = vector.extract_strided_slice %554 {offsets = [0, 32], sizes = [4, 32], strides = [1, 1]} : vector<4x96xf32> to vector<4x32xf32>
    %565 = arith.addf %563, %564 : vector<4x32xf32>
    %566 = arith.negf %565 : vector<4x32xf32>
    %567 = math.exp %566 : vector<4x32xf32>
    %cst_232 = arith.constant 1.000000e+00 : f32
    %568 = vector.broadcast %cst_232 : f32 to vector<4x32xf32>
    %569 = arith.addf %568, %567 : vector<4x32xf32>
    %570 = arith.divf %568, %569 : vector<4x32xf32>
    %571 = vector.extract_strided_slice %553 {offsets = [0, 64], sizes = [4, 32], strides = [1, 1]} : vector<4x96xf32> to vector<4x32xf32>
    %572 = vector.extract_strided_slice %554 {offsets = [0, 64], sizes = [4, 32], strides = [1, 1]} : vector<4x96xf32> to vector<4x32xf32>
    %573 = vector.broadcast %379 : vector<1x32xf32> to vector<4x32xf32>
    %574 = arith.addf %572, %573 : vector<4x32xf32>
    %575 = arith.mulf %562, %574 : vector<4x32xf32>
    %576 = arith.addf %571, %575 : vector<4x32xf32>
    %577 = math.tanh %576 : vector<4x32xf32>
    %cst_233 = arith.constant 1.000000e+00 : f32
    %578 = vector.broadcast %cst_233 : f32 to vector<4x32xf32>
    %579 = arith.subf %578, %570 : vector<4x32xf32>
    %580 = arith.mulf %579, %577 : vector<4x32xf32>
    %581 = arith.mulf %570, %540 : vector<4x32xf32>
    %582 = arith.addf %580, %581 : vector<4x32xf32>
    %583 = vector.extract_strided_slice %582 {offsets = [0, 0], sizes = [4, 16], strides = [1, 1]} : vector<4x32xf32> to vector<4x16xf32>
    %c4_234 = arith.constant 4 : index
    %c0_235 = arith.constant 0 : index
    %c0_236 = arith.constant 0 : index
    %584 = vector.load %arg19[%c4_234, %c0_235, %c0_236] : memref<8x4x16xf32, #tpu.memory_space<vmem>>, vector<1x4x16xf32>
    %585 = vector.shape_cast %584 : vector<1x4x16xf32> to vector<4x16xf32>
    %586 = vector.shape_cast %583 : vector<4x16xf32> to vector<1x4x16xf32>
    tpu.vector_store %arg19[%c4_234, %c0_235, %c0_236], %586 {strides = array<i32>} : memref<8x4x16xf32, #tpu.memory_space<vmem>>, vector<1x4x16xf32>,
    %587 = vector.extract_strided_slice %582 {offsets = [0, 16], sizes = [4, 16], strides = [1, 1]} : vector<4x32xf32> to vector<4x16xf32>
    %c3_237 = arith.constant 3 : index
    %c0_238 = arith.constant 0 : index
    %c0_239 = arith.constant 0 : index
    %588 = vector.load %arg20[%c3_237, %c0_238, %c0_239] : memref<8x4x16xf32, #tpu.memory_space<vmem>>, vector<1x4x16xf32>
    %589 = vector.shape_cast %588 : vector<1x4x16xf32> to vector<4x16xf32>
    %590 = vector.shape_cast %587 : vector<4x16xf32> to vector<1x4x16xf32>
    tpu.vector_store %arg20[%c3_237, %c0_238, %c0_239], %590 {strides = array<i32>} : memref<8x4x16xf32, #tpu.memory_space<vmem>>, vector<1x4x16xf32>,
    %c5_240 = arith.constant 5 : index
    %c0_241 = arith.constant 0 : index
    %c0_242 = arith.constant 0 : index
    %591 = vector.load %arg16[%c5_240, %c0_241, %c0_242] : memref<8x4x96xf32, #tpu.memory_space<vmem>>, vector<1x4x96xf32>
    %592 = vector.shape_cast %591 : vector<1x4x96xf32> to vector<4x96xf32>
    %c2_243 = arith.constant 2 : index
    %c0_244 = arith.constant 0 : index
    %c0_245 = arith.constant 0 : index
    %593 = vector.load %arg16[%c2_243, %c0_244, %c0_245] : memref<8x4x96xf32, #tpu.memory_space<vmem>>, vector<1x4x96xf32>
    %594 = vector.shape_cast %593 : vector<1x4x96xf32> to vector<4x96xf32>
    %595 = arith.select %18, %592, %594 : vector<4x96xi1>, vector<4x96xf32>
    %cst_246 = arith.constant dense<0.000000e+00> : vector<4x96xf32>
    %596 = tpu.matmul %582, %378, %cst_246 {dimension_numbers = #tpu.dot_dimension_numbers<[1], [0], [0], [1], [0, 0, 1, 1], [], []>} : vector<4x32xf32>, vector<32x96xf32>, vector<4x96xf32> -> vector<4x96xf32>
    %597 = vector.extract_strided_slice %595 {offsets = [0, 0], sizes = [4, 32], strides = [1, 1]} : vector<4x96xf32> to vector<4x32xf32>
    %598 = vector.extract_strided_slice %596 {offsets = [0, 0], sizes = [4, 32], strides = [1, 1]} : vector<4x96xf32> to vector<4x32xf32>
    %599 = arith.addf %597, %598 : vector<4x32xf32>
    %600 = arith.negf %599 : vector<4x32xf32>
    %601 = math.exp %600 : vector<4x32xf32>
    %cst_247 = arith.constant 1.000000e+00 : f32
    %602 = vector.broadcast %cst_247 : f32 to vector<4x32xf32>
    %603 = arith.addf %602, %601 : vector<4x32xf32>
    %604 = arith.divf %602, %603 : vector<4x32xf32>
    %605 = vector.extract_strided_slice %595 {offsets = [0, 32], sizes = [4, 32], strides = [1, 1]} : vector<4x96xf32> to vector<4x32xf32>
    %606 = vector.extract_strided_slice %596 {offsets = [0, 32], sizes = [4, 32], strides = [1, 1]} : vector<4x96xf32> to vector<4x32xf32>
    %607 = arith.addf %605, %606 : vector<4x32xf32>
    %608 = arith.negf %607 : vector<4x32xf32>
    %609 = math.exp %608 : vector<4x32xf32>
    %cst_248 = arith.constant 1.000000e+00 : f32
    %610 = vector.broadcast %cst_248 : f32 to vector<4x32xf32>
    %611 = arith.addf %610, %609 : vector<4x32xf32>
    %612 = arith.divf %610, %611 : vector<4x32xf32>
    %613 = vector.extract_strided_slice %595 {offsets = [0, 64], sizes = [4, 32], strides = [1, 1]} : vector<4x96xf32> to vector<4x32xf32>
    %614 = vector.extract_strided_slice %596 {offsets = [0, 64], sizes = [4, 32], strides = [1, 1]} : vector<4x96xf32> to vector<4x32xf32>
    %615 = vector.broadcast %379 : vector<1x32xf32> to vector<4x32xf32>
    %616 = arith.addf %614, %615 : vector<4x32xf32>
    %617 = arith.mulf %604, %616 : vector<4x32xf32>
    %618 = arith.addf %613, %617 : vector<4x32xf32>
    %619 = math.tanh %618 : vector<4x32xf32>
    %cst_249 = arith.constant 1.000000e+00 : f32
    %620 = vector.broadcast %cst_249 : f32 to vector<4x32xf32>
    %621 = arith.subf %620, %612 : vector<4x32xf32>
    %622 = arith.mulf %621, %619 : vector<4x32xf32>
    %623 = arith.mulf %612, %582 : vector<4x32xf32>
    %624 = arith.addf %622, %623 : vector<4x32xf32>
    %625 = vector.extract_strided_slice %624 {offsets = [0, 0], sizes = [4, 16], strides = [1, 1]} : vector<4x32xf32> to vector<4x16xf32>
    %c5_250 = arith.constant 5 : index
    %c0_251 = arith.constant 0 : index
    %c0_252 = arith.constant 0 : index
    %626 = vector.load %arg19[%c5_250, %c0_251, %c0_252] : memref<8x4x16xf32, #tpu.memory_space<vmem>>, vector<1x4x16xf32>
    %627 = vector.shape_cast %626 : vector<1x4x16xf32> to vector<4x16xf32>
    %628 = vector.shape_cast %625 : vector<4x16xf32> to vector<1x4x16xf32>
    tpu.vector_store %arg19[%c5_250, %c0_251, %c0_252], %628 {strides = array<i32>} : memref<8x4x16xf32, #tpu.memory_space<vmem>>, vector<1x4x16xf32>,
    %629 = vector.extract_strided_slice %624 {offsets = [0, 16], sizes = [4, 16], strides = [1, 1]} : vector<4x32xf32> to vector<4x16xf32>
    %c2_253 = arith.constant 2 : index
    %c0_254 = arith.constant 0 : index
    %c0_255 = arith.constant 0 : index
    %630 = vector.load %arg20[%c2_253, %c0_254, %c0_255] : memref<8x4x16xf32, #tpu.memory_space<vmem>>, vector<1x4x16xf32>
    %631 = vector.shape_cast %630 : vector<1x4x16xf32> to vector<4x16xf32>
    %632 = vector.shape_cast %629 : vector<4x16xf32> to vector<1x4x16xf32>
    tpu.vector_store %arg20[%c2_253, %c0_254, %c0_255], %632 {strides = array<i32>} : memref<8x4x16xf32, #tpu.memory_space<vmem>>, vector<1x4x16xf32>,
    %c6_256 = arith.constant 6 : index
    %c0_257 = arith.constant 0 : index
    %c0_258 = arith.constant 0 : index
    %633 = vector.load %arg16[%c6_256, %c0_257, %c0_258] : memref<8x4x96xf32, #tpu.memory_space<vmem>>, vector<1x4x96xf32>
    %634 = vector.shape_cast %633 : vector<1x4x96xf32> to vector<4x96xf32>
    %c1_259 = arith.constant 1 : index
    %c0_260 = arith.constant 0 : index
    %c0_261 = arith.constant 0 : index
    %635 = vector.load %arg16[%c1_259, %c0_260, %c0_261] : memref<8x4x96xf32, #tpu.memory_space<vmem>>, vector<1x4x96xf32>
    %636 = vector.shape_cast %635 : vector<1x4x96xf32> to vector<4x96xf32>
    %637 = arith.select %18, %634, %636 : vector<4x96xi1>, vector<4x96xf32>
    %cst_262 = arith.constant dense<0.000000e+00> : vector<4x96xf32>
    %638 = tpu.matmul %624, %378, %cst_262 {dimension_numbers = #tpu.dot_dimension_numbers<[1], [0], [0], [1], [0, 0, 1, 1], [], []>} : vector<4x32xf32>, vector<32x96xf32>, vector<4x96xf32> -> vector<4x96xf32>
    %639 = vector.extract_strided_slice %637 {offsets = [0, 0], sizes = [4, 32], strides = [1, 1]} : vector<4x96xf32> to vector<4x32xf32>
    %640 = vector.extract_strided_slice %638 {offsets = [0, 0], sizes = [4, 32], strides = [1, 1]} : vector<4x96xf32> to vector<4x32xf32>
    %641 = arith.addf %639, %640 : vector<4x32xf32>
    %642 = arith.negf %641 : vector<4x32xf32>
    %643 = math.exp %642 : vector<4x32xf32>
    %cst_263 = arith.constant 1.000000e+00 : f32
    %644 = vector.broadcast %cst_263 : f32 to vector<4x32xf32>
    %645 = arith.addf %644, %643 : vector<4x32xf32>
    %646 = arith.divf %644, %645 : vector<4x32xf32>
    %647 = vector.extract_strided_slice %637 {offsets = [0, 32], sizes = [4, 32], strides = [1, 1]} : vector<4x96xf32> to vector<4x32xf32>
    %648 = vector.extract_strided_slice %638 {offsets = [0, 32], sizes = [4, 32], strides = [1, 1]} : vector<4x96xf32> to vector<4x32xf32>
    %649 = arith.addf %647, %648 : vector<4x32xf32>
    %650 = arith.negf %649 : vector<4x32xf32>
    %651 = math.exp %650 : vector<4x32xf32>
    %cst_264 = arith.constant 1.000000e+00 : f32
    %652 = vector.broadcast %cst_264 : f32 to vector<4x32xf32>
    %653 = arith.addf %652, %651 : vector<4x32xf32>
    %654 = arith.divf %652, %653 : vector<4x32xf32>
    %655 = vector.extract_strided_slice %637 {offsets = [0, 64], sizes = [4, 32], strides = [1, 1]} : vector<4x96xf32> to vector<4x32xf32>
    %656 = vector.extract_strided_slice %638 {offsets = [0, 64], sizes = [4, 32], strides = [1, 1]} : vector<4x96xf32> to vector<4x32xf32>
    %657 = vector.broadcast %379 : vector<1x32xf32> to vector<4x32xf32>
    %658 = arith.addf %656, %657 : vector<4x32xf32>
    %659 = arith.mulf %646, %658 : vector<4x32xf32>
    %660 = arith.addf %655, %659 : vector<4x32xf32>
    %661 = math.tanh %660 : vector<4x32xf32>
    %cst_265 = arith.constant 1.000000e+00 : f32
    %662 = vector.broadcast %cst_265 : f32 to vector<4x32xf32>
    %663 = arith.subf %662, %654 : vector<4x32xf32>
    %664 = arith.mulf %663, %661 : vector<4x32xf32>
    %665 = arith.mulf %654, %624 : vector<4x32xf32>
    %666 = arith.addf %664, %665 : vector<4x32xf32>
    %667 = vector.extract_strided_slice %666 {offsets = [0, 0], sizes = [4, 16], strides = [1, 1]} : vector<4x32xf32> to vector<4x16xf32>
    %c6_266 = arith.constant 6 : index
    %c0_267 = arith.constant 0 : index
    %c0_268 = arith.constant 0 : index
    %668 = vector.load %arg19[%c6_266, %c0_267, %c0_268] : memref<8x4x16xf32, #tpu.memory_space<vmem>>, vector<1x4x16xf32>
    %669 = vector.shape_cast %668 : vector<1x4x16xf32> to vector<4x16xf32>
    %670 = vector.shape_cast %667 : vector<4x16xf32> to vector<1x4x16xf32>
    tpu.vector_store %arg19[%c6_266, %c0_267, %c0_268], %670 {strides = array<i32>} : memref<8x4x16xf32, #tpu.memory_space<vmem>>, vector<1x4x16xf32>,
    %671 = vector.extract_strided_slice %666 {offsets = [0, 16], sizes = [4, 16], strides = [1, 1]} : vector<4x32xf32> to vector<4x16xf32>
    %c1_269 = arith.constant 1 : index
    %c0_270 = arith.constant 0 : index
    %c0_271 = arith.constant 0 : index
    %672 = vector.load %arg20[%c1_269, %c0_270, %c0_271] : memref<8x4x16xf32, #tpu.memory_space<vmem>>, vector<1x4x16xf32>
    %673 = vector.shape_cast %672 : vector<1x4x16xf32> to vector<4x16xf32>
    %674 = vector.shape_cast %671 : vector<4x16xf32> to vector<1x4x16xf32>
    tpu.vector_store %arg20[%c1_269, %c0_270, %c0_271], %674 {strides = array<i32>} : memref<8x4x16xf32, #tpu.memory_space<vmem>>, vector<1x4x16xf32>,
    %c7_272 = arith.constant 7 : index
    %c0_273 = arith.constant 0 : index
    %c0_274 = arith.constant 0 : index
    %675 = vector.load %arg16[%c7_272, %c0_273, %c0_274] : memref<8x4x96xf32, #tpu.memory_space<vmem>>, vector<1x4x96xf32>
    %676 = vector.shape_cast %675 : vector<1x4x96xf32> to vector<4x96xf32>
    %c0_275 = arith.constant 0 : index
    %c0_276 = arith.constant 0 : index
    %c0_277 = arith.constant 0 : index
    %677 = vector.load %arg16[%c0_275, %c0_276, %c0_277] : memref<8x4x96xf32, #tpu.memory_space<vmem>>, vector<1x4x96xf32>
    %678 = vector.shape_cast %677 : vector<1x4x96xf32> to vector<4x96xf32>
    %679 = arith.select %18, %676, %678 : vector<4x96xi1>, vector<4x96xf32>
    %cst_278 = arith.constant dense<0.000000e+00> : vector<4x96xf32>
    %680 = tpu.matmul %666, %378, %cst_278 {dimension_numbers = #tpu.dot_dimension_numbers<[1], [0], [0], [1], [0, 0, 1, 1], [], []>} : vector<4x32xf32>, vector<32x96xf32>, vector<4x96xf32> -> vector<4x96xf32>
    %681 = vector.extract_strided_slice %679 {offsets = [0, 0], sizes = [4, 32], strides = [1, 1]} : vector<4x96xf32> to vector<4x32xf32>
    %682 = vector.extract_strided_slice %680 {offsets = [0, 0], sizes = [4, 32], strides = [1, 1]} : vector<4x96xf32> to vector<4x32xf32>
    %683 = arith.addf %681, %682 : vector<4x32xf32>
    %684 = arith.negf %683 : vector<4x32xf32>
    %685 = math.exp %684 : vector<4x32xf32>
    %cst_279 = arith.constant 1.000000e+00 : f32
    %686 = vector.broadcast %cst_279 : f32 to vector<4x32xf32>
    %687 = arith.addf %686, %685 : vector<4x32xf32>
    %688 = arith.divf %686, %687 : vector<4x32xf32>
    %689 = vector.extract_strided_slice %679 {offsets = [0, 32], sizes = [4, 32], strides = [1, 1]} : vector<4x96xf32> to vector<4x32xf32>
    %690 = vector.extract_strided_slice %680 {offsets = [0, 32], sizes = [4, 32], strides = [1, 1]} : vector<4x96xf32> to vector<4x32xf32>
    %691 = arith.addf %689, %690 : vector<4x32xf32>
    %692 = arith.negf %691 : vector<4x32xf32>
    %693 = math.exp %692 : vector<4x32xf32>
    %cst_280 = arith.constant 1.000000e+00 : f32
    %694 = vector.broadcast %cst_280 : f32 to vector<4x32xf32>
    %695 = arith.addf %694, %693 : vector<4x32xf32>
    %696 = arith.divf %694, %695 : vector<4x32xf32>
    %697 = vector.extract_strided_slice %679 {offsets = [0, 64], sizes = [4, 32], strides = [1, 1]} : vector<4x96xf32> to vector<4x32xf32>
    %698 = vector.extract_strided_slice %680 {offsets = [0, 64], sizes = [4, 32], strides = [1, 1]} : vector<4x96xf32> to vector<4x32xf32>
    %699 = vector.broadcast %379 : vector<1x32xf32> to vector<4x32xf32>
    %700 = arith.addf %698, %699 : vector<4x32xf32>
    %701 = arith.mulf %688, %700 : vector<4x32xf32>
    %702 = arith.addf %697, %701 : vector<4x32xf32>
    %703 = math.tanh %702 : vector<4x32xf32>
    %cst_281 = arith.constant 1.000000e+00 : f32
    %704 = vector.broadcast %cst_281 : f32 to vector<4x32xf32>
    %705 = arith.subf %704, %696 : vector<4x32xf32>
    %706 = arith.mulf %705, %703 : vector<4x32xf32>
    %707 = arith.mulf %696, %666 : vector<4x32xf32>
    %708 = arith.addf %706, %707 : vector<4x32xf32>
    %709 = vector.extract_strided_slice %708 {offsets = [0, 0], sizes = [4, 16], strides = [1, 1]} : vector<4x32xf32> to vector<4x16xf32>
    %c7_282 = arith.constant 7 : index
    %c0_283 = arith.constant 0 : index
    %c0_284 = arith.constant 0 : index
    %710 = vector.load %arg19[%c7_282, %c0_283, %c0_284] : memref<8x4x16xf32, #tpu.memory_space<vmem>>, vector<1x4x16xf32>
    %711 = vector.shape_cast %710 : vector<1x4x16xf32> to vector<4x16xf32>
    %712 = vector.shape_cast %709 : vector<4x16xf32> to vector<1x4x16xf32>
    tpu.vector_store %arg19[%c7_282, %c0_283, %c0_284], %712 {strides = array<i32>} : memref<8x4x16xf32, #tpu.memory_space<vmem>>, vector<1x4x16xf32>,
    %713 = vector.extract_strided_slice %708 {offsets = [0, 16], sizes = [4, 16], strides = [1, 1]} : vector<4x32xf32> to vector<4x16xf32>
    %c0_285 = arith.constant 0 : index
    %c0_286 = arith.constant 0 : index
    %c0_287 = arith.constant 0 : index
    %714 = vector.load %arg20[%c0_285, %c0_286, %c0_287] : memref<8x4x16xf32, #tpu.memory_space<vmem>>, vector<1x4x16xf32>
    %715 = vector.shape_cast %714 : vector<1x4x16xf32> to vector<4x16xf32>
    %716 = vector.shape_cast %713 : vector<4x16xf32> to vector<1x4x16xf32>
    tpu.vector_store %arg20[%c0_285, %c0_286, %c0_287], %716 {strides = array<i32>} : memref<8x4x16xf32, #tpu.memory_space<vmem>>, vector<1x4x16xf32>,
    %c0_288 = arith.constant 0 : index
    %c0_289 = arith.constant 0 : index
    %c0_290 = arith.constant 0 : index
    %717 = vector.load %arg19[%c0_288, %c0_289, %c0_290] : memref<8x4x16xf32, #tpu.memory_space<vmem>>, vector<8x4x16xf32>
    %c0_291 = arith.constant 0 : index
    %c0_292 = arith.constant 0 : index
    %718 = vector.load %arg10[%c0_291, %c0_292] : memref<16x96xf32, #tpu.memory_space<vmem>>, vector<16x96xf32>
    "tpu.trace_start"() <{level = 10 : i32, message = "tbh,hg->tbg"}> : () -> ()
    %cst_293 = arith.constant dense<0.000000e+00> : vector<8x4x96xf32>
    %719 = tpu.matmul %717, %718, %cst_293 {dimension_numbers = #tpu.dot_dimension_numbers<[2], [0], [0, 1], [1], [0, 0, 0, 1, 1, 1], [], []>} : vector<8x4x16xf32>, vector<16x96xf32>, vector<8x4x96xf32> -> vector<8x4x96xf32>
    "tpu.trace_stop"() : () -> ()
    %c0_294 = arith.constant 0 : index
    %c0_295 = arith.constant 0 : index
    %c0_296 = arith.constant 0 : index
    %720 = vector.load %arg20[%c0_294, %c0_295, %c0_296] : memref<8x4x16xf32, #tpu.memory_space<vmem>>, vector<8x4x16xf32>
    %c0_297 = arith.constant 0 : index
    %c0_298 = arith.constant 0 : index
    %721 = vector.load %arg11[%c0_297, %c0_298] : memref<16x96xf32, #tpu.memory_space<vmem>>, vector<16x96xf32>
    "tpu.trace_start"() <{level = 10 : i32, message = "tbh,hg->tbg"}> : () -> ()
    %cst_299 = arith.constant dense<0.000000e+00> : vector<8x4x96xf32>
    %722 = tpu.matmul %720, %721, %cst_299 {dimension_numbers = #tpu.dot_dimension_numbers<[2], [0], [0, 1], [1], [0, 0, 0, 1, 1, 1], [], []>} : vector<8x4x16xf32>, vector<16x96xf32>, vector<8x4x96xf32> -> vector<8x4x96xf32>
    "tpu.trace_stop"() : () -> ()
    %723 = arith.addf %719, %722 : vector<8x4x96xf32>
    %c0_300 = arith.constant 0 : index
    %c0_301 = arith.constant 0 : index
    %724 = vector.load %arg12[%c0_300, %c0_301] : memref<1x96xf32, #tpu.memory_space<vmem>>, vector<1x96xf32>
    %725 = vector.shape_cast %724 : vector<1x96xf32> to vector<1x1x96xf32>
    %726 = vector.broadcast %725 : vector<1x1x96xf32> to vector<8x4x96xf32>
    %727 = arith.addf %723, %726 : vector<8x4x96xf32>
    %728 = tpu.transpose %727, [1, 0, 2] : vector<8x4x96xf32> -> vector<4x8x96xf32>
    %729 = vector.extract_strided_slice %728 {offsets = [0, 0, 0], sizes = [4, 8, 32], strides = [1, 1, 1]} : vector<4x8x96xf32> to vector<4x8x32xf32>
    %730 = vector.extract_strided_slice %728 {offsets = [0, 0, 32], sizes = [4, 8, 32], strides = [1, 1, 1]} : vector<4x8x96xf32> to vector<4x8x32xf32>
    %731 = vector.extract_strided_slice %728 {offsets = [0, 0, 64], sizes = [4, 8, 32], strides = [1, 1, 1]} : vector<4x8x96xf32> to vector<4x8x32xf32>
    "tpu.trace_start"() <{level = 10 : i32, message = "bqe,bke->bqk"}> : () -> ()
    %cst_302 = arith.constant dense<0.000000e+00> : vector<4x8x8xf32>
    %732 = tpu.matmul %729, %730, %cst_302 {dimension_numbers = #tpu.dot_dimension_numbers<[2], [2], [1], [1], [0, 0, 0, 1, 1, 1], [0], [0]>} : vector<4x8x32xf32>, vector<4x8x32xf32>, vector<4x8x8xf32> -> vector<4x8x8xf32>
    "tpu.trace_stop"() : () -> ()
    %cst_303 = arith.constant 0.176776692 : f32
    %733 = vector.broadcast %cst_303 : f32 to vector<4x8x8xf32>
    %734 = arith.mulf %732, %733 : vector<4x8x8xf32>
    %cst_304 = arith.constant dense<0xFF800000> : vector<4x8xf32>
    %735 = vector.multi_reduction <maximumf>, %734, %cst_304 [2] : vector<4x8x8xf32> to vector<4x8xf32>
    %736 = vector.shape_cast %735 : vector<4x8xf32> to vector<4x8x1xf32>
    %737 = vector.broadcast %736 : vector<4x8x1xf32> to vector<4x8x8xf32>
    %738 = arith.subf %734, %737 : vector<4x8x8xf32>
    %739 = math.exp %738 : vector<4x8x8xf32>
    %cst_305 = arith.constant dense<0.000000e+00> : vector<4x8xf32>
    %740 = vector.multi_reduction <add>, %739, %cst_305 [2] : vector<4x8x8xf32> to vector<4x8xf32>
    %741 = vector.shape_cast %740 : vector<4x8xf32> to vector<4x8x1xf32>
    %742 = tpu.reciprocal %741 {approx = true} : vector<4x8x1xf32> -> vector<4x8x1xf32>
    %743 = vector.broadcast %742 : vector<4x8x1xf32> to vector<4x8x8xf32>
    %744 = arith.mulf %739, %743 : vector<4x8x8xf32>
    %cst_306 = arith.constant dense<0.000000e+00> : vector<4x8xf32>
    %745 = vector.multi_reduction <add>, %744, %cst_306 [1] : vector<4x8x8xf32> to vector<4x8xf32>
    %746 = vector.shape_cast %745 : vector<4x8xf32> to vector<4x1x8xf32>
    "tpu.trace_start"() <{level = 10 : i32, message = "bqk,bke->bqe"}> : () -> ()
    %cst_307 = arith.constant dense<0.000000e+00> : vector<4x1x32xf32>
    %747 = tpu.matmul %746, %731, %cst_307 {dimension_numbers = #tpu.dot_dimension_numbers<[2], [1], [1], [2], [0, 0, 0, 1, 1, 2], [0], [0]>} : vector<4x1x8xf32>, vector<4x8x32xf32>, vector<4x1x32xf32> -> vector<4x1x32xf32>
    "tpu.trace_stop"() : () -> ()
    %748 = vector.shape_cast %747 : vector<4x1x32xf32> to vector<4x32xf32>
    %c0_308 = arith.constant 0 : index
    %c0_309 = arith.constant 0 : index
    %749 = vector.load %arg13[%c0_308, %c0_309] : memref<32x32xf32, #tpu.memory_space<vmem>>, vector<32x32xf32>
    %cst_310 = arith.constant dense<0.000000e+00> : vector<4x32xf32>
    %750 = tpu.matmul %748, %749, %cst_310 {dimension_numbers = #tpu.dot_dimension_numbers<[1], [0], [0], [1], [0, 0, 1, 1], [], []>} : vector<4x32xf32>, vector<32x32xf32>, vector<4x32xf32> -> vector<4x32xf32>
    %c0_311 = arith.constant 0 : index
    %c0_312 = arith.constant 0 : index
    %751 = vector.load %arg14[%c0_311, %c0_312] : memref<1x32xf32, #tpu.memory_space<vmem>>, vector<1x32xf32>
    %752 = vector.broadcast %751 : vector<1x32xf32> to vector<4x32xf32>
    %753 = arith.addf %750, %752 : vector<4x32xf32>
    %754 = math.tanh %753 : vector<4x32xf32>
    %c0_313 = arith.constant 0 : index
    %c0_314 = arith.constant 0 : index
    %755 = vector.load %arg15[%c0_313, %c0_314] : memref<4x32xf32, #tpu.memory_space<vmem>>, vector<4x32xf32>
    tpu.vector_store %arg15[%c0_313, %c0_314], %754 {strides = array<i32>} : memref<4x32xf32, #tpu.memory_space<vmem>>, vector<4x32xf32>,
    return
  }
}

</mosaic_0001>

<llo_original>
// kernel: tpu_custom_call.1
$region0: #{tpu_custom_call.1}
  #allocation0 [shape = 'u32[]', space=smem, size = 0x4, offset = 0x4, fixed_abs, tag = 'smem constant byte address 0x4 - core index']
  #allocation1 [shape = 'u32[72,128]{1,0:T(1,128)}', space=vmem, size = 0x9000, scoped, tag = 'internal scratch']
  #allocation2 [shape = 'f32[8,4,96]{2,1,0:T(4,128)}', space=vmem, size = 0x4000, scoped, tag = 'scratch operand']
  #allocation3 [shape = 'f32[8,4,16]{2,1,0:T(4,128)}', space=vmem, size = 0x4000, scoped, tag = 'scratch operand']
  #allocation4 [shape = 'f32[8,4,16]{2,1,0:T(4,128)}', space=vmem, size = 0x4000, scoped, tag = 'scratch operand']
  #allocation5 [shape = 'f32[8,4,16]{2,1,0:T(4,128)}', space=vmem, size = 0x4000, scoped, tag = 'scratch operand']
  #allocation6 [shape = 'f32[8,4,16]{2,1,0:T(4,128)}', space=vmem, size = 0x4000, scoped, tag = 'scratch operand']
  %s0 = inlined_call_operand.hbm [shape: f32[8,4,8], index: 0, kind: input, shape index: {}]
  %s1 = inlined_call_operand.hbm [shape: f32[8,96], index: 1, kind: input, shape index: {}]
  %s2 = inlined_call_operand.vmem [shape: f32[1,96], index: 2, kind: input, shape index: {}]
  %s3 = inlined_call_operand.hbm [shape: f32[32,96], index: 3, kind: input, shape index: {}]
  %s4 = inlined_call_operand.vmem [shape: f32[1,32], index: 4, kind: input, shape index: {}]
  %s5 = inlined_call_operand.hbm [shape: f32[16,96], index: 5, kind: input, shape index: {}]
  %s6 = inlined_call_operand.hbm [shape: f32[16,96], index: 6, kind: input, shape index: {}]
  %s7 = inlined_call_operand.vmem [shape: f32[1,96], index: 7, kind: input, shape index: {}]
  %s8 = inlined_call_operand.hbm [shape: f32[32,96], index: 8, kind: input, shape index: {}]
  %s9 = inlined_call_operand.vmem [shape: f32[1,32], index: 9, kind: input, shape index: {}]
  %s10 = inlined_call_operand.hbm [shape: f32[16,96], index: 10, kind: input, shape index: {}]
  %s11 = inlined_call_operand.hbm [shape: f32[16,96], index: 11, kind: input, shape index: {}]
  %s12 = inlined_call_operand.vmem [shape: f32[1,96], index: 12, kind: input, shape index: {}]
  %s13 = inlined_call_operand.hbm [shape: f32[32,32], index: 13, kind: input, shape index: {}]
  %s14 = inlined_call_operand.vmem [shape: f32[1,32], index: 14, kind: input, shape index: {}]
  %s15 = inlined_call_operand.hbm [shape: f32[4,32], index: 15, kind: output, shape index: {}]
  %s16 = sld [smem:[#allocation0]]
  $region106: #{tpu_custom_call.1} parent=0
    _
  %s18 = ssub.s32 1, %s16
  %s19 = scalar_select 0, %s18, %s16
  $region1: #{tpu_custom_call.1} parent=0
    #allocation7 [shape = 'u8[16384]{0}', space=vmem, size = 0x4000, scoped, tag = 'input window, operand 0, single buffered']
    #allocation8 [shape = 's32[1]{0}', space=sflag, size = 0x4, scoped, tag = 'scoped memory for tpu_custom_call.1']
    #allocation9 [shape = 's32[1]{0}', space=sflag, size = 0x4, scoped, tag = 'scoped memory for tpu_custom_call.1']
    #allocation10 [shape = 'u8[4096]{0}', space=vmem, size = 0x1000, scoped, tag = 'input window, operand 1, single buffered']
    #allocation11 [shape = 's32[1]{0}', space=sflag, size = 0x4, scoped, tag = 'scoped memory for tpu_custom_call.1']
    #allocation12 [shape = 'u8[16384]{0}', space=vmem, size = 0x4000, scoped, tag = 'input window, operand 3, single buffered']
    #allocation13 [shape = 'u8[8192]{0}', space=vmem, size = 0x2000, scoped, tag = 'input window, operand 5, single buffered']
    #allocation14 [shape = 's32[1]{0}', space=sflag, size = 0x4, scoped, tag = 'scoped memory for tpu_custom_call.1']
    #allocation15 [shape = 'u8[8192]{0}', space=vmem, size = 0x2000, scoped, tag = 'input window, operand 6, single buffered']
    #allocation16 [shape = 'u8[16384]{0}', space=vmem, size = 0x4000, scoped, tag = 'input window, operand 8, single buffered']
    #allocation17 [shape = 's32[1]{0}', space=sflag, size = 0x4, scoped, tag = 'scoped memory for tpu_custom_call.1']
    #allocation18 [shape = 'u8[8192]{0}', space=vmem, size = 0x2000, scoped, tag = 'input window, operand 10, single buffered']
    #allocation19 [shape = 'u8[8192]{0}', space=vmem, size = 0x2000, scoped, tag = 'input window, operand 11, single buffered']
    #allocation20 [shape = 's32[1]{0}', space=sflag, size = 0x4, scoped, tag = 'scoped memory for tpu_custom_call.1']
    #allocation21 [shape = 'u8[16384]{0}', space=vmem, size = 0x4000, scoped, tag = 'input window, operand 13, single buffered']
    #allocation22 [shape = 'u8[2048]{0}', space=vmem, size = 0x800, scoped, tag = 'output window, operand 0, single buffered']
    %20 = vsyncpa [#allocation8], 0
    %21 = vsyncpa [#allocation11], 0
    %22 = vsyncpa [#allocation14], 0
    %23 = vsyncpa [#allocation17], 0
    %24 = vsyncpa [#allocation20], 0
    %25 = vsyncpa [#allocation9], 0
    // Predicated region
    $region2: #{tpu_custom_call.1} parent=1 // pred_check
      _
    $region3: #{tpu_custom_call.1} parent=1 // pred_check_branch
      %27 = sbr.rel (0) target = $region5
    $region4: #{tpu_custom_call.1} parent=1 // pred_region
      %29 = vsyncadd [#allocation8], 0
      %s30 = sshll.u32 %s0, 4
      %s31 = int_to_ptr.hbm [resolvable:$true] %s30
      %s32 = sshll.u32 [#allocation7], 4
      %s33 = int_to_ptr.vmem [resolvable:$true] %s32
      %38 = dma.hbm_to_vmem [thread:$0]  %s31, 512, %s33, [#allocation8], 64, 64, 4
    $region5: #{tpu_custom_call.1} parent=1 // pred_fallthru
      _
    // Predicated region
    $region6: #{tpu_custom_call.1} parent=1 // pred_check
      _
    $region7: #{tpu_custom_call.1} parent=1 // pred_check_branch
      %40 = sbr.rel (0) target = $region9
    $region8: #{tpu_custom_call.1} parent=1 // pred_region
      %42 = vsyncadd [#allocation11], 0
      %s44 = sshll.u32 %s1, 4
      %s45 = int_to_ptr.hbm [resolvable:$true] %s44
      %s46 = sshll.u32 [#allocation10], 4
      %s47 = int_to_ptr.vmem [resolvable:$true] %s46
      %49 = dma.hbm_to_vmem [thread:$0]  %s45, 128, %s47, [#allocation11]
    $region9: #{tpu_custom_call.1} parent=1 // pred_fallthru
      _
    // Predicated region
    $region10: #{tpu_custom_call.1} parent=1 // pred_check
      _
    $region11: #{tpu_custom_call.1} parent=1 // pred_check_branch
      %51 = sbr.rel (0) target = $region13
    $region12: #{tpu_custom_call.1} parent=1 // pred_region
      _
    $region13: #{tpu_custom_call.1} parent=1 // pred_fallthru
      _
    // Predicated region
    $region14: #{tpu_custom_call.1} parent=1 // pred_check
      _
    $region15: #{tpu_custom_call.1} parent=1 // pred_check_branch
      %53 = sbr.rel (0) target = $region17
    $region16: #{tpu_custom_call.1} parent=1 // pred_region
      %55 = vsyncadd [#allocation11], 0
      %s56 = sshll.u32 %s3, 4
      %s57 = int_to_ptr.hbm [resolvable:$true] %s56
      %s58 = sshll.u32 [#allocation12], 4
      %s59 = int_to_ptr.vmem [resolvable:$true] %s58
      %64 = dma.hbm_to_vmem [thread:$0]  %s57, 512, %s59, [#allocation11], 128, 128, 8
    $region17: #{tpu_custom_call.1} parent=1 // pred_fallthru
      _
    // Predicated region
    $region18: #{tpu_custom_call.1} parent=1 // pred_check
      _
    $region19: #{tpu_custom_call.1} parent=1 // pred_check_branch
      %66 = sbr.rel (0) target = $region21
    $region20: #{tpu_custom_call.1} parent=1 // pred_region
      _
    $region21: #{tpu_custom_call.1} parent=1 // pred_fallthru
      _
    // Predicated region
    $region22: #{tpu_custom_call.1} parent=1 // pred_check
      _
    $region23: #{tpu_custom_call.1} parent=1 // pred_check_branch
      %68 = sbr.rel (0) target = $region25
    $region24: #{tpu_custom_call.1} parent=1 // pred_region
      %70 = vsyncadd [#allocation14], 0
      %s71 = sshll.u32 %s5, 4
      %s72 = int_to_ptr.hbm [resolvable:$true] %s71
      %s73 = sshll.u32 [#allocation13], 4
      %s74 = int_to_ptr.vmem [resolvable:$true] %s73
      %79 = dma.hbm_to_vmem [thread:$0]  %s72, 256, %s74, [#allocation14], 128, 128, 8
    $region25: #{tpu_custom_call.1} parent=1 // pred_fallthru
      _
    // Predicated region
    $region26: #{tpu_custom_call.1} parent=1 // pred_check
      _
    $region27: #{tpu_custom_call.1} parent=1 // pred_check_branch
      %81 = sbr.rel (0) target = $region29
    $region28: #{tpu_custom_call.1} parent=1 // pred_region
      %83 = vsyncadd [#allocation14], 0
      %s84 = sshll.u32 %s6, 4
      %s85 = int_to_ptr.hbm [resolvable:$true] %s84
      %s86 = sshll.u32 [#allocation15], 4
      %s87 = int_to_ptr.vmem [resolvable:$true] %s86
      %92 = dma.hbm_to_vmem [thread:$0]  %s85, 256, %s87, [#allocation14], 128, 128, 8
    $region29: #{tpu_custom_call.1} parent=1 // pred_fallthru
      _
    // Predicated region
    $region30: #{tpu_custom_call.1} parent=1 // pred_check
      _
    $region31: #{tpu_custom_call.1} parent=1 // pred_check_branch
      %94 = sbr.rel (0) target = $region33
    $region32: #{tpu_custom_call.1} parent=1 // pred_region
      _
    $region33: #{tpu_custom_call.1} parent=1 // pred_fallthru
      _
    // Predicated region
    $region34: #{tpu_custom_call.1} parent=1 // pred_check
      _
    $region35: #{tpu_custom_call.1} parent=1 // pred_check_branch
      %96 = sbr.rel (0) target = $region37
    $region36: #{tpu_custom_call.1} parent=1 // pred_region
      %98 = vsyncadd [#allocation17], 0
      %s99 = sshll.u32 %s8, 4
      %s100 = int_to_ptr.hbm [resolvable:$true] %s99
      %s101 = sshll.u32 [#allocation16], 4
      %s102 = int_to_ptr.vmem [resolvable:$true] %s101
      %107 = dma.hbm_to_vmem [thread:$0]  %s100, 512, %s102, [#allocation17], 128, 128, 8
    $region37: #{tpu_custom_call.1} parent=1 // pred_fallthru
      _
    // Predicated region
    $region38: #{tpu_custom_call.1} parent=1 // pred_check
      _
    $region39: #{tpu_custom_call.1} parent=1 // pred_check_branch
      %109 = sbr.rel (0) target = $region41
    $region40: #{tpu_custom_call.1} parent=1 // pred_region
      _
    $region41: #{tpu_custom_call.1} parent=1 // pred_fallthru
      _
    // Predicated region
    $region42: #{tpu_custom_call.1} parent=1 // pred_check
      _
    $region43: #{tpu_custom_call.1} parent=1 // pred_check_branch
      %111 = sbr.rel (0) target = $region45
    $region44: #{tpu_custom_call.1} parent=1 // pred_region
      %113 = vsyncadd [#allocation17], 0
      %s114 = sshll.u32 %s10, 4
      %s115 = int_to_ptr.hbm [resolvable:$true] %s114
      %s116 = sshll.u32 [#allocation18], 4
      %s117 = int_to_ptr.vmem [resolvable:$true] %s116
      %122 = dma.hbm_to_vmem [thread:$0]  %s115, 256, %s117, [#allocation17], 128, 128, 8
    $region45: #{tpu_custom_call.1} parent=1 // pred_fallthru
      _
    // Predicated region
    $region46: #{tpu_custom_call.1} parent=1 // pred_check
      _
    $region47: #{tpu_custom_call.1} parent=1 // pred_check_branch
      %124 = sbr.rel (0) target = $region49
    $region48: #{tpu_custom_call.1} parent=1 // pred_region
      %126 = vsyncadd [#allocation20], 0
      %s127 = sshll.u32 %s11, 4
      %s128 = int_to_ptr.hbm [resolvable:$true] %s127
      %s129 = sshll.u32 [#allocation19], 4
      %s130 = int_to_ptr.vmem [resolvable:$true] %s129
      %135 = dma.hbm_to_vmem [thread:$0]  %s128, 256, %s130, [#allocation20], 128, 128, 8
    $region49: #{tpu_custom_call.1} parent=1 // pred_fallthru
      _
    // Predicated region
    $region50: #{tpu_custom_call.1} parent=1 // pred_check
      _
    $region51: #{tpu_custom_call.1} parent=1 // pred_check_branch
      %137 = sbr.rel (0) target = $region53
    $region52: #{tpu_custom_call.1} parent=1 // pred_region
      _
    $region53: #{tpu_custom_call.1} parent=1 // pred_fallthru
      _
    // Predicated region
    $region54: #{tpu_custom_call.1} parent=1 // pred_check
      _
    $region55: #{tpu_custom_call.1} parent=1 // pred_check_branch
      %139 = sbr.rel (0) target = $region57
    $region56: #{tpu_custom_call.1} parent=1 // pred_region
      %141 = vsyncadd [#allocation20], 0
      %s142 = sshll.u32 %s13, 4
      %s143 = int_to_ptr.hbm [resolvable:$true] %s142
      %s144 = sshll.u32 [#allocation21], 4
      %s145 = int_to_ptr.vmem [resolvable:$true] %s144
      %150 = dma.hbm_to_vmem [thread:$0]  %s143, 512, %s145, [#allocation20], 128, 128, 8
    $region57: #{tpu_custom_call.1} parent=1 // pred_fallthru
      _
    // Predicated region
    $region58: #{tpu_custom_call.1} parent=1 // pred_check
      _
    $region59: #{tpu_custom_call.1} parent=1 // pred_check_branch
      %152 = sbr.rel (0) target = $region61
    $region60: #{tpu_custom_call.1} parent=1 // pred_region
      _
    $region61: #{tpu_custom_call.1} parent=1 // pred_fallthru
      _
    // Predicated region
    $region62: #{tpu_custom_call.1} parent=1 // pred_check
      _
    $region63: #{tpu_custom_call.1} parent=1 // pred_check_branch
      %154 = sbr.rel (0) target = $region65
    $region64: #{tpu_custom_call.1} parent=1 // pred_region
      %156 = dma.done [#allocation8], 512
    $region65: #{tpu_custom_call.1} parent=1 // pred_fallthru
      _
    // Predicated region
    $region66: #{tpu_custom_call.1} parent=1 // pred_check
      _
    $region67: #{tpu_custom_call.1} parent=1 // pred_check_branch
      %158 = sbr.rel (0) target = $region69
    $region68: #{tpu_custom_call.1} parent=1 // pred_region
      %160 = dma.done [#allocation11], 128
    $region69: #{tpu_custom_call.1} parent=1 // pred_fallthru
      _
    // Predicated region
    $region70: #{tpu_custom_call.1} parent=1 // pred_check
      _
    $region71: #{tpu_custom_call.1} parent=1 // pred_check_branch
      %162 = sbr.rel (0) target = $region73
    $region72: #{tpu_custom_call.1} parent=1 // pred_region
      %164 = dma.done [#allocation11], 512
    $region73: #{tpu_custom_call.1} parent=1 // pred_fallthru
      _
    // Predicated region
    $region74: #{tpu_custom_call.1} parent=1 // pred_check
      _
    $region75: #{tpu_custom_call.1} parent=1 // pred_check_branch
      %166 = sbr.rel (0) target = $region77
    $region76: #{tpu_custom_call.1} parent=1 // pred_region
      %168 = dma.done [#allocation14], 256
    $region77: #{tpu_custom_call.1} parent=1 // pred_fallthru
      _
    // Predicated region
    $region78: #{tpu_custom_call.1} parent=1 // pred_check
      _
    $region79: #{tpu_custom_call.1} parent=1 // pred_check_branch
      %170 = sbr.rel (0) target = $region81
    $region80: #{tpu_custom_call.1} parent=1 // pred_region
      %172 = dma.done [#allocation14], 256
    $region81: #{tpu_custom_call.1} parent=1 // pred_fallthru
      _
    // Predicated region
    $region82: #{tpu_custom_call.1} parent=1 // pred_check
      _
    $region83: #{tpu_custom_call.1} parent=1 // pred_check_branch
      %174 = sbr.rel (0) target = $region85
    $region84: #{tpu_custom_call.1} parent=1 // pred_region
      %176 = dma.done [#allocation17], 512
    $region85: #{tpu_custom_call.1} parent=1 // pred_fallthru
      _
    // Predicated region
    $region86: #{tpu_custom_call.1} parent=1 // pred_check
      _
    $region87: #{tpu_custom_call.1} parent=1 // pred_check_branch
      %178 = sbr.rel (0) target = $region89
    $region88: #{tpu_custom_call.1} parent=1 // pred_region
      %180 = dma.done [#allocation17], 256
    $region89: #{tpu_custom_call.1} parent=1 // pred_fallthru
      _
    // Predicated region
    $region90: #{tpu_custom_call.1} parent=1 // pred_check
      _
    $region91: #{tpu_custom_call.1} parent=1 // pred_check_branch
      %182 = sbr.rel (0) target = $region93
    $region92: #{tpu_custom_call.1} parent=1 // pred_region
      %184 = dma.done [#allocation20], 256
    $region93: #{tpu_custom_call.1} parent=1 // pred_fallthru
      _
    // Predicated region
    $region94: #{tpu_custom_call.1} parent=1 // pred_check
      _
    $region95: #{tpu_custom_call.1} parent=1 // pred_check_branch
      %186 = sbr.rel (0) target = $region97
    $region96: #{tpu_custom_call.1} parent=1 // pred_region
      %188 = dma.done [#allocation20], 512
    $region97: #{tpu_custom_call.1} parent=1 // pred_fallthru
      _
    %v189 = vlaneseq
    %v190 = vand.u32 %v189, 127
    %vm191 = vcmp.lt.s32.totalorder %v190, 0
    %v192 = vsub.s32 0, %v190
    %v193 = vsel %vm191, %v192, %v190
    %v194 = vshrl.u32 %v193, 5
    %v195 = vand.u32 %v193, 31
    %v196 = vsub.s32 0, %v195
    %v197 = vsel %vm191, %v196, %v195
    %vm198 = vcmp.ne.s32.totalorder %v197, 0
    %vm199 = vcmp.lt.s32.totalorder %v197, 0
    %vm200 = vmand %vm199, %vm198
    %v201 = vadd.s32 %v197, 32
    %v202 = vsel %vm200, %v201, %v197
    %vm203 = vcmp.lt.s32.totalorder %v202, 16
    %v204 = vld [vmem:[#allocation7] sm:$0xf]
    %v205 = vld [vmem:[#allocation7 + $0x4] sm:$0xf]
    %v206 = vld [vmem:[#allocation7 + $0x8] sm:$0xf]
    %v207 = vld [vmem:[#allocation7 + $0xc] sm:$0xf]
    %v208 = vld [vmem:[#allocation7 + $0x10] sm:$0xf]
    %v209 = vld [vmem:[#allocation7 + $0x14] sm:$0xf]
    %v210 = vld [vmem:[#allocation7 + $0x18] sm:$0xf]
    %v211 = vld [vmem:[#allocation7 + $0x1c] sm:$0xf]
    %v212 = vld [vmem:[#allocation10] sm:$0xff]
    %v213 = vld [vmem:[%s2] sm:$0x1]
    %v215 = vperm.slane %v213, 0
    %224 = vst [vmem:[#allocation1] ss:$2 sm:$0xff] %v204
    %s225 = scalar_lea.vmem [#allocation1], 1
    %226 = vst [vmem:[%s225] ss:$2 sm:$0xff] %v205
    %s227 = scalar_lea.vmem [#allocation1], 16
    %228 = vst [vmem:[%s227] ss:$2 sm:$0xff] %v206
    %s229 = scalar_lea.vmem [#allocation1], 17
    %230 = vst [vmem:[%s229] ss:$2 sm:$0xff] %v207
    %s231 = scalar_lea.vmem [#allocation1], 32
    %232 = vst [vmem:[%s231] ss:$2 sm:$0xff] %v208
    %s233 = scalar_lea.vmem [#allocation1], 33
    %234 = vst [vmem:[%s233] ss:$2 sm:$0xff] %v209
    %s235 = scalar_lea.vmem [#allocation1], 48
    %236 = vst [vmem:[%s235] ss:$2 sm:$0xff] %v210
    %s237 = scalar_lea.vmem [#allocation1], 49
    %238 = vst [vmem:[%s237] ss:$2 sm:$0xff] %v211
    %v239 = vld.sshfl [vmem:[#allocation1] sm:$0xff pattern:$0x75316420]
    %v240 = vld.sshfl [vmem:[#allocation1 + $0x10] sm:$0xff pattern:$0x75316420]
    %v241 = vld.sshfl [vmem:[#allocation1 + $0x20] sm:$0xff pattern:$0x75316420]
    %v242 = vld.sshfl [vmem:[#allocation1 + $0x30] sm:$0xff pattern:$0x75316420]
    %243 = vst [vmem:[#allocation1] ss:$2 sm:$0xff] %v215
    %s244 = scalar_lea.vmem [#allocation1], 1
    %245 = vst [vmem:[%s244] ss:$2 sm:$0xff] %v215
    %s246 = scalar_lea.vmem [#allocation1], 16
    %247 = vst [vmem:[%s246] ss:$2 sm:$0xff] %v215
    %s248 = scalar_lea.vmem [#allocation1], 17
    %249 = vst [vmem:[%s248] ss:$2 sm:$0xff] %v215
    %s250 = scalar_lea.vmem [#allocation1], 32
    %251 = vst [vmem:[%s250] ss:$2 sm:$0xff] %v215
    %s252 = scalar_lea.vmem [#allocation1], 33
    %253 = vst [vmem:[%s252] ss:$2 sm:$0xff] %v215
    %s254 = scalar_lea.vmem [#allocation1], 48
    %255 = vst [vmem:[%s254] ss:$2 sm:$0xff] %v215
    %s256 = scalar_lea.vmem [#allocation1], 49
    %257 = vst [vmem:[%s256] ss:$2 sm:$0xff] %v215
    %v258 = vld.sshfl [vmem:[#allocation1] sm:$0xff pattern:$0x75316420]
    %v259 = vld.sshfl [vmem:[#allocation1 + $0x10] sm:$0xff pattern:$0x75316420]
    %v260 = vld.sshfl [vmem:[#allocation1 + $0x20] sm:$0xff pattern:$0x75316420]
    %v261 = vld.sshfl [vmem:[#allocation1 + $0x30] sm:$0xff pattern:$0x75316420]
    %vm266 = vcmask 64512
    %v267 = vsel %vm266, %v239, 0
    %v269 = vsel %vm266, %v240, 0
    %v271 = vsel %vm266, %v241, 0
    %v273 = vsel %vm266, %v242, 0
    %275 = vmatpush.msra.mxu0 0.0
    %276 = vmatpush.msra.mxu0 0.0
    %277 = vmatpush.msra.mxu0 0.0
    %278 = vmatpush.msra.mxu0 0.0
    %279 = vmatpush.msra.mxu0 0.0
    %280 = vmatpush.msra.mxu0 0.0
    %281 = vmatpush.msra.mxu0 0.0
    %282 = vmatpush.msra.mxu0 0.0
    %283 = vmatpush.msra.mxu0 0.0
    %284 = vmatpush.msra.mxu0 0.0
    %285 = vmatpush.msra.mxu0 0.0
    %286 = vmatpush.msra.mxu0 0.0
    %287 = vmatpush.msra.mxu0 0.0
    %288 = vmatpush.msra.mxu0 0.0
    %289 = vmatpush.msra.mxu0 0.0
    %290 = vmatpush.msra.mxu0 %v212
    %291 = vmatmul.f32.gmra.mxu0 %v267
    %v292 = vpop.f32.mrf.mxu0
    %v293 = vadd.f32 %v258, %v292
    %294 = vmatmul.f32.gmra.mxu0 %v269
    %v295 = vpop.f32.mrf.mxu0
    %v296 = vadd.f32 %v259, %v295
    %297 = vmatmul.f32.gmra.mxu0 %v271
    %v298 = vpop.f32.mrf.mxu0
    %v299 = vadd.f32 %v260, %v298
    %300 = vmatmul.f32.gmra.mxu0 %v273
    %v301 = vpop.f32.mrf.mxu0
    %v302 = vadd.f32 %v261, %v301
    %303 = vdwg.mxu0
    %v308 = vrot.slane %v293, 4
    %v309 = vrot.slane %v296, 4
    %v310 = vrot.slane %v299, 4
    %v311 = vrot.slane %v302, 4
    %vm316 = vcmask 781312
    %317 = vst.msk [vmem:[#allocation2] sm:$0xf] %vm316, %v293
    %318 = vst.msk [vmem:[#allocation2 + $0x4] sm:$0xf] %vm316, %v308
    %319 = vst.msk [vmem:[#allocation2 + $0x8] sm:$0xf] %vm316, %v296
    %320 = vst.msk [vmem:[#allocation2 + $0xc] sm:$0xf] %vm316, %v309
    %321 = vst.msk [vmem:[#allocation2 + $0x10] sm:$0xf] %vm316, %v299
    %322 = vst.msk [vmem:[#allocation2 + $0x14] sm:$0xf] %vm316, %v310
    %323 = vst.msk [vmem:[#allocation2 + $0x18] sm:$0xf] %vm316, %v302
    %324 = vst.msk [vmem:[#allocation2 + $0x1c] sm:$0xf] %vm316, %v311
    %v325 = vld [vmem:[#allocation12] sm:$0xff]
    %v326 = vld [vmem:[#allocation12 + $0x8] sm:$0xff]
    %v327 = vld [vmem:[#allocation12 + $0x10] sm:$0xff]
    %v328 = vld [vmem:[#allocation12 + $0x18] sm:$0xff]
    %v329 = vld [vmem:[%s4] sm:$0x1]
    %v330 = vld [vmem:[#allocation2] sm:$0xf]
    %s331 = scalar_lea.vmem [#allocation2], 28
    %v332 = vld [vmem:[%s331] sm:$0xf]
    %v333 = vsel %vm203, %v330, %v332
    %vm334 = vcmask 261120
    %v336 = vsel %vm334, 0.0, 0
    %338 = vmatpush.msra.mxu0 0.0
    %339 = vmatpush.msra.mxu0 0.0
    %340 = vmatpush.msra.mxu0 0.0
    %341 = vmatpush.msra.mxu0 0.0
    %342 = vmatpush.msra.mxu0 0.0
    %343 = vmatpush.msra.mxu0 0.0
    %344 = vmatpush.msra.mxu0 0.0
    %345 = vmatpush.msra.mxu0 0.0
    %346 = vmatpush.msra.mxu0 0.0
    %347 = vmatpush.msra.mxu0 0.0
    %348 = vmatpush.msra.mxu0 0.0
    %349 = vmatpush.msra.mxu0 0.0
    %350 = vmatpush.msra.mxu0 %v328
    %351 = vmatpush.msra.mxu0 %v327
    %352 = vmatpush.msra.mxu0 %v326
    %353 = vmatpush.msra.mxu0 %v325
    %354 = vmatmul.f32.gmra.mxu0 %v336
    %v355 = vpop.f32.mrf.mxu0
    %v356 = vadd.f32 0.0, %v355
    %357 = vdwg.mxu0
    %v358 = vadd.f32 %v333, %v356
    %v359 = vxor.u32 %v358, 2147483648
    %v360 = vmul.f32 %v359, 1.442695
    %v361 = vpow.pop %v360
    %v362 = vadd.f32 %v361, 1.0
    %v363 = vrcp.pop %v362
    %v364 = vmul.f32 %v362, %v363
    %v365 = vsub.f32 1.0, %v364
    %v366 = vmul.f32 %v363, %v365
    %v367 = vadd.f32 %v363, %v366
    %vm368 = vweird.f32 %v362
    %vm369 = vweird.f32 %v363
    %vm370 = vmor %vm368, %vm369
    %v371 = vsel %vm370, %v363, %v367
    %v372 = vand.u32 2147483647, %v362
    %vm373 = vcmp.eq.f32.partialorder %v372, 8.507059e+37
    %v374 = vand.u32 %v362, 2147483648
    %v375 = vor.u32 1.1754944e-38, %v374
    %v376 = vsel %vm373, %v375, %v371
    %v377 = vmul.f32 1.0, %v376
    %v379 = vperm.slane %v329, 0
    %380 = vrot.lane.b32.xlu0 %v379, 64
    %v381 = vpop.permute.xlu0 %380
    %v383 = vadd.f32 %v356, %v381
    %385 = vrot.lane.b32.xlu0 %v383, 64
    %v386 = vpop.permute.xlu0 %385
    %v388 = vmul.f32 %v377, %v386
    %390 = vrot.lane.b32.xlu0 %v388, 64
    %v391 = vpop.permute.xlu0 %390
    %v393 = vadd.f32 %v333, %v391
    %v394 = vtanh.pop %v393
    %v395 = vsub.f32 1.0, %v377
    %397 = vrot.lane.b32.xlu0 %v394, 96
    %v398 = vpop.permute.xlu0 %397
    %v400 = vmul.f32 %v395, %v398
    %v401 = vmul.f32 %v377, 0.0
    %v402 = vadd.f32 %v400, %v401
    %404 = vrot.lane.b32.xlu0 %v402, 96
    %v405 = vpop.permute.xlu0 %404
    %vm407 = vcmask 125952
    %408 = vst.msk [vmem:[#allocation3] sm:$0xf] %vm407, %v405
    %409 = vrot.lane.b32.xlu0 %v402, 80
    %v410 = vpop.permute.xlu0 %409
    %s412 = scalar_lea.vmem [#allocation4], 28
    %413 = vst.msk [vmem:[%s412] sm:$0xf] %vm407, %v410
    %s414 = scalar_lea.vmem [#allocation2], 4
    %v415 = vld [vmem:[%s414] sm:$0xf]
    %s416 = scalar_lea.vmem [#allocation2], 24
    %v417 = vld [vmem:[%s416] sm:$0xf]
    %v418 = vsel %vm203, %v415, %v417
    %v419 = vsel %vm334, %v405, 0
    %421 = vmatpush.msra.mxu0 0.0
    %422 = vmatpush.msra.mxu0 0.0
    %423 = vmatpush.msra.mxu0 0.0
    %424 = vmatpush.msra.mxu0 0.0
    %425 = vmatpush.msra.mxu0 0.0
    %426 = vmatpush.msra.mxu0 0.0
    %427 = vmatpush.msra.mxu0 0.0
    %428 = vmatpush.msra.mxu0 0.0
    %429 = vmatpush.msra.mxu0 0.0
    %430 = vmatpush.msra.mxu0 0.0
    %431 = vmatpush.msra.mxu0 0.0
    %432 = vmatpush.msra.mxu0 0.0
    %433 = vmatpush.msra.mxu0 %v328
    %434 = vmatpush.msra.mxu0 %v327
    %435 = vmatpush.msra.mxu0 %v326
    %436 = vmatpush.msra.mxu0 %v325
    %437 = vmatmul.f32.gmra.mxu0 %v419
    %v438 = vpop.f32.mrf.mxu0
    %v439 = vadd.f32 0.0, %v438
    %440 = vdwg.mxu0
    %v441 = vadd.f32 %v418, %v439
    %v442 = vxor.u32 %v441, 2147483648
    %v443 = vmul.f32 %v442, 1.442695
    %v444 = vpow.pop %v443
    %v445 = vadd.f32 %v444, 1.0
    %v446 = vrcp.pop %v445
    %v447 = vmul.f32 %v445, %v446
    %v448 = vsub.f32 1.0, %v447
    %v449 = vmul.f32 %v446, %v448
    %v450 = vadd.f32 %v446, %v449
    %vm451 = vweird.f32 %v445
    %vm452 = vweird.f32 %v446
    %vm453 = vmor %vm451, %vm452
    %v454 = vsel %vm453, %v446, %v450
    %v455 = vand.u32 2147483647, %v445
    %vm456 = vcmp.eq.f32.partialorder %v455, 8.507059e+37
    %v457 = vand.u32 %v445, 2147483648
    %v458 = vor.u32 1.1754944e-38, %v457
    %v459 = vsel %vm456, %v458, %v454
    %v460 = vmul.f32 1.0, %v459
    %v461 = vadd.f32 %v439, %v381
    %463 = vrot.lane.b32.xlu0 %v461, 64
    %v464 = vpop.permute.xlu0 %463
    %v466 = vmul.f32 %v460, %v464
    %468 = vrot.lane.b32.xlu0 %v466, 64
    %v469 = vpop.permute.xlu0 %468
    %v471 = vadd.f32 %v418, %v469
    %v472 = vtanh.pop %v471
    %v473 = vsub.f32 1.0, %v460
    %475 = vrot.lane.b32.xlu0 %v472, 96
    %v476 = vpop.permute.xlu0 %475
    %v478 = vmul.f32 %v473, %v476
    %v479 = vmul.f32 %v460, %v402
    %v480 = vadd.f32 %v478, %v479
    %482 = vrot.lane.b32.xlu0 %v480, 96
    %v483 = vpop.permute.xlu0 %482
    %s485 = scalar_lea.vmem [#allocation3], 4
    %486 = vst.msk [vmem:[%s485] sm:$0xf] %vm407, %v483
    %487 = vrot.lane.b32.xlu0 %v480, 80
    %v488 = vpop.permute.xlu0 %487
    %s490 = scalar_lea.vmem [#allocation4], 24
    %491 = vst.msk [vmem:[%s490] sm:$0xf] %vm407, %v488
    %s492 = scalar_lea.vmem [#allocation2], 8
    %v493 = vld [vmem:[%s492] sm:$0xf]
    %s494 = scalar_lea.vmem [#allocation2], 20
    %v495 = vld [vmem:[%s494] sm:$0xf]
    %v496 = vsel %vm203, %v493, %v495
    %v497 = vsel %vm334, %v483, 0
    %499 = vmatpush.msra.mxu0 0.0
    %500 = vmatpush.msra.mxu0 0.0
    %501 = vmatpush.msra.mxu0 0.0
    %502 = vmatpush.msra.mxu0 0.0
    %503 = vmatpush.msra.mxu0 0.0
    %504 = vmatpush.msra.mxu0 0.0
    %505 = vmatpush.msra.mxu0 0.0
    %506 = vmatpush.msra.mxu0 0.0
    %507 = vmatpush.msra.mxu0 0.0
    %508 = vmatpush.msra.mxu0 0.0
    %509 = vmatpush.msra.mxu0 0.0
    %510 = vmatpush.msra.mxu0 0.0
    %511 = vmatpush.msra.mxu0 %v328
    %512 = vmatpush.msra.mxu0 %v327
    %513 = vmatpush.msra.mxu0 %v326
    %514 = vmatpush.msra.mxu0 %v325
    %515 = vmatmul.f32.gmra.mxu0 %v497
    %v516 = vpop.f32.mrf.mxu0
    %v517 = vadd.f32 0.0, %v516
    %518 = vdwg.mxu0
    %v519 = vadd.f32 %v496, %v517
    %v520 = vxor.u32 %v519, 2147483648
    %v521 = vmul.f32 %v520, 1.442695
    %v522 = vpow.pop %v521
    %v523 = vadd.f32 %v522, 1.0
    %v524 = vrcp.pop %v523
    %v525 = vmul.f32 %v523, %v524
    %v526 = vsub.f32 1.0, %v525
    %v527 = vmul.f32 %v524, %v526
    %v528 = vadd.f32 %v524, %v527
    %vm529 = vweird.f32 %v523
    %vm530 = vweird.f32 %v524
    %vm531 = vmor %vm529, %vm530
    %v532 = vsel %vm531, %v524, %v528
    %v533 = vand.u32 2147483647, %v523
    %vm534 = vcmp.eq.f32.partialorder %v533, 8.507059e+37
    %v535 = vand.u32 %v523, 2147483648
    %v536 = vor.u32 1.1754944e-38, %v535
    %v537 = vsel %vm534, %v536, %v532
    %v538 = vmul.f32 1.0, %v537
    %v539 = vadd.f32 %v517, %v381
    %541 = vrot.lane.b32.xlu0 %v539, 64
    %v542 = vpop.permute.xlu0 %541
    %v544 = vmul.f32 %v538, %v542
    %546 = vrot.lane.b32.xlu0 %v544, 64
    %v547 = vpop.permute.xlu0 %546
    %v549 = vadd.f32 %v496, %v547
    %v550 = vtanh.pop %v549
    %v551 = vsub.f32 1.0, %v538
    %553 = vrot.lane.b32.xlu0 %v550, 96
    %v554 = vpop.permute.xlu0 %553
    %v556 = vmul.f32 %v551, %v554
    %v557 = vmul.f32 %v538, %v480
    %v558 = vadd.f32 %v556, %v557
    %560 = vrot.lane.b32.xlu0 %v558, 96
    %v561 = vpop.permute.xlu0 %560
    %s563 = scalar_lea.vmem [#allocation3], 8
    %564 = vst.msk [vmem:[%s563] sm:$0xf] %vm407, %v561
    %565 = vrot.lane.b32.xlu0 %v558, 80
    %v566 = vpop.permute.xlu0 %565
    %s568 = scalar_lea.vmem [#allocation4], 20
    %569 = vst.msk [vmem:[%s568] sm:$0xf] %vm407, %v566
    %s570 = scalar_lea.vmem [#allocation2], 12
    %v571 = vld [vmem:[%s570] sm:$0xf]
    %s572 = scalar_lea.vmem [#allocation2], 16
    %v573 = vld [vmem:[%s572] sm:$0xf]
    %v574 = vsel %vm203, %v571, %v573
    %v575 = vsel %vm334, %v561, 0
    %577 = vmatpush.msra.mxu0 0.0
    %578 = vmatpush.msra.mxu0 0.0
    %579 = vmatpush.msra.mxu0 0.0
    %580 = vmatpush.msra.mxu0 0.0
    %581 = vmatpush.msra.mxu0 0.0
    %582 = vmatpush.msra.mxu0 0.0
    %583 = vmatpush.msra.mxu0 0.0
    %584 = vmatpush.msra.mxu0 0.0
    %585 = vmatpush.msra.mxu0 0.0
    %586 = vmatpush.msra.mxu0 0.0
    %587 = vmatpush.msra.mxu0 0.0
    %588 = vmatpush.msra.mxu0 0.0
    %589 = vmatpush.msra.mxu0 %v328
    %590 = vmatpush.msra.mxu0 %v327
    %591 = vmatpush.msra.mxu0 %v326
    %592 = vmatpush.msra.mxu0 %v325
    %593 = vmatmul.f32.gmra.mxu0 %v575
    %v594 = vpop.f32.mrf.mxu0
    %v595 = vadd.f32 0.0, %v594
    %596 = vdwg.mxu0
    %v597 = vadd.f32 %v574, %v595
    %v598 = vxor.u32 %v597, 2147483648
    %v599 = vmul.f32 %v598, 1.442695
    %v600 = vpow.pop %v599
    %v601 = vadd.f32 %v600, 1.0
    %v602 = vrcp.pop %v601
    %v603 = vmul.f32 %v601, %v602
    %v604 = vsub.f32 1.0, %v603
    %v605 = vmul.f32 %v602, %v604
    %v606 = vadd.f32 %v602, %v605
    %vm607 = vweird.f32 %v601
    %vm608 = vweird.f32 %v602
    %vm609 = vmor %vm607, %vm608
    %v610 = vsel %vm609, %v602, %v606
    %v611 = vand.u32 2147483647, %v601
    %vm612 = vcmp.eq.f32.partialorder %v611, 8.507059e+37
    %v613 = vand.u32 %v601, 2147483648
    %v614 = vor.u32 1.1754944e-38, %v613
    %v615 = vsel %vm612, %v614, %v610
    %v616 = vmul.f32 1.0, %v615
    %v617 = vadd.f32 %v595, %v381
    %619 = vrot.lane.b32.xlu0 %v617, 64
    %v620 = vpop.permute.xlu0 %619
    %v622 = vmul.f32 %v616, %v620
    %624 = vrot.lane.b32.xlu0 %v622, 64
    %v625 = vpop.permute.xlu0 %624
    %v627 = vadd.f32 %v574, %v625
    %v628 = vtanh.pop %v627
    %v629 = vsub.f32 1.0, %v616
    %631 = vrot.lane.b32.xlu0 %v628, 96
    %v632 = vpop.permute.xlu0 %631
    %v634 = vmul.f32 %v629, %v632
    %v635 = vmul.f32 %v616, %v558
    %v636 = vadd.f32 %v634, %v635
    %638 = vrot.lane.b32.xlu0 %v636, 96
    %v639 = vpop.permute.xlu0 %638
    %s641 = scalar_lea.vmem [#allocation3], 12
    %642 = vst.msk [vmem:[%s641] sm:$0xf] %vm407, %v639
    %643 = vrot.lane.b32.xlu0 %v636, 80
    %v644 = vpop.permute.xlu0 %643
    %s646 = scalar_lea.vmem [#allocation4], 16
    %647 = vst.msk [vmem:[%s646] sm:$0xf] %vm407, %v644
    %v648 = vld [vmem:[%s572] sm:$0xf]
    %v649 = vld [vmem:[%s570] sm:$0xf]
    %v650 = vsel %vm203, %v648, %v649
    %v651 = vsel %vm334, %v639, 0
    %653 = vmatpush.msra.mxu0 0.0
    %654 = vmatpush.msra.mxu0 0.0
    %655 = vmatpush.msra.mxu0 0.0
    %656 = vmatpush.msra.mxu0 0.0
    %657 = vmatpush.msra.mxu0 0.0
    %658 = vmatpush.msra.mxu0 0.0
    %659 = vmatpush.msra.mxu0 0.0
    %660 = vmatpush.msra.mxu0 0.0
    %661 = vmatpush.msra.mxu0 0.0
    %662 = vmatpush.msra.mxu0 0.0
    %663 = vmatpush.msra.mxu0 0.0
    %664 = vmatpush.msra.mxu0 0.0
    %665 = vmatpush.msra.mxu0 %v328
    %666 = vmatpush.msra.mxu0 %v327
    %667 = vmatpush.msra.mxu0 %v326
    %668 = vmatpush.msra.mxu0 %v325
    %669 = vmatmul.f32.gmra.mxu0 %v651
    %v670 = vpop.f32.mrf.mxu0
    %v671 = vadd.f32 0.0, %v670
    %672 = vdwg.mxu0
    %v673 = vadd.f32 %v650, %v671
    %v674 = vxor.u32 %v673, 2147483648
    %v675 = vmul.f32 %v674, 1.442695
    %v676 = vpow.pop %v675
    %v677 = vadd.f32 %v676, 1.0
    %v678 = vrcp.pop %v677
    %v679 = vmul.f32 %v677, %v678
    %v680 = vsub.f32 1.0, %v679
    %v681 = vmul.f32 %v678, %v680
    %v682 = vadd.f32 %v678, %v681
    %vm683 = vweird.f32 %v677
    %vm684 = vweird.f32 %v678
    %vm685 = vmor %vm683, %vm684
    %v686 = vsel %vm685, %v678, %v682
    %v687 = vand.u32 2147483647, %v677
    %vm688 = vcmp.eq.f32.partialorder %v687, 8.507059e+37
    %v689 = vand.u32 %v677, 2147483648
    %v690 = vor.u32 1.1754944e-38, %v689
    %v691 = vsel %vm688, %v690, %v686
    %v692 = vmul.f32 1.0, %v691
    %v693 = vadd.f32 %v671, %v381
    %695 = vrot.lane.b32.xlu0 %v693, 64
    %v696 = vpop.permute.xlu0 %695
    %v698 = vmul.f32 %v692, %v696
    %700 = vrot.lane.b32.xlu0 %v698, 64
    %v701 = vpop.permute.xlu0 %700
    %v703 = vadd.f32 %v650, %v701
    %v704 = vtanh.pop %v703
    %v705 = vsub.f32 1.0, %v692
    %707 = vrot.lane.b32.xlu0 %v704, 96
    %v708 = vpop.permute.xlu0 %707
    %v710 = vmul.f32 %v705, %v708
    %v711 = vmul.f32 %v692, %v636
    %v712 = vadd.f32 %v710, %v711
    %714 = vrot.lane.b32.xlu0 %v712, 96
    %v715 = vpop.permute.xlu0 %714
    %s717 = scalar_lea.vmem [#allocation3], 16
    %718 = vst.msk [vmem:[%s717] sm:$0xf] %vm407, %v715
    %719 = vrot.lane.b32.xlu0 %v712, 80
    %v720 = vpop.permute.xlu0 %719
    %s722 = scalar_lea.vmem [#allocation4], 12
    %723 = vst.msk [vmem:[%s722] sm:$0xf] %vm407, %v720
    %v724 = vld [vmem:[%s494] sm:$0xf]
    %v725 = vld [vmem:[%s492] sm:$0xf]
    %v726 = vsel %vm203, %v724, %v725
    %v727 = vsel %vm334, %v715, 0
    %729 = vmatpush.msra.mxu0 0.0
    %730 = vmatpush.msra.mxu0 0.0
    %731 = vmatpush.msra.mxu0 0.0
    %732 = vmatpush.msra.mxu0 0.0
    %733 = vmatpush.msra.mxu0 0.0
    %734 = vmatpush.msra.mxu0 0.0
    %735 = vmatpush.msra.mxu0 0.0
    %736 = vmatpush.msra.mxu0 0.0
    %737 = vmatpush.msra.mxu0 0.0
    %738 = vmatpush.msra.mxu0 0.0
    %739 = vmatpush.msra.mxu0 0.0
    %740 = vmatpush.msra.mxu0 0.0
    %741 = vmatpush.msra.mxu0 %v328
    %742 = vmatpush.msra.mxu0 %v327
    %743 = vmatpush.msra.mxu0 %v326
    %744 = vmatpush.msra.mxu0 %v325
    %745 = vmatmul.f32.gmra.mxu0 %v727
    %v746 = vpop.f32.mrf.mxu0
    %v747 = vadd.f32 0.0, %v746
    %748 = vdwg.mxu0
    %v749 = vadd.f32 %v726, %v747
    %v750 = vxor.u32 %v749, 2147483648
    %v751 = vmul.f32 %v750, 1.442695
    %v752 = vpow.pop %v751
    %v753 = vadd.f32 %v752, 1.0
    %v754 = vrcp.pop %v753
    %v755 = vmul.f32 %v753, %v754
    %v756 = vsub.f32 1.0, %v755
    %v757 = vmul.f32 %v754, %v756
    %v758 = vadd.f32 %v754, %v757
    %vm759 = vweird.f32 %v753
    %vm760 = vweird.f32 %v754
    %vm761 = vmor %vm759, %vm760
    %v762 = vsel %vm761, %v754, %v758
    %v763 = vand.u32 2147483647, %v753
    %vm764 = vcmp.eq.f32.partialorder %v763, 8.507059e+37
    %v765 = vand.u32 %v753, 2147483648
    %v766 = vor.u32 1.1754944e-38, %v765
    %v767 = vsel %vm764, %v766, %v762
    %v768 = vmul.f32 1.0, %v767
    %v769 = vadd.f32 %v747, %v381
    %771 = vrot.lane.b32.xlu0 %v769, 64
    %v772 = vpop.permute.xlu0 %771
    %v774 = vmul.f32 %v768, %v772
    %776 = vrot.lane.b32.xlu0 %v774, 64
    %v777 = vpop.permute.xlu0 %776
    %v779 = vadd.f32 %v726, %v777
    %v780 = vtanh.pop %v779
    %v781 = vsub.f32 1.0, %v768
    %783 = vrot.lane.b32.xlu0 %v780, 96
    %v784 = vpop.permute.xlu0 %783
    %v786 = vmul.f32 %v781, %v784
    %v787 = vmul.f32 %v768, %v712
    %v788 = vadd.f32 %v786, %v787
    %790 = vrot.lane.b32.xlu0 %v788, 96
    %v791 = vpop.permute.xlu0 %790
    %s793 = scalar_lea.vmem [#allocation3], 20
    %794 = vst.msk [vmem:[%s793] sm:$0xf] %vm407, %v791
    %795 = vrot.lane.b32.xlu0 %v788, 80
    %v796 = vpop.permute.xlu0 %795
    %s798 = scalar_lea.vmem [#allocation4], 8
    %799 = vst.msk [vmem:[%s798] sm:$0xf] %vm407, %v796
    %v800 = vld [vmem:[%s416] sm:$0xf]
    %v801 = vld [vmem:[%s414] sm:$0xf]
    %v802 = vsel %vm203, %v800, %v801
    %v803 = vsel %vm334, %v791, 0
    %805 = vmatpush.msra.mxu0 0.0
    %806 = vmatpush.msra.mxu0 0.0
    %807 = vmatpush.msra.mxu0 0.0
    %808 = vmatpush.msra.mxu0 0.0
    %809 = vmatpush.msra.mxu0 0.0
    %810 = vmatpush.msra.mxu0 0.0
    %811 = vmatpush.msra.mxu0 0.0
    %812 = vmatpush.msra.mxu0 0.0
    %813 = vmatpush.msra.mxu0 0.0
    %814 = vmatpush.msra.mxu0 0.0
    %815 = vmatpush.msra.mxu0 0.0
    %816 = vmatpush.msra.mxu0 0.0
    %817 = vmatpush.msra.mxu0 %v328
    %818 = vmatpush.msra.mxu0 %v327
    %819 = vmatpush.msra.mxu0 %v326
    %820 = vmatpush.msra.mxu0 %v325
    %821 = vmatmul.f32.gmra.mxu0 %v803
    %v822 = vpop.f32.mrf.mxu0
    %v823 = vadd.f32 0.0, %v822
    %824 = vdwg.mxu0
    %v825 = vadd.f32 %v802, %v823
    %v826 = vxor.u32 %v825, 2147483648
    %v827 = vmul.f32 %v826, 1.442695
    %v828 = vpow.pop %v827
    %v829 = vadd.f32 %v828, 1.0
    %v830 = vrcp.pop %v829
    %v831 = vmul.f32 %v829, %v830
    %v832 = vsub.f32 1.0, %v831
    %v833 = vmul.f32 %v830, %v832
    %v834 = vadd.f32 %v830, %v833
    %vm835 = vweird.f32 %v829
    %vm836 = vweird.f32 %v830
    %vm837 = vmor %vm835, %vm836
    %v838 = vsel %vm837, %v830, %v834
    %v839 = vand.u32 2147483647, %v829
    %vm840 = vcmp.eq.f32.partialorder %v839, 8.507059e+37
    %v841 = vand.u32 %v829, 2147483648
    %v842 = vor.u32 1.1754944e-38, %v841
    %v843 = vsel %vm840, %v842, %v838
    %v844 = vmul.f32 1.0, %v843
    %v845 = vadd.f32 %v823, %v381
    %847 = vrot.lane.b32.xlu0 %v845, 64
    %v848 = vpop.permute.xlu0 %847
    %v850 = vmul.f32 %v844, %v848
    %852 = vrot.lane.b32.xlu0 %v850, 64
    %v853 = vpop.permute.xlu0 %852
    %v855 = vadd.f32 %v802, %v853
    %v856 = vtanh.pop %v855
    %v857 = vsub.f32 1.0, %v844
    %859 = vrot.lane.b32.xlu0 %v856, 96
    %v860 = vpop.permute.xlu0 %859
    %v862 = vmul.f32 %v857, %v860
    %v863 = vmul.f32 %v844, %v788
    %v864 = vadd.f32 %v862, %v863
    %866 = vrot.lane.b32.xlu0 %v864, 96
    %v867 = vpop.permute.xlu0 %866
    %s869 = scalar_lea.vmem [#allocation3], 24
    %870 = vst.msk [vmem:[%s869] sm:$0xf] %vm407, %v867
    %871 = vrot.lane.b32.xlu0 %v864, 80
    %v872 = vpop.permute.xlu0 %871
    %s874 = scalar_lea.vmem [#allocation4], 4
    %875 = vst.msk [vmem:[%s874] sm:$0xf] %vm407, %v872
    %v876 = vld [vmem:[%s331] sm:$0xf]
    %v877 = vld [vmem:[#allocation2] sm:$0xf]
    %v878 = vsel %vm203, %v876, %v877
    %v879 = vsel %vm334, %v867, 0
    %881 = vmatpush.msra.mxu0 0.0
    %882 = vmatpush.msra.mxu0 0.0
    %883 = vmatpush.msra.mxu0 0.0
    %884 = vmatpush.msra.mxu0 0.0
    %885 = vmatpush.msra.mxu0 0.0
    %886 = vmatpush.msra.mxu0 0.0
    %887 = vmatpush.msra.mxu0 0.0
    %888 = vmatpush.msra.mxu0 0.0
    %889 = vmatpush.msra.mxu0 0.0
    %890 = vmatpush.msra.mxu0 0.0
    %891 = vmatpush.msra.mxu0 0.0
    %892 = vmatpush.msra.mxu0 0.0
    %893 = vmatpush.msra.mxu0 %v328
    %894 = vmatpush.msra.mxu0 %v327
    %895 = vmatpush.msra.mxu0 %v326
    %896 = vmatpush.msra.mxu0 %v325
    %897 = vmatmul.f32.gmra.mxu0 %v879
    %v898 = vpop.f32.mrf.mxu0
    %v899 = vadd.f32 0.0, %v898
    %900 = vdwg.mxu0
    %v901 = vadd.f32 %v878, %v899
    %v902 = vxor.u32 %v901, 2147483648
    %v903 = vmul.f32 %v902, 1.442695
    %v904 = vpow.pop %v903
    %v905 = vadd.f32 %v904, 1.0
    %v906 = vrcp.pop %v905
    %v907 = vmul.f32 %v905, %v906
    %v908 = vsub.f32 1.0, %v907
    %v909 = vmul.f32 %v906, %v908
    %v910 = vadd.f32 %v906, %v909
    %vm911 = vweird.f32 %v905
    %vm912 = vweird.f32 %v906
    %vm913 = vmor %vm911, %vm912
    %v914 = vsel %vm913, %v906, %v910
    %v915 = vand.u32 2147483647, %v905
    %vm916 = vcmp.eq.f32.partialorder %v915, 8.507059e+37
    %v917 = vand.u32 %v905, 2147483648
    %v918 = vor.u32 1.1754944e-38, %v917
    %v919 = vsel %vm916, %v918, %v914
    %v920 = vmul.f32 1.0, %v919
    %v921 = vadd.f32 %v899, %v381
    %923 = vrot.lane.b32.xlu0 %v921, 64
    %v924 = vpop.permute.xlu0 %923
    %v926 = vmul.f32 %v920, %v924
    %928 = vrot.lane.b32.xlu0 %v926, 64
    %v929 = vpop.permute.xlu0 %928
    %v931 = vadd.f32 %v878, %v929
    %v932 = vtanh.pop %v931
    %v933 = vsub.f32 1.0, %v920
    %935 = vrot.lane.b32.xlu0 %v932, 96
    %v936 = vpop.permute.xlu0 %935
    %v938 = vmul.f32 %v933, %v936
    %v939 = vmul.f32 %v920, %v864
    %v940 = vadd.f32 %v938, %v939
    %942 = vrot.lane.b32.xlu0 %v940, 96
    %v943 = vpop.permute.xlu0 %942
    %s945 = scalar_lea.vmem [#allocation3], 28
    %946 = vst.msk [vmem:[%s945] sm:$0xf] %vm407, %v943
    %947 = vrot.lane.b32.xlu0 %v940, 80
    %v948 = vpop.permute.xlu0 %947
    %950 = vst.msk [vmem:[#allocation4] sm:$0xf] %vm407, %v948
    %v951 = vld [vmem:[#allocation3] sm:$0xf]
    %v952 = vld [vmem:[#allocation3 + $0x4] sm:$0xf]
    %v953 = vld [vmem:[#allocation3 + $0x8] sm:$0xf]
    %v954 = vld [vmem:[#allocation3 + $0xc] sm:$0xf]
    %v955 = vld [vmem:[#allocation3 + $0x10] sm:$0xf]
    %v956 = vld [vmem:[#allocation3 + $0x14] sm:$0xf]
    %v957 = vld [vmem:[#allocation3 + $0x18] sm:$0xf]
    %v958 = vld [vmem:[#allocation3 + $0x1c] sm:$0xf]
    %v959 = vld [vmem:[#allocation13] sm:$0xff]
    %v960 = vld [vmem:[#allocation13 + $0x8] sm:$0xff]
    %v961 = vld [vmem:[#allocation4] sm:$0xf]
    %v962 = vld [vmem:[#allocation4 + $0x4] sm:$0xf]
    %v963 = vld [vmem:[#allocation4 + $0x8] sm:$0xf]
    %v964 = vld [vmem:[#allocation4 + $0xc] sm:$0xf]
    %v965 = vld [vmem:[#allocation4 + $0x10] sm:$0xf]
    %v966 = vld [vmem:[#allocation4 + $0x14] sm:$0xf]
    %v967 = vld [vmem:[#allocation4 + $0x18] sm:$0xf]
    %v968 = vld [vmem:[#allocation4 + $0x1c] sm:$0xf]
    %v969 = vld [vmem:[#allocation15] sm:$0xff]
    %v970 = vld [vmem:[#allocation15 + $0x8] sm:$0xff]
    %979 = vst [vmem:[#allocation1] ss:$2 sm:$0xff] %v961
    %s980 = scalar_lea.vmem [#allocation1], 1
    %981 = vst [vmem:[%s980] ss:$2 sm:$0xff] %v962
    %s982 = scalar_lea.vmem [#allocation1], 16
    %983 = vst [vmem:[%s982] ss:$2 sm:$0xff] %v963
    %s984 = scalar_lea.vmem [#allocation1], 17
    %985 = vst [vmem:[%s984] ss:$2 sm:$0xff] %v964
    %s986 = scalar_lea.vmem [#allocation1], 32
    %987 = vst [vmem:[%s986] ss:$2 sm:$0xff] %v965
    %s988 = scalar_lea.vmem [#allocation1], 33
    %989 = vst [vmem:[%s988] ss:$2 sm:$0xff] %v966
    %s990 = scalar_lea.vmem [#allocation1], 48
    %991 = vst [vmem:[%s990] ss:$2 sm:$0xff] %v967
    %s992 = scalar_lea.vmem [#allocation1], 49
    %993 = vst [vmem:[%s992] ss:$2 sm:$0xff] %v968
    %v994 = vld.sshfl [vmem:[#allocation1] sm:$0xff pattern:$0x75316420]
    %v995 = vld.sshfl [vmem:[#allocation1 + $0x10] sm:$0xff pattern:$0x75316420]
    %v996 = vld.sshfl [vmem:[#allocation1 + $0x20] sm:$0xff pattern:$0x75316420]
    %v997 = vld.sshfl [vmem:[#allocation1 + $0x30] sm:$0xff pattern:$0x75316420]
    %vm998 = vcmask 130048
    %v999 = vsel %vm998, %v994, 0
    %v1001 = vsel %vm998, %v995, 0
    %v1003 = vsel %vm998, %v996, 0
    %v1005 = vsel %vm998, %v997, 0
    %1007 = vmatpush.msra.mxu0 0.0
    %1008 = vmatpush.msra.mxu0 0.0
    %1009 = vmatpush.msra.mxu0 0.0
    %1010 = vmatpush.msra.mxu0 0.0
    %1011 = vmatpush.msra.mxu0 0.0
    %1012 = vmatpush.msra.mxu0 0.0
    %1013 = vmatpush.msra.mxu0 0.0
    %1014 = vmatpush.msra.mxu0 0.0
    %1015 = vmatpush.msra.mxu0 0.0
    %1016 = vmatpush.msra.mxu0 0.0
    %1017 = vmatpush.msra.mxu0 0.0
    %1018 = vmatpush.msra.mxu0 0.0
    %1019 = vmatpush.msra.mxu0 0.0
    %1020 = vmatpush.msra.mxu0 0.0
    %1021 = vmatpush.msra.mxu0 %v970
    %1022 = vmatpush.msra.mxu0 %v969
    %1023 = vmatmul.f32.gmra.mxu0 %v999
    %v1024 = vpop.f32.mrf.mxu0
    %v1025 = vadd.f32 0.0, %v1024
    %1026 = vmatmul.f32.gmra.mxu0 %v1001
    %v1027 = vpop.f32.mrf.mxu0
    %v1028 = vadd.f32 0.0, %v1027
    %1029 = vmatmul.f32.gmra.mxu0 %v1003
    %v1030 = vpop.f32.mrf.mxu0
    %v1031 = vadd.f32 0.0, %v1030
    %1032 = vmatmul.f32.gmra.mxu0 %v1005
    %v1033 = vpop.f32.mrf.mxu0
    %v1034 = vadd.f32 0.0, %v1033
    %1035 = vdwg.mxu0
    %1044 = vst [vmem:[#allocation1] ss:$2 sm:$0xff] %v951
    %s1045 = scalar_lea.vmem [#allocation1], 1
    %1046 = vst [vmem:[%s1045] ss:$2 sm:$0xff] %v952
    %s1047 = scalar_lea.vmem [#allocation1], 16
    %1048 = vst [vmem:[%s1047] ss:$2 sm:$0xff] %v953
    %s1049 = scalar_lea.vmem [#allocation1], 17
    %1050 = vst [vmem:[%s1049] ss:$2 sm:$0xff] %v954
    %s1051 = scalar_lea.vmem [#allocation1], 32
    %1052 = vst [vmem:[%s1051] ss:$2 sm:$0xff] %v955
    %s1053 = scalar_lea.vmem [#allocation1], 33
    %1054 = vst [vmem:[%s1053] ss:$2 sm:$0xff] %v956
    %s1055 = scalar_lea.vmem [#allocation1], 48
    %1056 = vst [vmem:[%s1055] ss:$2 sm:$0xff] %v957
    %s1057 = scalar_lea.vmem [#allocation1], 49
    %1058 = vst [vmem:[%s1057] ss:$2 sm:$0xff] %v958
    %v1059 = vld.sshfl [vmem:[#allocation1] sm:$0xff pattern:$0x75316420]
    %v1060 = vld.sshfl [vmem:[#allocation1 + $0x10] sm:$0xff pattern:$0x75316420]
    %v1061 = vld.sshfl [vmem:[#allocation1 + $0x20] sm:$0xff pattern:$0x75316420]
    %v1062 = vld.sshfl [vmem:[#allocation1 + $0x30] sm:$0xff pattern:$0x75316420]
    %v1063 = vsel %vm998, %v1059, 0
    %v1065 = vsel %vm998, %v1060, 0
    %v1067 = vsel %vm998, %v1061, 0
    %v1069 = vsel %vm998, %v1062, 0
    %1071 = vmatpush.msra.mxu0 0.0
    %1072 = vmatpush.msra.mxu0 0.0
    %1073 = vmatpush.msra.mxu0 0.0
    %1074 = vmatpush.msra.mxu0 0.0
    %1075 = vmatpush.msra.mxu0 0.0
    %1076 = vmatpush.msra.mxu0 0.0
    %1077 = vmatpush.msra.mxu0 0.0
    %1078 = vmatpush.msra.mxu0 0.0
    %1079 = vmatpush.msra.mxu0 0.0
    %1080 = vmatpush.msra.mxu0 0.0
    %1081 = vmatpush.msra.mxu0 0.0
    %1082 = vmatpush.msra.mxu0 0.0
    %1083 = vmatpush.msra.mxu0 0.0
    %1084 = vmatpush.msra.mxu0 0.0
    %1085 = vmatpush.msra.mxu0 %v960
    %1086 = vmatpush.msra.mxu0 %v959
    %1087 = vmatmul.f32.gmra.mxu0 %v1063
    %v1088 = vpop.f32.mrf.mxu0
    %v1089 = vadd.f32 %v1025, %v1088
    %1090 = vmatmul.f32.gmra.mxu0 %v1065
    %v1091 = vpop.f32.mrf.mxu0
    %v1092 = vadd.f32 %v1028, %v1091
    %1093 = vmatmul.f32.gmra.mxu0 %v1067
    %v1094 = vpop.f32.mrf.mxu0
    %v1095 = vadd.f32 %v1031, %v1094
    %1096 = vmatmul.f32.gmra.mxu0 %v1069
    %v1097 = vpop.f32.mrf.mxu0
    %v1098 = vadd.f32 %v1034, %v1097
    %1099 = vdwg.mxu0
    %v1104 = vrot.slane %v1089, 4
    %v1105 = vrot.slane %v1092, 4
    %v1106 = vrot.slane %v1095, 4
    %v1107 = vrot.slane %v1098, 4
    %v1112 = vld [vmem:[%s7] sm:$0x1]
    %v1114 = vperm.slane %v1112, 0
    %v1116 = vadd.f32 %v1089, %v1114
    %v1117 = vadd.f32 %v1104, %v1114
    %v1118 = vadd.f32 %v1092, %v1114
    %v1119 = vadd.f32 %v1105, %v1114
    %v1120 = vadd.f32 %v1095, %v1114
    %v1121 = vadd.f32 %v1106, %v1114
    %v1122 = vadd.f32 %v1098, %v1114
    %v1123 = vadd.f32 %v1107, %v1114
    %1124 = vst.msk [vmem:[#allocation2] sm:$0xf] %vm316, %v1116
    %1125 = vst.msk [vmem:[#allocation2 + $0x4] sm:$0xf] %vm316, %v1117
    %1126 = vst.msk [vmem:[#allocation2 + $0x8] sm:$0xf] %vm316, %v1118
    %1127 = vst.msk [vmem:[#allocation2 + $0xc] sm:$0xf] %vm316, %v1119
    %1128 = vst.msk [vmem:[#allocation2 + $0x10] sm:$0xf] %vm316, %v1120
    %1129 = vst.msk [vmem:[#allocation2 + $0x14] sm:$0xf] %vm316, %v1121
    %1130 = vst.msk [vmem:[#allocation2 + $0x18] sm:$0xf] %vm316, %v1122
    %1131 = vst.msk [vmem:[#allocation2 + $0x1c] sm:$0xf] %vm316, %v1123
    %v1132 = vld [vmem:[#allocation16] sm:$0xff]
    %v1133 = vld [vmem:[#allocation16 + $0x8] sm:$0xff]
    %v1134 = vld [vmem:[#allocation16 + $0x10] sm:$0xff]
    %v1135 = vld [vmem:[#allocation16 + $0x18] sm:$0xff]
    %v1136 = vld [vmem:[%s9] sm:$0x1]
    %v1137 = vld [vmem:[#allocation2] sm:$0xf]
    %v1138 = vld [vmem:[%s331] sm:$0xf]
    %v1139 = vsel %vm203, %v1137, %v1138
    %1140 = vmatpush.msra.mxu0 0.0
    %1141 = vmatpush.msra.mxu0 0.0
    %1142 = vmatpush.msra.mxu0 0.0
    %1143 = vmatpush.msra.mxu0 0.0
    %1144 = vmatpush.msra.mxu0 0.0
    %1145 = vmatpush.msra.mxu0 0.0
    %1146 = vmatpush.msra.mxu0 0.0
    %1147 = vmatpush.msra.mxu0 0.0
    %1148 = vmatpush.msra.mxu0 0.0
    %1149 = vmatpush.msra.mxu0 0.0
    %1150 = vmatpush.msra.mxu0 0.0
    %1151 = vmatpush.msra.mxu0 0.0
    %1152 = vmatpush.msra.mxu0 %v1135
    %1153 = vmatpush.msra.mxu0 %v1134
    %1154 = vmatpush.msra.mxu0 %v1133
    %1155 = vmatpush.msra.mxu0 %v1132
    %1156 = vmatmul.f32.gmra.mxu0 %v336
    %v1157 = vpop.f32.mrf.mxu0
    %v1158 = vadd.f32 0.0, %v1157
    %1159 = vdwg.mxu0
    %v1160 = vadd.f32 %v1139, %v1158
    %v1161 = vxor.u32 %v1160, 2147483648
    %v1162 = vmul.f32 %v1161, 1.442695
    %v1163 = vpow.pop %v1162
    %v1164 = vadd.f32 %v1163, 1.0
    %v1165 = vrcp.pop %v1164
    %v1166 = vmul.f32 %v1164, %v1165
    %v1167 = vsub.f32 1.0, %v1166
    %v1168 = vmul.f32 %v1165, %v1167
    %v1169 = vadd.f32 %v1165, %v1168
    %vm1170 = vweird.f32 %v1164
    %vm1171 = vweird.f32 %v1165
    %vm1172 = vmor %vm1170, %vm1171
    %v1173 = vsel %vm1172, %v1165, %v1169
    %v1174 = vand.u32 2147483647, %v1164
    %vm1175 = vcmp.eq.f32.partialorder %v1174, 8.507059e+37
    %v1176 = vand.u32 %v1164, 2147483648
    %v1177 = vor.u32 1.1754944e-38, %v1176
    %v1178 = vsel %vm1175, %v1177, %v1173
    %v1179 = vmul.f32 1.0, %v1178
    %v1181 = vperm.slane %v1136, 0
    %1182 = vrot.lane.b32.xlu0 %v1181, 64
    %v1183 = vpop.permute.xlu0 %1182
    %v1185 = vadd.f32 %v1158, %v1183
    %1187 = vrot.lane.b32.xlu0 %v1185, 64
    %v1188 = vpop.permute.xlu0 %1187
    %v1190 = vmul.f32 %v1179, %v1188
    %1192 = vrot.lane.b32.xlu0 %v1190, 64
    %v1193 = vpop.permute.xlu0 %1192
    %v1195 = vadd.f32 %v1139, %v1193
    %v1196 = vtanh.pop %v1195
    %v1197 = vsub.f32 1.0, %v1179
    %1199 = vrot.lane.b32.xlu0 %v1196, 96
    %v1200 = vpop.permute.xlu0 %1199
    %v1202 = vmul.f32 %v1197, %v1200
    %v1203 = vmul.f32 %v1179, 0.0
    %v1204 = vadd.f32 %v1202, %v1203
    %1206 = vrot.lane.b32.xlu0 %v1204, 96
    %v1207 = vpop.permute.xlu0 %1206
    %1209 = vst.msk [vmem:[#allocation5] sm:$0xf] %vm407, %v1207
    %1210 = vrot.lane.b32.xlu0 %v1204, 80
    %v1211 = vpop.permute.xlu0 %1210
    %s1213 = scalar_lea.vmem [#allocation6], 28
    %1214 = vst.msk [vmem:[%s1213] sm:$0xf] %vm407, %v1211
    %v1215 = vld [vmem:[%s414] sm:$0xf]
    %v1216 = vld [vmem:[%s416] sm:$0xf]
    %v1217 = vsel %vm203, %v1215, %v1216
    %v1218 = vsel %vm334, %v1207, 0
    %1220 = vmatpush.msra.mxu0 0.0
    %1221 = vmatpush.msra.mxu0 0.0
    %1222 = vmatpush.msra.mxu0 0.0
    %1223 = vmatpush.msra.mxu0 0.0
    %1224 = vmatpush.msra.mxu0 0.0
    %1225 = vmatpush.msra.mxu0 0.0
    %1226 = vmatpush.msra.mxu0 0.0
    %1227 = vmatpush.msra.mxu0 0.0
    %1228 = vmatpush.msra.mxu0 0.0
    %1229 = vmatpush.msra.mxu0 0.0
    %1230 = vmatpush.msra.mxu0 0.0
    %1231 = vmatpush.msra.mxu0 0.0
    %1232 = vmatpush.msra.mxu0 %v1135
    %1233 = vmatpush.msra.mxu0 %v1134
    %1234 = vmatpush.msra.mxu0 %v1133
    %1235 = vmatpush.msra.mxu0 %v1132
    %1236 = vmatmul.f32.gmra.mxu0 %v1218
    %v1237 = vpop.f32.mrf.mxu0
    %v1238 = vadd.f32 0.0, %v1237
    %1239 = vdwg.mxu0
    %v1240 = vadd.f32 %v1217, %v1238
    %v1241 = vxor.u32 %v1240, 2147483648
    %v1242 = vmul.f32 %v1241, 1.442695
    %v1243 = vpow.pop %v1242
    %v1244 = vadd.f32 %v1243, 1.0
    %v1245 = vrcp.pop %v1244
    %v1246 = vmul.f32 %v1244, %v1245
    %v1247 = vsub.f32 1.0, %v1246
    %v1248 = vmul.f32 %v1245, %v1247
    %v1249 = vadd.f32 %v1245, %v1248
    %vm1250 = vweird.f32 %v1244
    %vm1251 = vweird.f32 %v1245
    %vm1252 = vmor %vm1250, %vm1251
    %v1253 = vsel %vm1252, %v1245, %v1249
    %v1254 = vand.u32 2147483647, %v1244
    %vm1255 = vcmp.eq.f32.partialorder %v1254, 8.507059e+37
    %v1256 = vand.u32 %v1244, 2147483648
    %v1257 = vor.u32 1.1754944e-38, %v1256
    %v1258 = vsel %vm1255, %v1257, %v1253
    %v1259 = vmul.f32 1.0, %v1258
    %v1260 = vadd.f32 %v1238, %v1183
    %1262 = vrot.lane.b32.xlu0 %v1260, 64
    %v1263 = vpop.permute.xlu0 %1262
    %v1265 = vmul.f32 %v1259, %v1263
    %1267 = vrot.lane.b32.xlu0 %v1265, 64
    %v1268 = vpop.permute.xlu0 %1267
    %v1270 = vadd.f32 %v1217, %v1268
    %v1271 = vtanh.pop %v1270
    %v1272 = vsub.f32 1.0, %v1259
    %1274 = vrot.lane.b32.xlu0 %v1271, 96
    %v1275 = vpop.permute.xlu0 %1274
    %v1277 = vmul.f32 %v1272, %v1275
    %v1278 = vmul.f32 %v1259, %v1204
    %v1279 = vadd.f32 %v1277, %v1278
    %1281 = vrot.lane.b32.xlu0 %v1279, 96
    %v1282 = vpop.permute.xlu0 %1281
    %s1284 = scalar_lea.vmem [#allocation5], 4
    %1285 = vst.msk [vmem:[%s1284] sm:$0xf] %vm407, %v1282
    %1286 = vrot.lane.b32.xlu0 %v1279, 80
    %v1287 = vpop.permute.xlu0 %1286
    %s1289 = scalar_lea.vmem [#allocation6], 24
    %1290 = vst.msk [vmem:[%s1289] sm:$0xf] %vm407, %v1287
    %v1291 = vld [vmem:[%s492] sm:$0xf]
    %v1292 = vld [vmem:[%s494] sm:$0xf]
    %v1293 = vsel %vm203, %v1291, %v1292
    %v1294 = vsel %vm334, %v1282, 0
    %1296 = vmatpush.msra.mxu0 0.0
    %1297 = vmatpush.msra.mxu0 0.0
    %1298 = vmatpush.msra.mxu0 0.0
    %1299 = vmatpush.msra.mxu0 0.0
    %1300 = vmatpush.msra.mxu0 0.0
    %1301 = vmatpush.msra.mxu0 0.0
    %1302 = vmatpush.msra.mxu0 0.0
    %1303 = vmatpush.msra.mxu0 0.0
    %1304 = vmatpush.msra.mxu0 0.0
    %1305 = vmatpush.msra.mxu0 0.0
    %1306 = vmatpush.msra.mxu0 0.0
    %1307 = vmatpush.msra.mxu0 0.0
    %1308 = vmatpush.msra.mxu0 %v1135
    %1309 = vmatpush.msra.mxu0 %v1134
    %1310 = vmatpush.msra.mxu0 %v1133
    %1311 = vmatpush.msra.mxu0 %v1132
    %1312 = vmatmul.f32.gmra.mxu0 %v1294
    %v1313 = vpop.f32.mrf.mxu0
    %v1314 = vadd.f32 0.0, %v1313
    %1315 = vdwg.mxu0
    %v1316 = vadd.f32 %v1293, %v1314
    %v1317 = vxor.u32 %v1316, 2147483648
    %v1318 = vmul.f32 %v1317, 1.442695
    %v1319 = vpow.pop %v1318
    %v1320 = vadd.f32 %v1319, 1.0
    %v1321 = vrcp.pop %v1320
    %v1322 = vmul.f32 %v1320, %v1321
    %v1323 = vsub.f32 1.0, %v1322
    %v1324 = vmul.f32 %v1321, %v1323
    %v1325 = vadd.f32 %v1321, %v1324
    %vm1326 = vweird.f32 %v1320
    %vm1327 = vweird.f32 %v1321
    %vm1328 = vmor %vm1326, %vm1327
    %v1329 = vsel %vm1328, %v1321, %v1325
    %v1330 = vand.u32 2147483647, %v1320
    %vm1331 = vcmp.eq.f32.partialorder %v1330, 8.507059e+37
    %v1332 = vand.u32 %v1320, 2147483648
    %v1333 = vor.u32 1.1754944e-38, %v1332
    %v1334 = vsel %vm1331, %v1333, %v1329
    %v1335 = vmul.f32 1.0, %v1334
    %v1336 = vadd.f32 %v1314, %v1183
    %1338 = vrot.lane.b32.xlu0 %v1336, 64
    %v1339 = vpop.permute.xlu0 %1338
    %v1341 = vmul.f32 %v1335, %v1339
    %1343 = vrot.lane.b32.xlu0 %v1341, 64
    %v1344 = vpop.permute.xlu0 %1343
    %v1346 = vadd.f32 %v1293, %v1344
    %v1347 = vtanh.pop %v1346
    %v1348 = vsub.f32 1.0, %v1335
    %1350 = vrot.lane.b32.xlu0 %v1347, 96
    %v1351 = vpop.permute.xlu0 %1350
    %v1353 = vmul.f32 %v1348, %v1351
    %v1354 = vmul.f32 %v1335, %v1279
    %v1355 = vadd.f32 %v1353, %v1354
    %1357 = vrot.lane.b32.xlu0 %v1355, 96
    %v1358 = vpop.permute.xlu0 %1357
    %s1360 = scalar_lea.vmem [#allocation5], 8
    %1361 = vst.msk [vmem:[%s1360] sm:$0xf] %vm407, %v1358
    %1362 = vrot.lane.b32.xlu0 %v1355, 80
    %v1363 = vpop.permute.xlu0 %1362
    %s1365 = scalar_lea.vmem [#allocation6], 20
    %1366 = vst.msk [vmem:[%s1365] sm:$0xf] %vm407, %v1363
    %v1367 = vld [vmem:[%s570] sm:$0xf]
    %v1368 = vld [vmem:[%s572] sm:$0xf]
    %v1369 = vsel %vm203, %v1367, %v1368
    %v1370 = vsel %vm334, %v1358, 0
    %1372 = vmatpush.msra.mxu0 0.0
    %1373 = vmatpush.msra.mxu0 0.0
    %1374 = vmatpush.msra.mxu0 0.0
    %1375 = vmatpush.msra.mxu0 0.0
    %1376 = vmatpush.msra.mxu0 0.0
    %1377 = vmatpush.msra.mxu0 0.0
    %1378 = vmatpush.msra.mxu0 0.0
    %1379 = vmatpush.msra.mxu0 0.0
    %1380 = vmatpush.msra.mxu0 0.0
    %1381 = vmatpush.msra.mxu0 0.0
    %1382 = vmatpush.msra.mxu0 0.0
    %1383 = vmatpush.msra.mxu0 0.0
    %1384 = vmatpush.msra.mxu0 %v1135
    %1385 = vmatpush.msra.mxu0 %v1134
    %1386 = vmatpush.msra.mxu0 %v1133
    %1387 = vmatpush.msra.mxu0 %v1132
    %1388 = vmatmul.f32.gmra.mxu0 %v1370
    %v1389 = vpop.f32.mrf.mxu0
    %v1390 = vadd.f32 0.0, %v1389
    %1391 = vdwg.mxu0
    %v1392 = vadd.f32 %v1369, %v1390
    %v1393 = vxor.u32 %v1392, 2147483648
    %v1394 = vmul.f32 %v1393, 1.442695
    %v1395 = vpow.pop %v1394
    %v1396 = vadd.f32 %v1395, 1.0
    %v1397 = vrcp.pop %v1396
    %v1398 = vmul.f32 %v1396, %v1397
    %v1399 = vsub.f32 1.0, %v1398
    %v1400 = vmul.f32 %v1397, %v1399
    %v1401 = vadd.f32 %v1397, %v1400
    %vm1402 = vweird.f32 %v1396
    %vm1403 = vweird.f32 %v1397
    %vm1404 = vmor %vm1402, %vm1403
    %v1405 = vsel %vm1404, %v1397, %v1401
    %v1406 = vand.u32 2147483647, %v1396
    %vm1407 = vcmp.eq.f32.partialorder %v1406, 8.507059e+37
    %v1408 = vand.u32 %v1396, 2147483648
    %v1409 = vor.u32 1.1754944e-38, %v1408
    %v1410 = vsel %vm1407, %v1409, %v1405
    %v1411 = vmul.f32 1.0, %v1410
    %v1412 = vadd.f32 %v1390, %v1183
    %1414 = vrot.lane.b32.xlu0 %v1412, 64
    %v1415 = vpop.permute.xlu0 %1414
    %v1417 = vmul.f32 %v1411, %v1415
    %1419 = vrot.lane.b32.xlu0 %v1417, 64
    %v1420 = vpop.permute.xlu0 %1419
    %v1422 = vadd.f32 %v1369, %v1420
    %v1423 = vtanh.pop %v1422
    %v1424 = vsub.f32 1.0, %v1411
    %1426 = vrot.lane.b32.xlu0 %v1423, 96
    %v1427 = vpop.permute.xlu0 %1426
    %v1429 = vmul.f32 %v1424, %v1427
    %v1430 = vmul.f32 %v1411, %v1355
    %v1431 = vadd.f32 %v1429, %v1430
    %1433 = vrot.lane.b32.xlu0 %v1431, 96
    %v1434 = vpop.permute.xlu0 %1433
    %s1436 = scalar_lea.vmem [#allocation5], 12
    %1437 = vst.msk [vmem:[%s1436] sm:$0xf] %vm407, %v1434
    %1438 = vrot.lane.b32.xlu0 %v1431, 80
    %v1439 = vpop.permute.xlu0 %1438
    %s1441 = scalar_lea.vmem [#allocation6], 16
    %1442 = vst.msk [vmem:[%s1441] sm:$0xf] %vm407, %v1439
    %v1443 = vld [vmem:[%s572] sm:$0xf]
    %v1444 = vld [vmem:[%s570] sm:$0xf]
    %v1445 = vsel %vm203, %v1443, %v1444
    %v1446 = vsel %vm334, %v1434, 0
    %1448 = vmatpush.msra.mxu0 0.0
    %1449 = vmatpush.msra.mxu0 0.0
    %1450 = vmatpush.msra.mxu0 0.0
    %1451 = vmatpush.msra.mxu0 0.0
    %1452 = vmatpush.msra.mxu0 0.0
    %1453 = vmatpush.msra.mxu0 0.0
    %1454 = vmatpush.msra.mxu0 0.0
    %1455 = vmatpush.msra.mxu0 0.0
    %1456 = vmatpush.msra.mxu0 0.0
    %1457 = vmatpush.msra.mxu0 0.0
    %1458 = vmatpush.msra.mxu0 0.0
    %1459 = vmatpush.msra.mxu0 0.0
    %1460 = vmatpush.msra.mxu0 %v1135
    %1461 = vmatpush.msra.mxu0 %v1134
    %1462 = vmatpush.msra.mxu0 %v1133
    %1463 = vmatpush.msra.mxu0 %v1132
    %1464 = vmatmul.f32.gmra.mxu0 %v1446
    %v1465 = vpop.f32.mrf.mxu0
    %v1466 = vadd.f32 0.0, %v1465
    %1467 = vdwg.mxu0
    %v1468 = vadd.f32 %v1445, %v1466
    %v1469 = vxor.u32 %v1468, 2147483648
    %v1470 = vmul.f32 %v1469, 1.442695
    %v1471 = vpow.pop %v1470
    %v1472 = vadd.f32 %v1471, 1.0
    %v1473 = vrcp.pop %v1472
    %v1474 = vmul.f32 %v1472, %v1473
    %v1475 = vsub.f32 1.0, %v1474
    %v1476 = vmul.f32 %v1473, %v1475
    %v1477 = vadd.f32 %v1473, %v1476
    %vm1478 = vweird.f32 %v1472
    %vm1479 = vweird.f32 %v1473
    %vm1480 = vmor %vm1478, %vm1479
    %v1481 = vsel %vm1480, %v1473, %v1477
    %v1482 = vand.u32 2147483647, %v1472
    %vm1483 = vcmp.eq.f32.partialorder %v1482, 8.507059e+37
    %v1484 = vand.u32 %v1472, 2147483648
    %v1485 = vor.u32 1.1754944e-38, %v1484
    %v1486 = vsel %vm1483, %v1485, %v1481
    %v1487 = vmul.f32 1.0, %v1486
    %v1488 = vadd.f32 %v1466, %v1183
    %1490 = vrot.lane.b32.xlu0 %v1488, 64
    %v1491 = vpop.permute.xlu0 %1490
    %v1493 = vmul.f32 %v1487, %v1491
    %1495 = vrot.lane.b32.xlu0 %v1493, 64
    %v1496 = vpop.permute.xlu0 %1495
    %v1498 = vadd.f32 %v1445, %v1496
    %v1499 = vtanh.pop %v1498
    %v1500 = vsub.f32 1.0, %v1487
    %1502 = vrot.lane.b32.xlu0 %v1499, 96
    %v1503 = vpop.permute.xlu0 %1502
    %v1505 = vmul.f32 %v1500, %v1503
    %v1506 = vmul.f32 %v1487, %v1431
    %v1507 = vadd.f32 %v1505, %v1506
    %1509 = vrot.lane.b32.xlu0 %v1507, 96
    %v1510 = vpop.permute.xlu0 %1509
    %s1512 = scalar_lea.vmem [#allocation5], 16
    %1513 = vst.msk [vmem:[%s1512] sm:$0xf] %vm407, %v1510
    %1514 = vrot.lane.b32.xlu0 %v1507, 80
    %v1515 = vpop.permute.xlu0 %1514
    %s1517 = scalar_lea.vmem [#allocation6], 12
    %1518 = vst.msk [vmem:[%s1517] sm:$0xf] %vm407, %v1515
    %v1519 = vld [vmem:[%s494] sm:$0xf]
    %v1520 = vld [vmem:[%s492] sm:$0xf]
    %v1521 = vsel %vm203, %v1519, %v1520
    %v1522 = vsel %vm334, %v1510, 0
    %1524 = vmatpush.msra.mxu0 0.0
    %1525 = vmatpush.msra.mxu0 0.0
    %1526 = vmatpush.msra.mxu0 0.0
    %1527 = vmatpush.msra.mxu0 0.0
    %1528 = vmatpush.msra.mxu0 0.0
    %1529 = vmatpush.msra.mxu0 0.0
    %1530 = vmatpush.msra.mxu0 0.0
    %1531 = vmatpush.msra.mxu0 0.0
    %1532 = vmatpush.msra.mxu0 0.0
    %1533 = vmatpush.msra.mxu0 0.0
    %1534 = vmatpush.msra.mxu0 0.0
    %1535 = vmatpush.msra.mxu0 0.0
    %1536 = vmatpush.msra.mxu0 %v1135
    %1537 = vmatpush.msra.mxu0 %v1134
    %1538 = vmatpush.msra.mxu0 %v1133
    %1539 = vmatpush.msra.mxu0 %v1132
    %1540 = vmatmul.f32.gmra.mxu0 %v1522
    %v1541 = vpop.f32.mrf.mxu0
    %v1542 = vadd.f32 0.0, %v1541
    %1543 = vdwg.mxu0
    %v1544 = vadd.f32 %v1521, %v1542
    %v1545 = vxor.u32 %v1544, 2147483648
    %v1546 = vmul.f32 %v1545, 1.442695
    %v1547 = vpow.pop %v1546
    %v1548 = vadd.f32 %v1547, 1.0
    %v1549 = vrcp.pop %v1548
    %v1550 = vmul.f32 %v1548, %v1549
    %v1551 = vsub.f32 1.0, %v1550
    %v1552 = vmul.f32 %v1549, %v1551
    %v1553 = vadd.f32 %v1549, %v1552
    %vm1554 = vweird.f32 %v1548
    %vm1555 = vweird.f32 %v1549
    %vm1556 = vmor %vm1554, %vm1555
    %v1557 = vsel %vm1556, %v1549, %v1553
    %v1558 = vand.u32 2147483647, %v1548
    %vm1559 = vcmp.eq.f32.partialorder %v1558, 8.507059e+37
    %v1560 = vand.u32 %v1548, 2147483648
    %v1561 = vor.u32 1.1754944e-38, %v1560
    %v1562 = vsel %vm1559, %v1561, %v1557
    %v1563 = vmul.f32 1.0, %v1562
    %v1564 = vadd.f32 %v1542, %v1183
    %1566 = vrot.lane.b32.xlu0 %v1564, 64
    %v1567 = vpop.permute.xlu0 %1566
    %v1569 = vmul.f32 %v1563, %v1567
    %1571 = vrot.lane.b32.xlu0 %v1569, 64
    %v1572 = vpop.permute.xlu0 %1571
    %v1574 = vadd.f32 %v1521, %v1572
    %v1575 = vtanh.pop %v1574
    %v1576 = vsub.f32 1.0, %v1563
    %1578 = vrot.lane.b32.xlu0 %v1575, 96
    %v1579 = vpop.permute.xlu0 %1578
    %v1581 = vmul.f32 %v1576, %v1579
    %v1582 = vmul.f32 %v1563, %v1507
    %v1583 = vadd.f32 %v1581, %v1582
    %1585 = vrot.lane.b32.xlu0 %v1583, 96
    %v1586 = vpop.permute.xlu0 %1585
    %s1588 = scalar_lea.vmem [#allocation5], 20
    %1589 = vst.msk [vmem:[%s1588] sm:$0xf] %vm407, %v1586
    %1590 = vrot.lane.b32.xlu0 %v1583, 80
    %v1591 = vpop.permute.xlu0 %1590
    %s1593 = scalar_lea.vmem [#allocation6], 8
    %1594 = vst.msk [vmem:[%s1593] sm:$0xf] %vm407, %v1591
    %v1595 = vld [vmem:[%s416] sm:$0xf]
    %v1596 = vld [vmem:[%s414] sm:$0xf]
    %v1597 = vsel %vm203, %v1595, %v1596
    %v1598 = vsel %vm334, %v1586, 0
    %1600 = vmatpush.msra.mxu0 0.0
    %1601 = vmatpush.msra.mxu0 0.0
    %1602 = vmatpush.msra.mxu0 0.0
    %1603 = vmatpush.msra.mxu0 0.0
    %1604 = vmatpush.msra.mxu0 0.0
    %1605 = vmatpush.msra.mxu0 0.0
    %1606 = vmatpush.msra.mxu0 0.0
    %1607 = vmatpush.msra.mxu0 0.0
    %1608 = vmatpush.msra.mxu0 0.0
    %1609 = vmatpush.msra.mxu0 0.0
    %1610 = vmatpush.msra.mxu0 0.0
    %1611 = vmatpush.msra.mxu0 0.0
    %1612 = vmatpush.msra.mxu0 %v1135
    %1613 = vmatpush.msra.mxu0 %v1134
    %1614 = vmatpush.msra.mxu0 %v1133
    %1615 = vmatpush.msra.mxu0 %v1132
    %1616 = vmatmul.f32.gmra.mxu0 %v1598
    %v1617 = vpop.f32.mrf.mxu0
    %v1618 = vadd.f32 0.0, %v1617
    %1619 = vdwg.mxu0
    %v1620 = vadd.f32 %v1597, %v1618
    %v1621 = vxor.u32 %v1620, 2147483648
    %v1622 = vmul.f32 %v1621, 1.442695
    %v1623 = vpow.pop %v1622
    %v1624 = vadd.f32 %v1623, 1.0
    %v1625 = vrcp.pop %v1624
    %v1626 = vmul.f32 %v1624, %v1625
    %v1627 = vsub.f32 1.0, %v1626
    %v1628 = vmul.f32 %v1625, %v1627
    %v1629 = vadd.f32 %v1625, %v1628
    %vm1630 = vweird.f32 %v1624
    %vm1631 = vweird.f32 %v1625
    %vm1632 = vmor %vm1630, %vm1631
    %v1633 = vsel %vm1632, %v1625, %v1629
    %v1634 = vand.u32 2147483647, %v1624
    %vm1635 = vcmp.eq.f32.partialorder %v1634, 8.507059e+37
    %v1636 = vand.u32 %v1624, 2147483648
    %v1637 = vor.u32 1.1754944e-38, %v1636
    %v1638 = vsel %vm1635, %v1637, %v1633
    %v1639 = vmul.f32 1.0, %v1638
    %v1640 = vadd.f32 %v1618, %v1183
    %1642 = vrot.lane.b32.xlu0 %v1640, 64
    %v1643 = vpop.permute.xlu0 %1642
    %v1645 = vmul.f32 %v1639, %v1643
    %1647 = vrot.lane.b32.xlu0 %v1645, 64
    %v1648 = vpop.permute.xlu0 %1647
    %v1650 = vadd.f32 %v1597, %v1648
    %v1651 = vtanh.pop %v1650
    %v1652 = vsub.f32 1.0, %v1639
    %1654 = vrot.lane.b32.xlu0 %v1651, 96
    %v1655 = vpop.permute.xlu0 %1654
    %v1657 = vmul.f32 %v1652, %v1655
    %v1658 = vmul.f32 %v1639, %v1583
    %v1659 = vadd.f32 %v1657, %v1658
    %1661 = vrot.lane.b32.xlu0 %v1659, 96
    %v1662 = vpop.permute.xlu0 %1661
    %s1664 = scalar_lea.vmem [#allocation5], 24
    %1665 = vst.msk [vmem:[%s1664] sm:$0xf] %vm407, %v1662
    %1666 = vrot.lane.b32.xlu0 %v1659, 80
    %v1667 = vpop.permute.xlu0 %1666
    %s1669 = scalar_lea.vmem [#allocation6], 4
    %1670 = vst.msk [vmem:[%s1669] sm:$0xf] %vm407, %v1667
    %v1671 = vld [vmem:[%s331] sm:$0xf]
    %v1672 = vld [vmem:[#allocation2] sm:$0xf]
    %v1673 = vsel %vm203, %v1671, %v1672
    %v1674 = vsel %vm334, %v1662, 0
    %1676 = vmatpush.msra.mxu0 0.0
    %1677 = vmatpush.msra.mxu0 0.0
    %1678 = vmatpush.msra.mxu0 0.0
    %1679 = vmatpush.msra.mxu0 0.0
    %1680 = vmatpush.msra.mxu0 0.0
    %1681 = vmatpush.msra.mxu0 0.0
    %1682 = vmatpush.msra.mxu0 0.0
    %1683 = vmatpush.msra.mxu0 0.0
    %1684 = vmatpush.msra.mxu0 0.0
    %1685 = vmatpush.msra.mxu0 0.0
    %1686 = vmatpush.msra.mxu0 0.0
    %1687 = vmatpush.msra.mxu0 0.0
    %1688 = vmatpush.msra.mxu0 %v1135
    %1689 = vmatpush.msra.mxu0 %v1134
    %1690 = vmatpush.msra.mxu0 %v1133
    %1691 = vmatpush.msra.mxu0 %v1132
    %1692 = vmatmul.f32.gmra.mxu0 %v1674
    %v1693 = vpop.f32.mrf.mxu0
    %v1694 = vadd.f32 0.0, %v1693
    %1695 = vdwg.mxu0
    %v1696 = vadd.f32 %v1673, %v1694
    %v1697 = vxor.u32 %v1696, 2147483648
    %v1698 = vmul.f32 %v1697, 1.442695
    %v1699 = vpow.pop %v1698
    %v1700 = vadd.f32 %v1699, 1.0
    %v1701 = vrcp.pop %v1700
    %v1702 = vmul.f32 %v1700, %v1701
    %v1703 = vsub.f32 1.0, %v1702
    %v1704 = vmul.f32 %v1701, %v1703
    %v1705 = vadd.f32 %v1701, %v1704
    %vm1706 = vweird.f32 %v1700
    %vm1707 = vweird.f32 %v1701
    %vm1708 = vmor %vm1706, %vm1707
    %v1709 = vsel %vm1708, %v1701, %v1705
    %v1710 = vand.u32 2147483647, %v1700
    %vm1711 = vcmp.eq.f32.partialorder %v1710, 8.507059e+37
    %v1712 = vand.u32 %v1700, 2147483648
    %v1713 = vor.u32 1.1754944e-38, %v1712
    %v1714 = vsel %vm1711, %v1713, %v1709
    %v1715 = vmul.f32 1.0, %v1714
    %v1716 = vadd.f32 %v1694, %v1183
    %1718 = vrot.lane.b32.xlu0 %v1716, 64
    %v1719 = vpop.permute.xlu0 %1718
    %v1721 = vmul.f32 %v1715, %v1719
    %1723 = vrot.lane.b32.xlu0 %v1721, 64
    %v1724 = vpop.permute.xlu0 %1723
    %v1726 = vadd.f32 %v1673, %v1724
    %v1727 = vtanh.pop %v1726
    %v1728 = vsub.f32 1.0, %v1715
    %1730 = vrot.lane.b32.xlu0 %v1727, 96
    %v1731 = vpop.permute.xlu0 %1730
    %v1733 = vmul.f32 %v1728, %v1731
    %v1734 = vmul.f32 %v1715, %v1659
    %v1735 = vadd.f32 %v1733, %v1734
    %1737 = vrot.lane.b32.xlu0 %v1735, 96
    %v1738 = vpop.permute.xlu0 %1737
    %s1740 = scalar_lea.vmem [#allocation5], 28
    %1741 = vst.msk [vmem:[%s1740] sm:$0xf] %vm407, %v1738
    %1742 = vrot.lane.b32.xlu0 %v1735, 80
    %v1743 = vpop.permute.xlu0 %1742
    %1745 = vst.msk [vmem:[#allocation6] sm:$0xf] %vm407, %v1743
    %v1746 = vld [vmem:[#allocation5] sm:$0xf]
    %v1747 = vld [vmem:[#allocation5 + $0x4] sm:$0xf]
    %v1748 = vld [vmem:[#allocation5 + $0x8] sm:$0xf]
    %v1749 = vld [vmem:[#allocation5 + $0xc] sm:$0xf]
    %v1750 = vld [vmem:[#allocation5 + $0x10] sm:$0xf]
    %v1751 = vld [vmem:[#allocation5 + $0x14] sm:$0xf]
    %v1752 = vld [vmem:[#allocation5 + $0x18] sm:$0xf]
    %v1753 = vld [vmem:[#allocation5 + $0x1c] sm:$0xf]
    %v1754 = vld [vmem:[#allocation18] sm:$0xff]
    %v1755 = vld [vmem:[#allocation18 + $0x8] sm:$0xff]
    %v1756 = vld [vmem:[#allocation6] sm:$0xf]
    %v1757 = vld [vmem:[#allocation6 + $0x4] sm:$0xf]
    %v1758 = vld [vmem:[#allocation6 + $0x8] sm:$0xf]
    %v1759 = vld [vmem:[#allocation6 + $0xc] sm:$0xf]
    %v1760 = vld [vmem:[#allocation6 + $0x10] sm:$0xf]
    %v1761 = vld [vmem:[#allocation6 + $0x14] sm:$0xf]
    %v1762 = vld [vmem:[#allocation6 + $0x18] sm:$0xf]
    %v1763 = vld [vmem:[#allocation6 + $0x1c] sm:$0xf]
    %v1764 = vld [vmem:[#allocation19] sm:$0xff]
    %v1765 = vld [vmem:[#allocation19 + $0x8] sm:$0xff]
    %1774 = vst [vmem:[#allocation1] ss:$2 sm:$0xff] %v1756
    %s1775 = scalar_lea.vmem [#allocation1], 1
    %1776 = vst [vmem:[%s1775] ss:$2 sm:$0xff] %v1757
    %s1777 = scalar_lea.vmem [#allocation1], 16
    %1778 = vst [vmem:[%s1777] ss:$2 sm:$0xff] %v1758
    %s1779 = scalar_lea.vmem [#allocation1], 17
    %1780 = vst [vmem:[%s1779] ss:$2 sm:$0xff] %v1759
    %s1781 = scalar_lea.vmem [#allocation1], 32
    %1782 = vst [vmem:[%s1781] ss:$2 sm:$0xff] %v1760
    %s1783 = scalar_lea.vmem [#allocation1], 33
    %1784 = vst [vmem:[%s1783] ss:$2 sm:$0xff] %v1761
    %s1785 = scalar_lea.vmem [#allocation1], 48
    %1786 = vst [vmem:[%s1785] ss:$2 sm:$0xff] %v1762
    %s1787 = scalar_lea.vmem [#allocation1], 49
    %1788 = vst [vmem:[%s1787] ss:$2 sm:$0xff] %v1763
    %v1789 = vld.sshfl [vmem:[#allocation1] sm:$0xff pattern:$0x75316420]
    %v1790 = vld.sshfl [vmem:[#allocation1 + $0x10] sm:$0xff pattern:$0x75316420]
    %v1791 = vld.sshfl [vmem:[#allocation1 + $0x20] sm:$0xff pattern:$0x75316420]
    %v1792 = vld.sshfl [vmem:[#allocation1 + $0x30] sm:$0xff pattern:$0x75316420]
    %v1793 = vsel %vm998, %v1789, 0
    %v1795 = vsel %vm998, %v1790, 0
    %v1797 = vsel %vm998, %v1791, 0
    %v1799 = vsel %vm998, %v1792, 0
    %1801 = vmatpush.msra.mxu0 0.0
    %1802 = vmatpush.msra.mxu0 0.0
    %1803 = vmatpush.msra.mxu0 0.0
    %1804 = vmatpush.msra.mxu0 0.0
    %1805 = vmatpush.msra.mxu0 0.0
    %1806 = vmatpush.msra.mxu0 0.0
    %1807 = vmatpush.msra.mxu0 0.0
    %1808 = vmatpush.msra.mxu0 0.0
    %1809 = vmatpush.msra.mxu0 0.0
    %1810 = vmatpush.msra.mxu0 0.0
    %1811 = vmatpush.msra.mxu0 0.0
    %1812 = vmatpush.msra.mxu0 0.0
    %1813 = vmatpush.msra.mxu0 0.0
    %1814 = vmatpush.msra.mxu0 0.0
    %1815 = vmatpush.msra.mxu0 %v1765
    %1816 = vmatpush.msra.mxu0 %v1764
    %1817 = vmatmul.f32.gmra.mxu0 %v1793
    %v1818 = vpop.f32.mrf.mxu0
    %v1819 = vadd.f32 0.0, %v1818
    %1820 = vmatmul.f32.gmra.mxu0 %v1795
    %v1821 = vpop.f32.mrf.mxu0
    %v1822 = vadd.f32 0.0, %v1821
    %1823 = vmatmul.f32.gmra.mxu0 %v1797
    %v1824 = vpop.f32.mrf.mxu0
    %v1825 = vadd.f32 0.0, %v1824
    %1826 = vmatmul.f32.gmra.mxu0 %v1799
    %v1827 = vpop.f32.mrf.mxu0
    %v1828 = vadd.f32 0.0, %v1827
    %1829 = vdwg.mxu0
    %1838 = vst [vmem:[#allocation1] ss:$2 sm:$0xff] %v1746
    %s1839 = scalar_lea.vmem [#allocation1], 1
    %1840 = vst [vmem:[%s1839] ss:$2 sm:$0xff] %v1747
    %s1841 = scalar_lea.vmem [#allocation1], 16
    %1842 = vst [vmem:[%s1841] ss:$2 sm:$0xff] %v1748
    %s1843 = scalar_lea.vmem [#allocation1], 17
    %1844 = vst [vmem:[%s1843] ss:$2 sm:$0xff] %v1749
    %s1845 = scalar_lea.vmem [#allocation1], 32
    %1846 = vst [vmem:[%s1845] ss:$2 sm:$0xff] %v1750
    %s1847 = scalar_lea.vmem [#allocation1], 33
    %1848 = vst [vmem:[%s1847] ss:$2 sm:$0xff] %v1751
    %s1849 = scalar_lea.vmem [#allocation1], 48
    %1850 = vst [vmem:[%s1849] ss:$2 sm:$0xff] %v1752
    %s1851 = scalar_lea.vmem [#allocation1], 49
    %1852 = vst [vmem:[%s1851] ss:$2 sm:$0xff] %v1753
    %v1853 = vld.sshfl [vmem:[#allocation1] sm:$0xff pattern:$0x75316420]
    %v1854 = vld.sshfl [vmem:[#allocation1 + $0x10] sm:$0xff pattern:$0x75316420]
    %v1855 = vld.sshfl [vmem:[#allocation1 + $0x20] sm:$0xff pattern:$0x75316420]
    %v1856 = vld.sshfl [vmem:[#allocation1 + $0x30] sm:$0xff pattern:$0x75316420]
    %v1857 = vsel %vm998, %v1853, 0
    %v1859 = vsel %vm998, %v1854, 0
    %v1861 = vsel %vm998, %v1855, 0
    %v1863 = vsel %vm998, %v1856, 0
    %1865 = vmatpush.msra.mxu0 0.0
    %1866 = vmatpush.msra.mxu0 0.0
    %1867 = vmatpush.msra.mxu0 0.0
    %1868 = vmatpush.msra.mxu0 0.0
    %1869 = vmatpush.msra.mxu0 0.0
    %1870 = vmatpush.msra.mxu0 0.0
    %1871 = vmatpush.msra.mxu0 0.0
    %1872 = vmatpush.msra.mxu0 0.0
    %1873 = vmatpush.msra.mxu0 0.0
    %1874 = vmatpush.msra.mxu0 0.0
    %1875 = vmatpush.msra.mxu0 0.0
    %1876 = vmatpush.msra.mxu0 0.0
    %1877 = vmatpush.msra.mxu0 0.0
    %1878 = vmatpush.msra.mxu0 0.0
    %1879 = vmatpush.msra.mxu0 %v1755
    %1880 = vmatpush.msra.mxu0 %v1754
    %1881 = vmatmul.f32.gmra.mxu0 %v1857
    %v1882 = vpop.f32.mrf.mxu0
    %v1883 = vadd.f32 %v1819, %v1882
    %1884 = vmatmul.f32.gmra.mxu0 %v1859
    %v1885 = vpop.f32.mrf.mxu0
    %v1886 = vadd.f32 %v1822, %v1885
    %1887 = vmatmul.f32.gmra.mxu0 %v1861
    %v1888 = vpop.f32.mrf.mxu0
    %v1889 = vadd.f32 %v1825, %v1888
    %1890 = vmatmul.f32.gmra.mxu0 %v1863
    %v1891 = vpop.f32.mrf.mxu0
    %v1892 = vadd.f32 %v1828, %v1891
    %1893 = vdwg.mxu0
    %v1898 = vrot.slane %v1883, 4
    %v1899 = vrot.slane %v1886, 4
    %v1900 = vrot.slane %v1889, 4
    %v1901 = vrot.slane %v1892, 4
    %v1906 = vld [vmem:[%s12] sm:$0x1]
    %v1908 = vperm.slane %v1906, 0
    %v1910 = vadd.f32 %v1883, %v1908
    %v1911 = vadd.f32 %v1898, %v1908
    %v1912 = vadd.f32 %v1886, %v1908
    %v1913 = vadd.f32 %v1899, %v1908
    %v1914 = vadd.f32 %v1889, %v1908
    %v1915 = vadd.f32 %v1900, %v1908
    %v1916 = vadd.f32 %v1892, %v1908
    %v1917 = vadd.f32 %v1901, %v1908
    %v1918 = vrot.slane %v1912, 4
    %vm1919 = vcmask 1047556
    %v1920 = vsel %vm1919, %v1918, %v1910
    %v1922 = vunpack.c.l.s4 1983009808
    %v1923 = vunpack.c.0.s8 %v1922
    %v1924 = vperm.slane %v1920, %v1923
    %v1925 = vrot.slane %v1913, 4
    %v1926 = vsel %vm1919, %v1925, %v1911
    %v1928 = vunpack.c.l.s4 1983009808
    %v1929 = vunpack.c.0.s8 %v1928
    %v1930 = vperm.slane %v1926, %v1929
    %v1931 = vrot.slane %v1930, 4
    %v1932 = vsel %vm1919, %v1931, %v1924
    %v1933 = vrot.slane %v1924, 4
    %v1934 = vsel %vm1919, %v1930, %v1933
    %v1936 = vunpack.c.l.s4 1934713408
    %v1937 = vunpack.c.0.s8 %v1936
    %v1938 = vperm.slane %v1932, %v1937
    %v1940 = vunpack.c.l.s4 1934713408
    %v1941 = vunpack.c.0.s8 %v1940
    %v1942 = vperm.slane %v1934, %v1941
    %v1943 = vrot.slane %v1938, 4
    %v1944 = vsel %vm1919, 0.0, %v1943
    %v1945 = vrot.slane %v1942, 4
    %v1946 = vsel %vm1919, 0.0, %v1945
    %v1947 = vrot.slane %v1916, 4
    %v1948 = vsel %vm1919, %v1947, %v1914
    %v1950 = vunpack.c.l.s4 1983009808
    %v1951 = vunpack.c.0.s8 %v1950
    %v1952 = vperm.slane %v1948, %v1951
    %v1953 = vrot.slane %v1917, 4
    %v1954 = vsel %vm1919, %v1953, %v1915
    %v1956 = vunpack.c.l.s4 1983009808
    %v1957 = vunpack.c.0.s8 %v1956
    %v1958 = vperm.slane %v1954, %v1957
    %v1959 = vrot.slane %v1958, 4
    %v1960 = vsel %vm1919, %v1959, %v1952
    %v1961 = vrot.slane %v1952, 4
    %v1962 = vsel %vm1919, %v1958, %v1961
    %v1964 = vunpack.c.l.s4 1934713408
    %v1965 = vunpack.c.0.s8 %v1964
    %v1966 = vperm.slane %v1960, %v1965
    %v1968 = vunpack.c.l.s4 1934713408
    %v1969 = vunpack.c.0.s8 %v1968
    %v1970 = vperm.slane %v1962, %v1969
    %v1971 = vrot.slane %v1966, 4
    %v1972 = vsel %vm1919, 0.0, %v1971
    %v1973 = vrot.slane %v1970, 4
    %v1974 = vsel %vm1919, 0.0, %v1973
    %1977 = vst [vmem:[#allocation1] ss:$2 sm:$0xff] %v1938
    %s1978 = scalar_lea.vmem [#allocation1], 1
    %1979 = vst [vmem:[%s1978] ss:$2 sm:$0xff] %v1966
    %v1980 = vld.sshfl [vmem:[#allocation1] sm:$0xff pattern:$0x75316420]
    %1981 = vst [vmem:[#allocation1] ss:$2 sm:$0xff] %v1938
    %s1982 = scalar_lea.vmem [#allocation1], 1
    %1983 = vst [vmem:[%s1982] ss:$2 sm:$0xff] %v1966
    %v1984 = vld.sshfl [vmem:[#allocation1] sm:$0xff pattern:$0x75316420]
    %1985 = vrot.lane.b32.xlu0 %v1984, 96
    %v1986 = vpop.permute.xlu0 %1985
    %v1987 = vsel %vm334, %v1980, 0
    %v1989 = vsel %vm334, %v1986, 0
    %1991 = vmatpush.xpose.msra.mxu0 0.0
    %1992 = vmatpush.xpose.msra.mxu0 0.0
    %1993 = vmatpush.xpose.msra.mxu0 0.0
    %1994 = vmatpush.xpose.msra.mxu0 0.0
    %1995 = vmatpush.xpose.msra.mxu0 0.0
    %1996 = vmatpush.xpose.msra.mxu0 0.0
    %1997 = vmatpush.xpose.msra.mxu0 0.0
    %1998 = vmatpush.xpose.msra.mxu0 0.0
    %1999 = vmatpush.xpose.msra.mxu0 0.0
    %2000 = vmatpush.xpose.msra.mxu0 0.0
    %2001 = vmatpush.xpose.msra.mxu0 0.0
    %2002 = vmatpush.xpose.msra.mxu0 0.0
    %2003 = vmatpush.xpose.msra.mxu0 0.0
    %2004 = vmatpush.xpose.msra.mxu0 0.0
    %2005 = vmatpush.xpose.msra.mxu0 0.0
    %2006 = vmatpush.xpose.msra.mxu0 %v1989
    %2007 = vmatmul.f32.gmra.mxu0 %v1987
    %v2008 = vpop.f32.mrf.mxu0
    %v2009 = vadd.f32 0.0, %v2008
    %2010 = vdwg.mxu0
    %2013 = vst [vmem:[#allocation1] ss:$2 sm:$0xff] %v1944
    %s2014 = scalar_lea.vmem [#allocation1], 1
    %2015 = vst [vmem:[%s2014] ss:$2 sm:$0xff] %v1972
    %v2016 = vld.sshfl [vmem:[#allocation1] sm:$0xff pattern:$0x75316420]
    %2017 = vst [vmem:[#allocation1] ss:$2 sm:$0xff] %v1944
    %s2018 = scalar_lea.vmem [#allocation1], 1
    %2019 = vst [vmem:[%s2018] ss:$2 sm:$0xff] %v1972
    %v2020 = vld.sshfl [vmem:[#allocation1] sm:$0xff pattern:$0x75316420]
    %2021 = vrot.lane.b32.xlu0 %v2020, 96
    %v2022 = vpop.permute.xlu0 %2021
    %v2023 = vsel %vm334, %v2016, 0
    %v2025 = vsel %vm334, %v2022, 0
    %2027 = vmatpush.xpose.msra.mxu0 0.0
    %2028 = vmatpush.xpose.msra.mxu0 0.0
    %2029 = vmatpush.xpose.msra.mxu0 0.0
    %2030 = vmatpush.xpose.msra.mxu0 0.0
    %2031 = vmatpush.xpose.msra.mxu0 0.0
    %2032 = vmatpush.xpose.msra.mxu0 0.0
    %2033 = vmatpush.xpose.msra.mxu0 0.0
    %2034 = vmatpush.xpose.msra.mxu0 0.0
    %2035 = vmatpush.xpose.msra.mxu0 0.0
    %2036 = vmatpush.xpose.msra.mxu0 0.0
    %2037 = vmatpush.xpose.msra.mxu0 0.0
    %2038 = vmatpush.xpose.msra.mxu0 0.0
    %2039 = vmatpush.xpose.msra.mxu0 0.0
    %2040 = vmatpush.xpose.msra.mxu0 0.0
    %2041 = vmatpush.xpose.msra.mxu0 0.0
    %2042 = vmatpush.xpose.msra.mxu0 %v2025
    %2043 = vmatmul.f32.gmra.mxu0 %v2023
    %v2044 = vpop.f32.mrf.mxu0
    %v2045 = vadd.f32 0.0, %v2044
    %2046 = vdwg.mxu0
    %2049 = vst [vmem:[#allocation1] ss:$2 sm:$0xff] %v1942
    %s2050 = scalar_lea.vmem [#allocation1], 1
    %2051 = vst [vmem:[%s2050] ss:$2 sm:$0xff] %v1970
    %v2052 = vld.sshfl [vmem:[#allocation1] sm:$0xff pattern:$0x75316420]
    %2053 = vst [vmem:[#allocation1] ss:$2 sm:$0xff] %v1942
    %s2054 = scalar_lea.vmem [#allocation1], 1
    %2055 = vst [vmem:[%s2054] ss:$2 sm:$0xff] %v1970
    %v2056 = vld.sshfl [vmem:[#allocation1] sm:$0xff pattern:$0x75316420]
    %2057 = vrot.lane.b32.xlu0 %v2056, 96
    %v2058 = vpop.permute.xlu0 %2057
    %v2059 = vsel %vm334, %v2052, 0
    %v2061 = vsel %vm334, %v2058, 0
    %2063 = vmatpush.xpose.msra.mxu0 0.0
    %2064 = vmatpush.xpose.msra.mxu0 0.0
    %2065 = vmatpush.xpose.msra.mxu0 0.0
    %2066 = vmatpush.xpose.msra.mxu0 0.0
    %2067 = vmatpush.xpose.msra.mxu0 0.0
    %2068 = vmatpush.xpose.msra.mxu0 0.0
    %2069 = vmatpush.xpose.msra.mxu0 0.0
    %2070 = vmatpush.xpose.msra.mxu0 0.0
    %2071 = vmatpush.xpose.msra.mxu0 0.0
    %2072 = vmatpush.xpose.msra.mxu0 0.0
    %2073 = vmatpush.xpose.msra.mxu0 0.0
    %2074 = vmatpush.xpose.msra.mxu0 0.0
    %2075 = vmatpush.xpose.msra.mxu0 0.0
    %2076 = vmatpush.xpose.msra.mxu0 0.0
    %2077 = vmatpush.xpose.msra.mxu0 0.0
    %2078 = vmatpush.xpose.msra.mxu0 %v2061
    %2079 = vmatmul.f32.gmra.mxu0 %v2059
    %v2080 = vpop.f32.mrf.mxu0
    %v2081 = vadd.f32 0.0, %v2080
    %2082 = vdwg.mxu0
    %2085 = vst [vmem:[#allocation1] ss:$2 sm:$0xff] %v1946
    %s2086 = scalar_lea.vmem [#allocation1], 1
    %2087 = vst [vmem:[%s2086] ss:$2 sm:$0xff] %v1974
    %v2088 = vld.sshfl [vmem:[#allocation1] sm:$0xff pattern:$0x75316420]
    %2089 = vst [vmem:[#allocation1] ss:$2 sm:$0xff] %v1946
    %s2090 = scalar_lea.vmem [#allocation1], 1
    %2091 = vst [vmem:[%s2090] ss:$2 sm:$0xff] %v1974
    %v2092 = vld.sshfl [vmem:[#allocation1] sm:$0xff pattern:$0x75316420]
    %2093 = vrot.lane.b32.xlu0 %v2092, 96
    %v2094 = vpop.permute.xlu0 %2093
    %v2095 = vsel %vm334, %v2088, 0
    %v2097 = vsel %vm334, %v2094, 0
    %2099 = vmatpush.xpose.msra.mxu0 0.0
    %2100 = vmatpush.xpose.msra.mxu0 0.0
    %2101 = vmatpush.xpose.msra.mxu0 0.0
    %2102 = vmatpush.xpose.msra.mxu0 0.0
    %2103 = vmatpush.xpose.msra.mxu0 0.0
    %2104 = vmatpush.xpose.msra.mxu0 0.0
    %2105 = vmatpush.xpose.msra.mxu0 0.0
    %2106 = vmatpush.xpose.msra.mxu0 0.0
    %2107 = vmatpush.xpose.msra.mxu0 0.0
    %2108 = vmatpush.xpose.msra.mxu0 0.0
    %2109 = vmatpush.xpose.msra.mxu0 0.0
    %2110 = vmatpush.xpose.msra.mxu0 0.0
    %2111 = vmatpush.xpose.msra.mxu0 0.0
    %2112 = vmatpush.xpose.msra.mxu0 0.0
    %2113 = vmatpush.xpose.msra.mxu0 0.0
    %2114 = vmatpush.xpose.msra.mxu0 %v2097
    %2115 = vmatmul.f32.gmra.mxu0 %v2095
    %v2116 = vpop.f32.mrf.mxu0
    %v2117 = vadd.f32 0.0, %v2116
    %2118 = vdwg.mxu0
    %v2119 = vmul.f32 %v2009, 0.17677669
    %v2120 = vmul.f32 %v2045, 0.17677669
    %v2121 = vmul.f32 %v2081, 0.17677669
    %v2122 = vmul.f32 %v2117, 0.17677669
    %v2123 = vsel %vm266, %v2119, -inf
    %2124 = vmax.xlane.f32.xlu0 %v2123
    %v2125 = vpop.xlane.xlu0 %2124
    %v2126 = vsel %vm266, %v2120, -inf
    %2127 = vmax.xlane.f32.xlu0 %v2126
    %v2128 = vpop.xlane.xlu0 %2127
    %v2129 = vsel %vm266, %v2121, -inf
    %2130 = vmax.xlane.f32.xlu0 %v2129
    %v2131 = vpop.xlane.xlu0 %2130
    %v2132 = vsel %vm266, %v2122, -inf
    %2133 = vmax.xlane.f32.xlu0 %v2132
    %v2134 = vpop.xlane.xlu0 %2133
    %v2135 = vsub.f32 %v2119, %v2125
    %v2136 = vsub.f32 %v2120, %v2128
    %v2137 = vsub.f32 %v2121, %v2131
    %v2138 = vsub.f32 %v2122, %v2134
    %v2139 = vmul.f32 %v2135, 1.442695
    %v2140 = vpow.pop %v2139
    %v2141 = vmul.f32 %v2136, 1.442695
    %v2142 = vpow.pop %v2141
    %v2143 = vmul.f32 %v2137, 1.442695
    %v2144 = vpow.pop %v2143
    %v2145 = vmul.f32 %v2138, 1.442695
    %v2146 = vpow.pop %v2145
    %v2147 = vsel %vm266, %v2140, 0.0
    %2148 = vadd.xlane.f32.xlu0 %v2147
    %v2149 = vpop.xlane.xlu0 %2148
    %v2150 = vsel %vm266, %v2142, 0.0
    %2151 = vadd.xlane.f32.xlu0 %v2150
    %v2152 = vpop.xlane.xlu0 %2151
    %v2153 = vsel %vm266, %v2144, 0.0
    %2154 = vadd.xlane.f32.xlu0 %v2153
    %v2155 = vpop.xlane.xlu0 %2154
    %v2156 = vsel %vm266, %v2146, 0.0
    %2157 = vadd.xlane.f32.xlu0 %v2156
    %v2158 = vpop.xlane.xlu0 %2157
    %v2159 = vrcp.pop %v2149
    %v2160 = vrcp.pop %v2152
    %v2161 = vrcp.pop %v2155
    %v2162 = vrcp.pop %v2158
    %v2163 = vmul.f32 %v2140, %v2159
    %v2164 = vmul.f32 %v2142, %v2160
    %v2165 = vmul.f32 %v2144, %v2161
    %v2166 = vmul.f32 %v2146, %v2162
    %v2167 = vsel %vm266, %v2163, 0.0
    %v2168 = vrot.slane %v2167, 4
    %v2169 = vadd.f32 %v2167, %v2168
    %v2170 = vrot.slane %v2169, 2
    %v2171 = vadd.f32 %v2169, %v2170
    %v2172 = vrot.slane %v2171, 1
    %v2173 = vadd.f32 %v2171, %v2172
    %v2174 = vsel %vm266, %v2164, 0.0
    %v2175 = vrot.slane %v2174, 4
    %v2176 = vadd.f32 %v2174, %v2175
    %v2177 = vrot.slane %v2176, 2
    %v2178 = vadd.f32 %v2176, %v2177
    %v2179 = vrot.slane %v2178, 1
    %v2180 = vadd.f32 %v2178, %v2179
    %v2181 = vsel %vm266, %v2165, 0.0
    %v2182 = vrot.slane %v2181, 4
    %v2183 = vadd.f32 %v2181, %v2182
    %v2184 = vrot.slane %v2183, 2
    %v2185 = vadd.f32 %v2183, %v2184
    %v2186 = vrot.slane %v2185, 1
    %v2187 = vadd.f32 %v2185, %v2186
    %v2188 = vsel %vm266, %v2166, 0.0
    %v2189 = vrot.slane %v2188, 4
    %v2190 = vadd.f32 %v2188, %v2189
    %v2191 = vrot.slane %v2190, 2
    %v2192 = vadd.f32 %v2190, %v2191
    %v2193 = vrot.slane %v2192, 1
    %v2194 = vadd.f32 %v2192, %v2193
    %2195 = vst [vmem:[#allocation1] ss:$2 sm:$0xff] %v1938
    %s2196 = scalar_lea.vmem [#allocation1], 1
    %2197 = vst [vmem:[%s2196] ss:$2 sm:$0xff] %v1966
    %v2198 = vld.sshfl [vmem:[#allocation1] sm:$0xff pattern:$0x75316420]
    %2199 = vrot.lane.b32.xlu0 %v2198, 64
    %v2200 = vpop.permute.xlu0 %2199
    %v2203 = vsel %vm266, %v2173, 0
    %2205 = vmatpush.msra.mxu0 0.0
    %2206 = vmatpush.msra.mxu0 0.0
    %2207 = vmatpush.msra.mxu0 0.0
    %2208 = vmatpush.msra.mxu0 0.0
    %2209 = vmatpush.msra.mxu0 0.0
    %2210 = vmatpush.msra.mxu0 0.0
    %2211 = vmatpush.msra.mxu0 0.0
    %2212 = vmatpush.msra.mxu0 0.0
    %2213 = vmatpush.msra.mxu0 0.0
    %2214 = vmatpush.msra.mxu0 0.0
    %2215 = vmatpush.msra.mxu0 0.0
    %2216 = vmatpush.msra.mxu0 0.0
    %2217 = vmatpush.msra.mxu0 0.0
    %2218 = vmatpush.msra.mxu0 0.0
    %2219 = vmatpush.msra.mxu0 0.0
    %2220 = vmatpush.msra.mxu0 %v2200
    %2221 = vmatmul.f32.gmra.mxu0 %v2203
    %v2222 = vpop.f32.mrf.mxu0
    %v2223 = vadd.f32 0.0, %v2222
    %2224 = vdwg.mxu0
    %2225 = vst [vmem:[#allocation1] ss:$2 sm:$0xff] %v1944
    %s2226 = scalar_lea.vmem [#allocation1], 1
    %2227 = vst [vmem:[%s2226] ss:$2 sm:$0xff] %v1972
    %v2228 = vld.sshfl [vmem:[#allocation1] sm:$0xff pattern:$0x75316420]
    %2229 = vrot.lane.b32.xlu0 %v2228, 64
    %v2230 = vpop.permute.xlu0 %2229
    %v2233 = vsel %vm266, %v2180, 0
    %2235 = vmatpush.msra.mxu0 0.0
    %2236 = vmatpush.msra.mxu0 0.0
    %2237 = vmatpush.msra.mxu0 0.0
    %2238 = vmatpush.msra.mxu0 0.0
    %2239 = vmatpush.msra.mxu0 0.0
    %2240 = vmatpush.msra.mxu0 0.0
    %2241 = vmatpush.msra.mxu0 0.0
    %2242 = vmatpush.msra.mxu0 0.0
    %2243 = vmatpush.msra.mxu0 0.0
    %2244 = vmatpush.msra.mxu0 0.0
    %2245 = vmatpush.msra.mxu0 0.0
    %2246 = vmatpush.msra.mxu0 0.0
    %2247 = vmatpush.msra.mxu0 0.0
    %2248 = vmatpush.msra.mxu0 0.0
    %2249 = vmatpush.msra.mxu0 0.0
    %2250 = vmatpush.msra.mxu0 %v2230
    %2251 = vmatmul.f32.gmra.mxu0 %v2233
    %v2252 = vpop.f32.mrf.mxu0
    %v2253 = vadd.f32 0.0, %v2252
    %2254 = vdwg.mxu0
    %2255 = vst [vmem:[#allocation1] ss:$2 sm:$0xff] %v1942
    %s2256 = scalar_lea.vmem [#allocation1], 1
    %2257 = vst [vmem:[%s2256] ss:$2 sm:$0xff] %v1970
    %v2258 = vld.sshfl [vmem:[#allocation1] sm:$0xff pattern:$0x75316420]
    %2259 = vrot.lane.b32.xlu0 %v2258, 64
    %v2260 = vpop.permute.xlu0 %2259
    %v2263 = vsel %vm266, %v2187, 0
    %2265 = vmatpush.msra.mxu0 0.0
    %2266 = vmatpush.msra.mxu0 0.0
    %2267 = vmatpush.msra.mxu0 0.0
    %2268 = vmatpush.msra.mxu0 0.0
    %2269 = vmatpush.msra.mxu0 0.0
    %2270 = vmatpush.msra.mxu0 0.0
    %2271 = vmatpush.msra.mxu0 0.0
    %2272 = vmatpush.msra.mxu0 0.0
    %2273 = vmatpush.msra.mxu0 0.0
    %2274 = vmatpush.msra.mxu0 0.0
    %2275 = vmatpush.msra.mxu0 0.0
    %2276 = vmatpush.msra.mxu0 0.0
    %2277 = vmatpush.msra.mxu0 0.0
    %2278 = vmatpush.msra.mxu0 0.0
    %2279 = vmatpush.msra.mxu0 0.0
    %2280 = vmatpush.msra.mxu0 %v2260
    %2281 = vmatmul.f32.gmra.mxu0 %v2263
    %v2282 = vpop.f32.mrf.mxu0
    %v2283 = vadd.f32 0.0, %v2282
    %2284 = vdwg.mxu0
    %2285 = vst [vmem:[#allocation1] ss:$2 sm:$0xff] %v1946
    %s2286 = scalar_lea.vmem [#allocation1], 1
    %2287 = vst [vmem:[%s2286] ss:$2 sm:$0xff] %v1974
    %v2288 = vld.sshfl [vmem:[#allocation1] sm:$0xff pattern:$0x75316420]
    %2289 = vrot.lane.b32.xlu0 %v2288, 64
    %v2290 = vpop.permute.xlu0 %2289
    %v2293 = vsel %vm266, %v2194, 0
    %2295 = vmatpush.msra.mxu0 0.0
    %2296 = vmatpush.msra.mxu0 0.0
    %2297 = vmatpush.msra.mxu0 0.0
    %2298 = vmatpush.msra.mxu0 0.0
    %2299 = vmatpush.msra.mxu0 0.0
    %2300 = vmatpush.msra.mxu0 0.0
    %2301 = vmatpush.msra.mxu0 0.0
    %2302 = vmatpush.msra.mxu0 0.0
    %2303 = vmatpush.msra.mxu0 0.0
    %2304 = vmatpush.msra.mxu0 0.0
    %2305 = vmatpush.msra.mxu0 0.0
    %2306 = vmatpush.msra.mxu0 0.0
    %2307 = vmatpush.msra.mxu0 0.0
    %2308 = vmatpush.msra.mxu0 0.0
    %2309 = vmatpush.msra.mxu0 0.0
    %2310 = vmatpush.msra.mxu0 %v2290
    %2311 = vmatmul.f32.gmra.mxu0 %v2293
    %v2312 = vpop.f32.mrf.mxu0
    %v2313 = vadd.f32 0.0, %v2312
    %2314 = vdwg.mxu0
    %v2315 = vld [vmem:[#allocation21] sm:$0xff]
    %v2316 = vld [vmem:[#allocation21 + $0x8] sm:$0xff]
    %v2317 = vld [vmem:[#allocation21 + $0x10] sm:$0xff]
    %v2318 = vld [vmem:[#allocation21 + $0x18] sm:$0xff]
    %v2319 = vld [vmem:[%s14] sm:$0x1]
    %v2321 = vperm.slane %v2319, 0
    %v2327 = vrot.slane %v2253, 7
    %vm2328 = vcmask 1041409
    %v2329 = vsel %vm2328, %v2327, %v2223
    %v2330 = vrot.slane %v2283, 6
    %vm2331 = vcmask 1042434
    %v2332 = vsel %vm2331, %v2330, %v2329
    %v2333 = vrot.slane %v2313, 5
    %vm2334 = vcmask 1043459
    %v2335 = vsel %vm2334, %v2333, %v2332
    %v2336 = vsel %vm334, %v2335, 0
    %2338 = vmatpush.msra.mxu0 0.0
    %2339 = vmatpush.msra.mxu0 0.0
    %2340 = vmatpush.msra.mxu0 0.0
    %2341 = vmatpush.msra.mxu0 0.0
    %2342 = vmatpush.msra.mxu0 0.0
    %2343 = vmatpush.msra.mxu0 0.0
    %2344 = vmatpush.msra.mxu0 0.0
    %2345 = vmatpush.msra.mxu0 0.0
    %2346 = vmatpush.msra.mxu0 0.0
    %2347 = vmatpush.msra.mxu0 0.0
    %2348 = vmatpush.msra.mxu0 0.0
    %2349 = vmatpush.msra.mxu0 0.0
    %2350 = vmatpush.msra.mxu0 %v2318
    %2351 = vmatpush.msra.mxu0 %v2317
    %2352 = vmatpush.msra.mxu0 %v2316
    %2353 = vmatpush.msra.mxu0 %v2315
    %2354 = vmatmul.f32.gmra.mxu0 %v2336
    %v2355 = vpop.f32.mrf.mxu0
    %v2356 = vadd.f32 %v2321, %v2355
    %2357 = vdwg.mxu0
    %v2358 = vtanh.pop %v2356
    %vm2359 = vcmask 257024
    %2360 = vst.msk [vmem:[#allocation22] sm:$0xf] %vm2359, %v2358
    // Predicated region
    $region98: #{tpu_custom_call.1} parent=1 // pred_check
      _
    $region99: #{tpu_custom_call.1} parent=1 // pred_check_branch
      %2362 = sbr.rel (0) target = $region101
    $region100: #{tpu_custom_call.1} parent=1 // pred_region
      %2364 = vsyncadd [#allocation9], 0
      %s2366 = sshll.u32 [#allocation22], 4
      %s2367 = int_to_ptr.vmem [resolvable:$true] %s2366
      %s2368 = sshll.u32 %s15, 4
      %s2369 = int_to_ptr.hbm [resolvable:$true] %s2368
      %2371 = dma.vmem_to_hbm [thread:$0]  %s2367, 64, %s2369, [#allocation9]
    $region101: #{tpu_custom_call.1} parent=1 // pred_fallthru
      _
    // Predicated region
    $region102: #{tpu_custom_call.1} parent=1 // pred_check
      _
    $region103: #{tpu_custom_call.1} parent=1 // pred_check_branch
      %2373 = sbr.rel (0) target = $region105
    $region104: #{tpu_custom_call.1} parent=1 // pred_region
      %2375 = dma.done [#allocation9], 64
    $region105: #{tpu_custom_call.1} parent=1 // pred_fallthru
      _
    %2376 = vsyncpa [#allocation8], 1
    %2377 = vsyncpa [#allocation11], 1
    %2378 = vsyncpa [#allocation14], 1
    %2379 = vsyncpa [#allocation17], 1
    %2380 = vsyncpa [#allocation20], 1
    %2381 = vsyncpa [#allocation9], 1

</llo_original>
